<compile_context>
chip_gen: v6e
topology: v6e:2x2x1
jax: 0.10.0
libtpu: 0.0.40
codegen_flags: <defaults>
</compile_context>

<pallas_src>
import functools

import jax
import jax.numpy as jnp
from jax.experimental import pallas as pl
from jax.experimental.pallas import tpu as pltpu

LANE = 128


def _round_up(n, m):
    return ((n + m - 1) // m) * m


# ----------------------------------------------------------------------------
# Fused Pallas kernel: the whole Dict_pose MLP for one batch tile.
# refs = [Wd_0, Wu_0, b_0, ..., Wd_{L-1}, Wu_{L-1}, b_{L-1}, out]
#   Wd_i = (Sigma_i[:, None] * Vt_i).T   zero-padded, shape (in_pad_i,  r_pad_i)
#   Wu_i = U_i.T                         zero-padded, shape (r_pad_i,  out_pad_i)
#   b_i  = bias_i                        zero-padded, shape (1,        out_pad_i)
# ----------------------------------------------------------------------------
def _dict_pose_kernel(x_in_ref, *refs, num_layers, latent_in):
    o_ref = refs[-1]
    w = refs[:-1]
    x_in = x_in_ref[...]                 # (TILE_B, d_in_pad); resident for skip-concat
    x = x_in
    for i in range(num_layers):
        wd = w[3 * i][...]
        wu = w[3 * i + 1][...]
        b = w[3 * i + 2][...]
        if i in latent_in:
            x = jnp.concatenate([x, x_in], axis=-1)
        h = jnp.dot(x, wd, preferred_element_type=jnp.float32)        # Vt + Sigma (folded)
        y = jnp.dot(h, wu, preferred_element_type=jnp.float32) + b    # U + bias
        if i < num_layers - 1:
            y = jnp.maximum(y, 0.0)
            # TODO(synk): training-mode dropout not implemented (eval-mode identity).
        x = y
    o_ref[...] = x.astype(o_ref.dtype)


# ----------------------------------------------------------------------------
# Parameter packing: fold Sigma into Vt, transpose, zero-pad to lane-dense 128.
# ----------------------------------------------------------------------------
def prepare_packed_params(params, d_in, latent_in, lane=LANE):
    d_in_pad = _round_up(d_in, lane)
    packed = []
    prev_width, prev_pad = d_in, d_in_pad
    for i, p in enumerate(params):
        Vt, Sigma, U, bias = p["Vt"], p["Sigma"], p["U"], p["bias"]
        r, din = Vt.shape
        dout = U.shape[0]
        assert U.shape[1] == r and Sigma.shape == (r,)
        r_pad = _round_up(r, lane)
        dout_pad = _round_up(dout, lane)

        w_down = (Sigma[:, None] * Vt).T.astype(jnp.float32)   # (din, r), Sigma folded in
        if i in latent_in:
            # Input to this layer is concat([x (prev_pad wide), input (d_in_pad wide)]).
            assert din == prev_width + d_in, "unexpected skip-concat width"
            in_pad = prev_pad + d_in_pad
            wd = jnp.zeros((in_pad, r_pad), jnp.float32)
            wd = wd.at[:prev_width, :r].set(w_down[:prev_width])
            wd = wd.at[prev_pad:prev_pad + d_in, :r].set(w_down[prev_width:])
        else:
            assert din == prev_width
            wd = jnp.zeros((prev_pad, r_pad), jnp.float32).at[:din, :r].set(w_down)

        wu = jnp.zeros((r_pad, dout_pad), jnp.float32).at[:r, :dout].set(U.T)
        b = jnp.zeros((1, dout_pad), jnp.float32).at[0, :dout].set(bias)
        packed.append((wd, wu, b))
        prev_width, prev_pad = dout, dout_pad
    return packed, d_in_pad


# ----------------------------------------------------------------------------
# Wrapper: pad batch, launch one fused pallas_call over a batch grid.
# ----------------------------------------------------------------------------
def dict_pose_forward(params, inp, latent_in, *, tile_b=64):
    num_layers = len(params)
    batch, d_in = inp.shape
    d_out = params[-1]["U"].shape[0]

    packed, d_in_pad = prepare_packed_params(params, d_in, latent_in)
    dout_pad = packed[-1][1].shape[1]

    b_pad = _round_up(batch, tile_b)
    x_pad = jnp.zeros((b_pad, d_in_pad), jnp.float32).at[:batch, :d_in].set(inp)

    flat_w = [a for trip in packed for a in trip]
    w_specs = [pl.BlockSpec(w.shape, lambda i: (0, 0)) for w in flat_w]  # resident weights

    kernel = functools.partial(
        _dict_pose_kernel, num_layers=num_layers, latent_in=tuple(latent_in))

    out = pl.pallas_call(
        kernel,
        out_shape=jax.ShapeDtypeStruct((b_pad, dout_pad), jnp.float32),
        grid=(b_pad // tile_b,),
        in_specs=[pl.BlockSpec((tile_b, d_in_pad), lambda i: (i, 0))] + w_specs,
        out_specs=pl.BlockSpec((tile_b, dout_pad), lambda i: (i, 0)),
        compiler_params=pltpu.CompilerParams(
            dimension_semantics=("parallel",)),
    )(x_pad, *flat_w)

    # xyz_warped = input[:, -3:] + x (narrow slice/add kept outside the kernel
    # so the kernel's store stays lane-dense).
    return inp[:, -3:] + out[:batch, :d_out]


# ----------------------------------------------------------------------------
# Pure-jnp reference mirroring the torch forward (un-folded Sigma, un-padded).
# ----------------------------------------------------------------------------
def dict_pose_reference(params, inp, latent_in):
    num_layers = len(params)
    hp = jax.lax.Precision.HIGHEST
    x = inp
    for i, p in enumerate(params):
        if i in latent_in:
            x = jnp.concatenate([x, inp], axis=1)
        x = jnp.dot(x, p["Vt"].T, precision=hp)
        x = x * p["Sigma"][None, :]
        x = jnp.dot(x, p["U"].T, precision=hp) + p["bias"]
        if i < num_layers - 1:
            x = jnp.maximum(x, 0.0)
    return inp[:, -3:] + x


def make_params(key, dims_in, dims_out):
    """Deterministic synthetic SVD-factor parameters matching Dict_pose shapes."""
    params = []
    for i, (din, dout) in enumerate(zip(dims_in, dims_out)):
        r = min(din, dout)
        keys = jax.random.split(jax.random.fold_in(key, i), 4)
        params.append(dict(
            U=jax.random.normal(keys[0], (dout, r), jnp.float32) * 0.05,
            Sigma=jax.random.uniform(keys[1], (r,), jnp.float32, 0.5, 1.5),
            Vt=jax.random.normal(keys[2], (r, din), jnp.float32) * 0.05,
            bias=jax.random.normal(keys[3], (dout,), jnp.float32) * 0.01,
        ))
    return params


if __name__ == "__main__":
    key = jax.random.PRNGKey(0)

    # Small shapes consistent with the module: 8 SVD layers, skip-concat of the
    # input before layer 4, 3-d output displacement added to input[:, -3:].
    batch = 200          # deliberately not a multiple of tile_b (exercises padding)
    d_in = 32            # e.g. latent code (29) + xyz (3)
    hidden = 64
    d_out = 3
    num_layers = 8
    latent_in = [4]
    tile_b = 64

    dims_in = [d_in] + [hidden] * 3 + [hidden + d_in] + [hidden] * 3
    dims_out = [hidden] * (num_layers - 1) + [d_out]

    params = make_params(key, dims_in, dims_out)
    inp = jax.random.normal(jax.random.fold_in(key, 999), (batch, d_in), jnp.float32)

    out = dict_pose_forward(params, inp, latent_in, tile_b=tile_b)
    out = jax.block_until_ready(out)

    ref = dict_pose_reference(params, inp, latent_in)
    assert out.shape == (batch, d_out)
    assert jnp.allclose(out, ref, atol=1e-4, rtol=1e-4), \
        float(jnp.max(jnp.abs(out - ref)))

    print("KERNEL_OK")
</pallas_src>

<mosaic_0001>
module attributes {stable_mosaic.version = 11 : i64} {
  func.func @_dict_pose_kernel(%arg0: i32, %arg1: memref<64x128xf32, #tpu.memory_space<vmem>>, %arg2: memref<128x128xf32, #tpu.memory_space<vmem>>, %arg3: memref<128x128xf32, #tpu.memory_space<vmem>>, %arg4: memref<1x128xf32, #tpu.memory_space<vmem>>, %arg5: memref<128x128xf32, #tpu.memory_space<vmem>>, %arg6: memref<128x128xf32, #tpu.memory_space<vmem>>, %arg7: memref<1x128xf32, #tpu.memory_space<vmem>>, %arg8: memref<128x128xf32, #tpu.memory_space<vmem>>, %arg9: memref<128x128xf32, #tpu.memory_space<vmem>>, %arg10: memref<1x128xf32, #tpu.memory_space<vmem>>, %arg11: memref<128x128xf32, #tpu.memory_space<vmem>>, %arg12: memref<128x128xf32, #tpu.memory_space<vmem>>, %arg13: memref<1x128xf32, #tpu.memory_space<vmem>>, %arg14: memref<256x128xf32, #tpu.memory_space<vmem>>, %arg15: memref<128x128xf32, #tpu.memory_space<vmem>>, %arg16: memref<1x128xf32, #tpu.memory_space<vmem>>, %arg17: memref<128x128xf32, #tpu.memory_space<vmem>>, %arg18: memref<128x128xf32, #tpu.memory_space<vmem>>, %arg19: memref<1x128xf32, #tpu.memory_space<vmem>>, %arg20: memref<128x128xf32, #tpu.memory_space<vmem>>, %arg21: memref<128x128xf32, #tpu.memory_space<vmem>>, %arg22: memref<1x128xf32, #tpu.memory_space<vmem>>, %arg23: memref<128x128xf32, #tpu.memory_space<vmem>>, %arg24: memref<128x128xf32, #tpu.memory_space<vmem>>, %arg25: memref<1x128xf32, #tpu.memory_space<vmem>>, %arg26: memref<64x128xf32, #tpu.memory_space<vmem>>) attributes {dimension_semantics = [#tpu.dimension_semantics<parallel>], iteration_bounds = array<i64: 4>, scalar_prefetch = 0 : i64, scratch_operands = 0 : i64, tpu.core_type = #tpu.core_type<tc>, window_params = [{transform_indices = @transform_0, window_bounds = array<i64: 64, 128>}, {pipeline_mode = #tpu.pipeline_mode<synchronous>, transform_indices = @transform_1, window_bounds = array<i64: 128, 128>}, {pipeline_mode = #tpu.pipeline_mode<synchronous>, transform_indices = @transform_2, window_bounds = array<i64: 128, 128>}, {pipeline_mode = #tpu.pipeline_mode<synchronous>, transform_indices = @transform_3, window_bounds = array<i64: 1, 128>}, {pipeline_mode = #tpu.pipeline_mode<synchronous>, transform_indices = @transform_4, window_bounds = array<i64: 128, 128>}, {pipeline_mode = #tpu.pipeline_mode<synchronous>, transform_indices = @transform_5, window_bounds = array<i64: 128, 128>}, {pipeline_mode = #tpu.pipeline_mode<synchronous>, transform_indices = @transform_6, window_bounds = array<i64: 1, 128>}, {pipeline_mode = #tpu.pipeline_mode<synchronous>, transform_indices = @transform_7, window_bounds = array<i64: 128, 128>}, {pipeline_mode = #tpu.pipeline_mode<synchronous>, transform_indices = @transform_8, window_bounds = array<i64: 128, 128>}, {pipeline_mode = #tpu.pipeline_mode<synchronous>, transform_indices = @transform_9, window_bounds = array<i64: 1, 128>}, {pipeline_mode = #tpu.pipeline_mode<synchronous>, transform_indices = @transform_10, window_bounds = array<i64: 128, 128>}, {pipeline_mode = #tpu.pipeline_mode<synchronous>, transform_indices = @transform_11, window_bounds = array<i64: 128, 128>}, {pipeline_mode = #tpu.pipeline_mode<synchronous>, transform_indices = @transform_12, window_bounds = array<i64: 1, 128>}, {pipeline_mode = #tpu.pipeline_mode<synchronous>, transform_indices = @transform_13, window_bounds = array<i64: 256, 128>}, {pipeline_mode = #tpu.pipeline_mode<synchronous>, transform_indices = @transform_14, window_bounds = array<i64: 128, 128>}, {pipeline_mode = #tpu.pipeline_mode<synchronous>, transform_indices = @transform_15, window_bounds = array<i64: 1, 128>}, {pipeline_mode = #tpu.pipeline_mode<synchronous>, transform_indices = @transform_16, window_bounds = array<i64: 128, 128>}, {pipeline_mode = #tpu.pipeline_mode<synchronous>, transform_indices = @transform_17, window_bounds = array<i64: 128, 128>}, {pipeline_mode = #tpu.pipeline_mode<synchronous>, transform_indices = @transform_18, window_bounds = array<i64: 1, 128>}, {pipeline_mode = #tpu.pipeline_mode<synchronous>, transform_indices = @transform_19, window_bounds = array<i64: 128, 128>}, {pipeline_mode = #tpu.pipeline_mode<synchronous>, transform_indices = @transform_20, window_bounds = array<i64: 128, 128>}, {pipeline_mode = #tpu.pipeline_mode<synchronous>, transform_indices = @transform_21, window_bounds = array<i64: 1, 128>}, {pipeline_mode = #tpu.pipeline_mode<synchronous>, transform_indices = @transform_22, window_bounds = array<i64: 128, 128>}, {pipeline_mode = #tpu.pipeline_mode<synchronous>, transform_indices = @transform_23, window_bounds = array<i64: 128, 128>}, {pipeline_mode = #tpu.pipeline_mode<synchronous>, transform_indices = @transform_24, window_bounds = array<i64: 1, 128>}, {transform_indices = @transform_25, window_bounds = array<i64: 64, 128>}]} {
    %c0 = arith.constant 0 : index
    %c0_0 = arith.constant 0 : index
    %0 = vector.load %arg1[%c0, %c0_0] : memref<64x128xf32, #tpu.memory_space<vmem>>, vector<64x128xf32>
    %c0_1 = arith.constant 0 : index
    %c0_2 = arith.constant 0 : index
    %1 = vector.load %arg2[%c0_1, %c0_2] : memref<128x128xf32, #tpu.memory_space<vmem>>, vector<128x128xf32>
    %c0_3 = arith.constant 0 : index
    %c0_4 = arith.constant 0 : index
    %2 = vector.load %arg3[%c0_3, %c0_4] : memref<128x128xf32, #tpu.memory_space<vmem>>, vector<128x128xf32>
    %c0_5 = arith.constant 0 : index
    %c0_6 = arith.constant 0 : index
    %3 = vector.load %arg4[%c0_5, %c0_6] : memref<1x128xf32, #tpu.memory_space<vmem>>, vector<1x128xf32>
    %cst = arith.constant dense<0.000000e+00> : vector<64x128xf32>
    %4 = tpu.matmul %0, %1, %cst {dimension_numbers = #tpu.dot_dimension_numbers<[1], [0], [0], [1], [0, 0, 1, 1], [], []>} : vector<64x128xf32>, vector<128x128xf32>, vector<64x128xf32> -> vector<64x128xf32>
    %cst_7 = arith.constant dense<0.000000e+00> : vector<64x128xf32>
    %5 = tpu.matmul %4, %2, %cst_7 {dimension_numbers = #tpu.dot_dimension_numbers<[1], [0], [0], [1], [0, 0, 1, 1], [], []>} : vector<64x128xf32>, vector<128x128xf32>, vector<64x128xf32> -> vector<64x128xf32>
    %6 = vector.broadcast %3 : vector<1x128xf32> to vector<64x128xf32>
    %7 = arith.addf %5, %6 : vector<64x128xf32>
    %cst_8 = arith.constant 0.000000e+00 : f32
    %8 = vector.broadcast %cst_8 : f32 to vector<64x128xf32>
    %9 = arith.maximumf %7, %8 : vector<64x128xf32>
    %c0_9 = arith.constant 0 : index
    %c0_10 = arith.constant 0 : index
    %10 = vector.load %arg5[%c0_9, %c0_10] : memref<128x128xf32, #tpu.memory_space<vmem>>, vector<128x128xf32>
    %c0_11 = arith.constant 0 : index
    %c0_12 = arith.constant 0 : index
    %11 = vector.load %arg6[%c0_11, %c0_12] : memref<128x128xf32, #tpu.memory_space<vmem>>, vector<128x128xf32>
    %c0_13 = arith.constant 0 : index
    %c0_14 = arith.constant 0 : index
    %12 = vector.load %arg7[%c0_13, %c0_14] : memref<1x128xf32, #tpu.memory_space<vmem>>, vector<1x128xf32>
    %cst_15 = arith.constant dense<0.000000e+00> : vector<64x128xf32>
    %13 = tpu.matmul %9, %10, %cst_15 {dimension_numbers = #tpu.dot_dimension_numbers<[1], [0], [0], [1], [0, 0, 1, 1], [], []>} : vector<64x128xf32>, vector<128x128xf32>, vector<64x128xf32> -> vector<64x128xf32>
    %cst_16 = arith.constant dense<0.000000e+00> : vector<64x128xf32>
    %14 = tpu.matmul %13, %11, %cst_16 {dimension_numbers = #tpu.dot_dimension_numbers<[1], [0], [0], [1], [0, 0, 1, 1], [], []>} : vector<64x128xf32>, vector<128x128xf32>, vector<64x128xf32> -> vector<64x128xf32>
    %15 = vector.broadcast %12 : vector<1x128xf32> to vector<64x128xf32>
    %16 = arith.addf %14, %15 : vector<64x128xf32>
    %cst_17 = arith.constant 0.000000e+00 : f32
    %17 = vector.broadcast %cst_17 : f32 to vector<64x128xf32>
    %18 = arith.maximumf %16, %17 : vector<64x128xf32>
    %c0_18 = arith.constant 0 : index
    %c0_19 = arith.constant 0 : index
    %19 = vector.load %arg8[%c0_18, %c0_19] : memref<128x128xf32, #tpu.memory_space<vmem>>, vector<128x128xf32>
    %c0_20 = arith.constant 0 : index
    %c0_21 = arith.constant 0 : index
    %20 = vector.load %arg9[%c0_20, %c0_21] : memref<128x128xf32, #tpu.memory_space<vmem>>, vector<128x128xf32>
    %c0_22 = arith.constant 0 : index
    %c0_23 = arith.constant 0 : index
    %21 = vector.load %arg10[%c0_22, %c0_23] : memref<1x128xf32, #tpu.memory_space<vmem>>, vector<1x128xf32>
    %cst_24 = arith.constant dense<0.000000e+00> : vector<64x128xf32>
    %22 = tpu.matmul %18, %19, %cst_24 {dimension_numbers = #tpu.dot_dimension_numbers<[1], [0], [0], [1], [0, 0, 1, 1], [], []>} : vector<64x128xf32>, vector<128x128xf32>, vector<64x128xf32> -> vector<64x128xf32>
    %cst_25 = arith.constant dense<0.000000e+00> : vector<64x128xf32>
    %23 = tpu.matmul %22, %20, %cst_25 {dimension_numbers = #tpu.dot_dimension_numbers<[1], [0], [0], [1], [0, 0, 1, 1], [], []>} : vector<64x128xf32>, vector<128x128xf32>, vector<64x128xf32> -> vector<64x128xf32>
    %24 = vector.broadcast %21 : vector<1x128xf32> to vector<64x128xf32>
    %25 = arith.addf %23, %24 : vector<64x128xf32>
    %cst_26 = arith.constant 0.000000e+00 : f32
    %26 = vector.broadcast %cst_26 : f32 to vector<64x128xf32>
    %27 = arith.maximumf %25, %26 : vector<64x128xf32>
    %c0_27 = arith.constant 0 : index
    %c0_28 = arith.constant 0 : index
    %28 = vector.load %arg11[%c0_27, %c0_28] : memref<128x128xf32, #tpu.memory_space<vmem>>, vector<128x128xf32>
    %c0_29 = arith.constant 0 : index
    %c0_30 = arith.constant 0 : index
    %29 = vector.load %arg12[%c0_29, %c0_30] : memref<128x128xf32, #tpu.memory_space<vmem>>, vector<128x128xf32>
    %c0_31 = arith.constant 0 : index
    %c0_32 = arith.constant 0 : index
    %30 = vector.load %arg13[%c0_31, %c0_32] : memref<1x128xf32, #tpu.memory_space<vmem>>, vector<1x128xf32>
    %cst_33 = arith.constant dense<0.000000e+00> : vector<64x128xf32>
    %31 = tpu.matmul %27, %28, %cst_33 {dimension_numbers = #tpu.dot_dimension_numbers<[1], [0], [0], [1], [0, 0, 1, 1], [], []>} : vector<64x128xf32>, vector<128x128xf32>, vector<64x128xf32> -> vector<64x128xf32>
    %cst_34 = arith.constant dense<0.000000e+00> : vector<64x128xf32>
    %32 = tpu.matmul %31, %29, %cst_34 {dimension_numbers = #tpu.dot_dimension_numbers<[1], [0], [0], [1], [0, 0, 1, 1], [], []>} : vector<64x128xf32>, vector<128x128xf32>, vector<64x128xf32> -> vector<64x128xf32>
    %33 = vector.broadcast %30 : vector<1x128xf32> to vector<64x128xf32>
    %34 = arith.addf %32, %33 : vector<64x128xf32>
    %cst_35 = arith.constant 0.000000e+00 : f32
    %35 = vector.broadcast %cst_35 : f32 to vector<64x128xf32>
    %36 = arith.maximumf %34, %35 : vector<64x128xf32>
    %c0_36 = arith.constant 0 : index
    %c0_37 = arith.constant 0 : index
    %37 = vector.load %arg14[%c0_36, %c0_37] : memref<256x128xf32, #tpu.memory_space<vmem>>, vector<256x128xf32>
    %c0_38 = arith.constant 0 : index
    %c0_39 = arith.constant 0 : index
    %38 = vector.load %arg15[%c0_38, %c0_39] : memref<128x128xf32, #tpu.memory_space<vmem>>, vector<128x128xf32>
    %c0_40 = arith.constant 0 : index
    %c0_41 = arith.constant 0 : index
    %39 = vector.load %arg16[%c0_40, %c0_41] : memref<1x128xf32, #tpu.memory_space<vmem>>, vector<1x128xf32>
    %40 = tpu.concatenate %36, %0 in 1 : vector<64x128xf32>, vector<64x128xf32> -> vector<64x256xf32>
    %cst_42 = arith.constant dense<0.000000e+00> : vector<64x128xf32>
    %41 = tpu.matmul %40, %37, %cst_42 {dimension_numbers = #tpu.dot_dimension_numbers<[1], [0], [0], [1], [0, 0, 1, 1], [], []>} : vector<64x256xf32>, vector<256x128xf32>, vector<64x128xf32> -> vector<64x128xf32>
    %cst_43 = arith.constant dense<0.000000e+00> : vector<64x128xf32>
    %42 = tpu.matmul %41, %38, %cst_43 {dimension_numbers = #tpu.dot_dimension_numbers<[1], [0], [0], [1], [0, 0, 1, 1], [], []>} : vector<64x128xf32>, vector<128x128xf32>, vector<64x128xf32> -> vector<64x128xf32>
    %43 = vector.broadcast %39 : vector<1x128xf32> to vector<64x128xf32>
    %44 = arith.addf %42, %43 : vector<64x128xf32>
    %cst_44 = arith.constant 0.000000e+00 : f32
    %45 = vector.broadcast %cst_44 : f32 to vector<64x128xf32>
    %46 = arith.maximumf %44, %45 : vector<64x128xf32>
    %c0_45 = arith.constant 0 : index
    %c0_46 = arith.constant 0 : index
    %47 = vector.load %arg17[%c0_45, %c0_46] : memref<128x128xf32, #tpu.memory_space<vmem>>, vector<128x128xf32>
    %c0_47 = arith.constant 0 : index
    %c0_48 = arith.constant 0 : index
    %48 = vector.load %arg18[%c0_47, %c0_48] : memref<128x128xf32, #tpu.memory_space<vmem>>, vector<128x128xf32>
    %c0_49 = arith.constant 0 : index
    %c0_50 = arith.constant 0 : index
    %49 = vector.load %arg19[%c0_49, %c0_50] : memref<1x128xf32, #tpu.memory_space<vmem>>, vector<1x128xf32>
    %cst_51 = arith.constant dense<0.000000e+00> : vector<64x128xf32>
    %50 = tpu.matmul %46, %47, %cst_51 {dimension_numbers = #tpu.dot_dimension_numbers<[1], [0], [0], [1], [0, 0, 1, 1], [], []>} : vector<64x128xf32>, vector<128x128xf32>, vector<64x128xf32> -> vector<64x128xf32>
    %cst_52 = arith.constant dense<0.000000e+00> : vector<64x128xf32>
    %51 = tpu.matmul %50, %48, %cst_52 {dimension_numbers = #tpu.dot_dimension_numbers<[1], [0], [0], [1], [0, 0, 1, 1], [], []>} : vector<64x128xf32>, vector<128x128xf32>, vector<64x128xf32> -> vector<64x128xf32>
    %52 = vector.broadcast %49 : vector<1x128xf32> to vector<64x128xf32>
    %53 = arith.addf %51, %52 : vector<64x128xf32>
    %cst_53 = arith.constant 0.000000e+00 : f32
    %54 = vector.broadcast %cst_53 : f32 to vector<64x128xf32>
    %55 = arith.maximumf %53, %54 : vector<64x128xf32>
    %c0_54 = arith.constant 0 : index
    %c0_55 = arith.constant 0 : index
    %56 = vector.load %arg20[%c0_54, %c0_55] : memref<128x128xf32, #tpu.memory_space<vmem>>, vector<128x128xf32>
    %c0_56 = arith.constant 0 : index
    %c0_57 = arith.constant 0 : index
    %57 = vector.load %arg21[%c0_56, %c0_57] : memref<128x128xf32, #tpu.memory_space<vmem>>, vector<128x128xf32>
    %c0_58 = arith.constant 0 : index
    %c0_59 = arith.constant 0 : index
    %58 = vector.load %arg22[%c0_58, %c0_59] : memref<1x128xf32, #tpu.memory_space<vmem>>, vector<1x128xf32>
    %cst_60 = arith.constant dense<0.000000e+00> : vector<64x128xf32>
    %59 = tpu.matmul %55, %56, %cst_60 {dimension_numbers = #tpu.dot_dimension_numbers<[1], [0], [0], [1], [0, 0, 1, 1], [], []>} : vector<64x128xf32>, vector<128x128xf32>, vector<64x128xf32> -> vector<64x128xf32>
    %cst_61 = arith.constant dense<0.000000e+00> : vector<64x128xf32>
    %60 = tpu.matmul %59, %57, %cst_61 {dimension_numbers = #tpu.dot_dimension_numbers<[1], [0], [0], [1], [0, 0, 1, 1], [], []>} : vector<64x128xf32>, vector<128x128xf32>, vector<64x128xf32> -> vector<64x128xf32>
    %61 = vector.broadcast %58 : vector<1x128xf32> to vector<64x128xf32>
    %62 = arith.addf %60, %61 : vector<64x128xf32>
    %cst_62 = arith.constant 0.000000e+00 : f32
    %63 = vector.broadcast %cst_62 : f32 to vector<64x128xf32>
    %64 = arith.maximumf %62, %63 : vector<64x128xf32>
    %c0_63 = arith.constant 0 : index
    %c0_64 = arith.constant 0 : index
    %65 = vector.load %arg23[%c0_63, %c0_64] : memref<128x128xf32, #tpu.memory_space<vmem>>, vector<128x128xf32>
    %c0_65 = arith.constant 0 : index
    %c0_66 = arith.constant 0 : index
    %66 = vector.load %arg24[%c0_65, %c0_66] : memref<128x128xf32, #tpu.memory_space<vmem>>, vector<128x128xf32>
    %c0_67 = arith.constant 0 : index
    %c0_68 = arith.constant 0 : index
    %67 = vector.load %arg25[%c0_67, %c0_68] : memref<1x128xf32, #tpu.memory_space<vmem>>, vector<1x128xf32>
    %cst_69 = arith.constant dense<0.000000e+00> : vector<64x128xf32>
    %68 = tpu.matmul %64, %65, %cst_69 {dimension_numbers = #tpu.dot_dimension_numbers<[1], [0], [0], [1], [0, 0, 1, 1], [], []>} : vector<64x128xf32>, vector<128x128xf32>, vector<64x128xf32> -> vector<64x128xf32>
    %cst_70 = arith.constant dense<0.000000e+00> : vector<64x128xf32>
    %69 = tpu.matmul %68, %66, %cst_70 {dimension_numbers = #tpu.dot_dimension_numbers<[1], [0], [0], [1], [0, 0, 1, 1], [], []>} : vector<64x128xf32>, vector<128x128xf32>, vector<64x128xf32> -> vector<64x128xf32>
    %70 = vector.broadcast %67 : vector<1x128xf32> to vector<64x128xf32>
    %71 = arith.addf %69, %70 : vector<64x128xf32>
    %c0_71 = arith.constant 0 : index
    %c0_72 = arith.constant 0 : index
    %72 = vector.load %arg26[%c0_71, %c0_72] : memref<64x128xf32, #tpu.memory_space<vmem>>, vector<64x128xf32>
    tpu.vector_store %arg26[%c0_71, %c0_72], %71 {strides = array<i32>} : memref<64x128xf32, #tpu.memory_space<vmem>>, vector<64x128xf32>,
    return
  }
  func.func @transform_0(%arg0: i32) -> (i32, i32) {
    %c0_i32 = arith.constant 0 : i32
    %c0_i32_0 = arith.constant 0 : i32
    return %arg0, %c0_i32 : i32, i32
  }
  func.func @transform_1(%arg0: i32) -> (i32, i32) {
    %c0_i32 = arith.constant 0 : i32
    %c0_i32_0 = arith.constant 0 : i32
    %c0_i32_1 = arith.constant 0 : i32
    return %c0_i32, %c0_i32_0 : i32, i32
  }
  func.func @transform_2(%arg0: i32) -> (i32, i32) {
    %c0_i32 = arith.constant 0 : i32
    %c0_i32_0 = arith.constant 0 : i32
    %c0_i32_1 = arith.constant 0 : i32
    return %c0_i32, %c0_i32_0 : i32, i32
  }
  func.func @transform_3(%arg0: i32) -> (i32, i32) {
    %c0_i32 = arith.constant 0 : i32
    %c0_i32_0 = arith.constant 0 : i32
    %c0_i32_1 = arith.constant 0 : i32
    return %c0_i32, %c0_i32_0 : i32, i32
  }
  func.func @transform_4(%arg0: i32) -> (i32, i32) {
    %c0_i32 = arith.constant 0 : i32
    %c0_i32_0 = arith.constant 0 : i32
    %c0_i32_1 = arith.constant 0 : i32
    return %c0_i32, %c0_i32_0 : i32, i32
  }
  func.func @transform_5(%arg0: i32) -> (i32, i32) {
    %c0_i32 = arith.constant 0 : i32
    %c0_i32_0 = arith.constant 0 : i32
    %c0_i32_1 = arith.constant 0 : i32
    return %c0_i32, %c0_i32_0 : i32, i32
  }
  func.func @transform_6(%arg0: i32) -> (i32, i32) {
    %c0_i32 = arith.constant 0 : i32
    %c0_i32_0 = arith.constant 0 : i32
    %c0_i32_1 = arith.constant 0 : i32
    return %c0_i32, %c0_i32_0 : i32, i32
  }
  func.func @transform_7(%arg0: i32) -> (i32, i32) {
    %c0_i32 = arith.constant 0 : i32
    %c0_i32_0 = arith.constant 0 : i32
    %c0_i32_1 = arith.constant 0 : i32
    return %c0_i32, %c0_i32_0 : i32, i32
  }
  func.func @transform_8(%arg0: i32) -> (i32, i32) {
    %c0_i32 = arith.constant 0 : i32
    %c0_i32_0 = arith.constant 0 : i32
    %c0_i32_1 = arith.constant 0 : i32
    return %c0_i32, %c0_i32_0 : i32, i32
  }
  func.func @transform_9(%arg0: i32) -> (i32, i32) {
    %c0_i32 = arith.constant 0 : i32
    %c0_i32_0 = arith.constant 0 : i32
    %c0_i32_1 = arith.constant 0 : i32
    return %c0_i32, %c0_i32_0 : i32, i32
  }
  func.func @transform_10(%arg0: i32) -> (i32, i32) {
    %c0_i32 = arith.constant 0 : i32
    %c0_i32_0 = arith.constant 0 : i32
    %c0_i32_1 = arith.constant 0 : i32
    return %c0_i32, %c0_i32_0 : i32, i32
  }
  func.func @transform_11(%arg0: i32) -> (i32, i32) {
    %c0_i32 = arith.constant 0 : i32
    %c0_i32_0 = arith.constant 0 : i32
    %c0_i32_1 = arith.constant 0 : i32
    return %c0_i32, %c0_i32_0 : i32, i32
  }
  func.func @transform_12(%arg0: i32) -> (i32, i32) {
    %c0_i32 = arith.constant 0 : i32
    %c0_i32_0 = arith.constant 0 : i32
    %c0_i32_1 = arith.constant 0 : i32
    return %c0_i32, %c0_i32_0 : i32, i32
  }
  func.func @transform_13(%arg0: i32) -> (i32, i32) {
    %c0_i32 = arith.constant 0 : i32
    %c0_i32_0 = arith.constant 0 : i32
    %c0_i32_1 = arith.constant 0 : i32
    return %c0_i32, %c0_i32_0 : i32, i32
  }
  func.func @transform_14(%arg0: i32) -> (i32, i32) {
    %c0_i32 = arith.constant 0 : i32
    %c0_i32_0 = arith.constant 0 : i32
    %c0_i32_1 = arith.constant 0 : i32
    return %c0_i32, %c0_i32_0 : i32, i32
  }
  func.func @transform_15(%arg0: i32) -> (i32, i32) {
    %c0_i32 = arith.constant 0 : i32
    %c0_i32_0 = arith.constant 0 : i32
    %c0_i32_1 = arith.constant 0 : i32
    return %c0_i32, %c0_i32_0 : i32, i32
  }
  func.func @transform_16(%arg0: i32) -> (i32, i32) {
    %c0_i32 = arith.constant 0 : i32
    %c0_i32_0 = arith.constant 0 : i32
    %c0_i32_1 = arith.constant 0 : i32
    return %c0_i32, %c0_i32_0 : i32, i32
  }
  func.func @transform_17(%arg0: i32) -> (i32, i32) {
    %c0_i32 = arith.constant 0 : i32
    %c0_i32_0 = arith.constant 0 : i32
    %c0_i32_1 = arith.constant 0 : i32
    return %c0_i32, %c0_i32_0 : i32, i32
  }
  func.func @transform_18(%arg0: i32) -> (i32, i32) {
    %c0_i32 = arith.constant 0 : i32
    %c0_i32_0 = arith.constant 0 : i32
    %c0_i32_1 = arith.constant 0 : i32
    return %c0_i32, %c0_i32_0 : i32, i32
  }
  func.func @transform_19(%arg0: i32) -> (i32, i32) {
    %c0_i32 = arith.constant 0 : i32
    %c0_i32_0 = arith.constant 0 : i32
    %c0_i32_1 = arith.constant 0 : i32
    return %c0_i32, %c0_i32_0 : i32, i32
  }
  func.func @transform_20(%arg0: i32) -> (i32, i32) {
    %c0_i32 = arith.constant 0 : i32
    %c0_i32_0 = arith.constant 0 : i32
    %c0_i32_1 = arith.constant 0 : i32
    return %c0_i32, %c0_i32_0 : i32, i32
  }
  func.func @transform_21(%arg0: i32) -> (i32, i32) {
    %c0_i32 = arith.constant 0 : i32
    %c0_i32_0 = arith.constant 0 : i32
    %c0_i32_1 = arith.constant 0 : i32
    return %c0_i32, %c0_i32_0 : i32, i32
  }
  func.func @transform_22(%arg0: i32) -> (i32, i32) {
    %c0_i32 = arith.constant 0 : i32
    %c0_i32_0 = arith.constant 0 : i32
    %c0_i32_1 = arith.constant 0 : i32
    return %c0_i32, %c0_i32_0 : i32, i32
  }
  func.func @transform_23(%arg0: i32) -> (i32, i32) {
    %c0_i32 = arith.constant 0 : i32
    %c0_i32_0 = arith.constant 0 : i32
    %c0_i32_1 = arith.constant 0 : i32
    return %c0_i32, %c0_i32_0 : i32, i32
  }
  func.func @transform_24(%arg0: i32) -> (i32, i32) {
    %c0_i32 = arith.constant 0 : i32
    %c0_i32_0 = arith.constant 0 : i32
    %c0_i32_1 = arith.constant 0 : i32
    return %c0_i32, %c0_i32_0 : i32, i32
  }
  func.func @transform_25(%arg0: i32) -> (i32, i32) {
    %c0_i32 = arith.constant 0 : i32
    %c0_i32_0 = arith.constant 0 : i32
    return %arg0, %c0_i32 : i32, i32
  }
}

</mosaic_0001>

<llo_original>
// kernel: tpu_custom_call.1
$region0: #{tpu_custom_call.1}
  #allocation0 [shape = 'u32[]', space=smem, size = 0x4, offset = 0x4, fixed_abs, tag = 'smem constant byte address 0x4 - core index']
  #allocation1 [shape = 'u32[144,128]{1,0:T(1,128)}', space=vmem, size = 0x12000, scoped, tag = 'internal scratch']
  %s0 = inlined_call_operand.hbm [shape: f32[256,128], index: 0, kind: input, shape index: {}]
  %s1 = inlined_call_operand.hbm [shape: f32[128,128], index: 1, kind: input, shape index: {}]
  %s2 = inlined_call_operand.hbm [shape: f32[128,128], index: 2, kind: input, shape index: {}]
  %s3 = inlined_call_operand.vmem [shape: f32[1,128], index: 3, kind: input, shape index: {}]
  %s4 = inlined_call_operand.hbm [shape: f32[128,128], index: 4, kind: input, shape index: {}]
  %s5 = inlined_call_operand.hbm [shape: f32[128,128], index: 5, kind: input, shape index: {}]
  %s6 = inlined_call_operand.vmem [shape: f32[1,128], index: 6, kind: input, shape index: {}]
  %s7 = inlined_call_operand.hbm [shape: f32[128,128], index: 7, kind: input, shape index: {}]
  %s8 = inlined_call_operand.hbm [shape: f32[128,128], index: 8, kind: input, shape index: {}]
  %s9 = inlined_call_operand.vmem [shape: f32[1,128], index: 9, kind: input, shape index: {}]
  %s10 = inlined_call_operand.hbm [shape: f32[128,128], index: 10, kind: input, shape index: {}]
  %s11 = inlined_call_operand.hbm [shape: f32[128,128], index: 11, kind: input, shape index: {}]
  %s12 = inlined_call_operand.vmem [shape: f32[1,128], index: 12, kind: input, shape index: {}]
  %s13 = inlined_call_operand.hbm [shape: f32[256,128], index: 13, kind: input, shape index: {}]
  %s14 = inlined_call_operand.hbm [shape: f32[128,128], index: 14, kind: input, shape index: {}]
  %s15 = inlined_call_operand.vmem [shape: f32[1,128], index: 15, kind: input, shape index: {}]
  %s16 = inlined_call_operand.hbm [shape: f32[128,128], index: 16, kind: input, shape index: {}]
  %s17 = inlined_call_operand.hbm [shape: f32[128,128], index: 17, kind: input, shape index: {}]
  %s18 = inlined_call_operand.vmem [shape: f32[1,128], index: 18, kind: input, shape index: {}]
  %s19 = inlined_call_operand.hbm [shape: f32[128,128], index: 19, kind: input, shape index: {}]
  %s20 = inlined_call_operand.hbm [shape: f32[128,128], index: 20, kind: input, shape index: {}]
  %s21 = inlined_call_operand.vmem [shape: f32[1,128], index: 21, kind: input, shape index: {}]
  %s22 = inlined_call_operand.hbm [shape: f32[128,128], index: 22, kind: input, shape index: {}]
  %s23 = inlined_call_operand.hbm [shape: f32[128,128], index: 23, kind: input, shape index: {}]
  %s24 = inlined_call_operand.vmem [shape: f32[1,128], index: 24, kind: input, shape index: {}]
  %s25 = inlined_call_operand.hbm [shape: f32[256,128], index: 25, kind: output, shape index: {}]
  %s26 = sld [smem:[#allocation0]]
  $region201: #{tpu_custom_call.1} parent=0
    _
  %s28 = ssub.s32 1, %s26
  %s29 = scalar_select 0, %s28, %s26
  $region1: #{tpu_custom_call.1} parent=0
    #allocation2 [shape = 'u8[65536]{0}', space=vmem, size = 0x10000, scoped, tag = 'input window, operand 0']
    #allocation3 [shape = 's32[2]{0}', space=sflag, size = 0x8, scoped, tag = 'scoped memory for tpu_custom_call.1']
    #allocation4 [shape = 's32[2]{0}', space=sflag, size = 0x8, scoped, tag = 'scoped memory for tpu_custom_call.1']
    #allocation5 [shape = 'u8[65536]{0}', space=vmem, size = 0x10000, scoped, tag = 'input window, operand 1, single buffered']
    #allocation6 [shape = 's32[1]{0}', space=sflag, size = 0x4, scoped, tag = 'scoped memory for tpu_custom_call.1']
    #allocation7 [shape = 'u8[65536]{0}', space=vmem, size = 0x10000, scoped, tag = 'input window, operand 2, single buffered']
    #allocation8 [shape = 'u8[65536]{0}', space=vmem, size = 0x10000, scoped, tag = 'input window, operand 4, single buffered']
    #allocation9 [shape = 's32[1]{0}', space=sflag, size = 0x4, scoped, tag = 'scoped memory for tpu_custom_call.1']
    #allocation10 [shape = 'u8[65536]{0}', space=vmem, size = 0x10000, scoped, tag = 'input window, operand 5, single buffered']
    #allocation11 [shape = 'u8[65536]{0}', space=vmem, size = 0x10000, scoped, tag = 'input window, operand 7, single buffered']
    #allocation12 [shape = 's32[1]{0}', space=sflag, size = 0x4, scoped, tag = 'scoped memory for tpu_custom_call.1']
    #allocation13 [shape = 'u8[65536]{0}', space=vmem, size = 0x10000, scoped, tag = 'input window, operand 8, single buffered']
    #allocation14 [shape = 'u8[65536]{0}', space=vmem, size = 0x10000, scoped, tag = 'input window, operand 10, single buffered']
    #allocation15 [shape = 's32[1]{0}', space=sflag, size = 0x4, scoped, tag = 'scoped memory for tpu_custom_call.1']
    #allocation16 [shape = 'u8[65536]{0}', space=vmem, size = 0x10000, scoped, tag = 'input window, operand 11, single buffered']
    #allocation17 [shape = 'u8[131072]{0}', space=vmem, size = 0x20000, scoped, tag = 'input window, operand 13, single buffered']
    #allocation18 [shape = 's32[1]{0}', space=sflag, size = 0x4, scoped, tag = 'scoped memory for tpu_custom_call.1']
    #allocation19 [shape = 'u8[65536]{0}', space=vmem, size = 0x10000, scoped, tag = 'input window, operand 14, single buffered']
    #allocation20 [shape = 'u8[65536]{0}', space=vmem, size = 0x10000, scoped, tag = 'input window, operand 16, single buffered']
    #allocation21 [shape = 's32[1]{0}', space=sflag, size = 0x4, scoped, tag = 'scoped memory for tpu_custom_call.1']
    #allocation22 [shape = 'u8[65536]{0}', space=vmem, size = 0x10000, scoped, tag = 'input window, operand 17, single buffered']
    #allocation23 [shape = 'u8[65536]{0}', space=vmem, size = 0x10000, scoped, tag = 'input window, operand 19, single buffered']
    #allocation24 [shape = 's32[1]{0}', space=sflag, size = 0x4, scoped, tag = 'scoped memory for tpu_custom_call.1']
    #allocation25 [shape = 'u8[65536]{0}', space=vmem, size = 0x10000, scoped, tag = 'input window, operand 20, single buffered']
    #allocation26 [shape = 'u8[65536]{0}', space=vmem, size = 0x10000, scoped, tag = 'input window, operand 22, single buffered']
    #allocation27 [shape = 's32[1]{0}', space=sflag, size = 0x4, scoped, tag = 'scoped memory for tpu_custom_call.1']
    #allocation28 [shape = 'u8[65536]{0}', space=vmem, size = 0x10000, scoped, tag = 'input window, operand 23, single buffered']
    #allocation29 [shape = 'u8[65536]{0}', space=vmem, size = 0x10000, scoped, tag = 'output window, operand 0']
    %30 = vsyncpa [#allocation3], 0
    %s31 = scalar_lea.sflag [#allocation3], 1
    %32 = vsyncpa %s31, 0
    %33 = vsyncpa [#allocation6], 0
    %34 = vsyncpa [#allocation9], 0
    %35 = vsyncpa [#allocation12], 0
    %36 = vsyncpa [#allocation15], 0
    %37 = vsyncpa [#allocation18], 0
    %38 = vsyncpa [#allocation21], 0
    %39 = vsyncpa [#allocation24], 0
    %40 = vsyncpa [#allocation27], 0
    %41 = vsyncpa [#allocation4], 0
    %s42 = scalar_lea.sflag [#allocation4], 1
    %43 = vsyncpa %s42, 0
    loop: start=0, step=1, limit=6
    $region2: #{tpu_custom_call.1} parent=1 // loop_pre_header
      _
    $region3: #{tpu_custom_call.1} parent=1 // loop_header
      %s45 = sphi 0, %s49
      %p46 = scmp.ge.s32.totalorder %s45, 6
      %s55 = sphi 0, %s57
      %s58 = sphi 0, %s55
      %s59 = sphi 0, %s58
      %s75 = sphi 0, %s59
      %s79 = sphi 0, %s79
      %s81 = sphi 0, %s79
      %s82 = sphi 0, %s81
      %s96 = sphi 0, %s82
      %s100 = sphi 0, %s100
      %s102 = sphi 0, %s100
      %s103 = sphi 0, %s102
      %s117 = sphi 0, %s103
      %s121 = sphi 0, %s121
      %s123 = sphi 0, %s121
      %s124 = sphi 0, %s123
      %s138 = sphi 0, %s124
      %s142 = sphi 0, %s142
      %s144 = sphi 0, %s142
      %s145 = sphi 0, %s144
      %s159 = sphi 0, %s145
      %s163 = sphi 0, %s163
      %s165 = sphi 0, %s163
      %s166 = sphi 0, %s165
      %s180 = sphi 0, %s166
      %s184 = sphi 0, %s184
      %s186 = sphi 0, %s184
      %s187 = sphi 0, %s186
      %s201 = sphi 0, %s187
      %s205 = sphi 0, %s205
      %s207 = sphi 0, %s205
      %s208 = sphi 0, %s207
      %s222 = sphi 0, %s208
      %s226 = sphi 0, %s226
      %s228 = sphi 0, %s226
      %s229 = sphi 0, %s228
      %s243 = sphi 0, %s229
      %s247 = sphi 0, %s247
      %s249 = sphi 0, %s247
      %s250 = sphi 0, %s249
      %s264 = sphi 0, %s250
      %s268 = sphi 0, %s268
      %s270 = sphi 0, %s268
      %s271 = sphi 0, %s270
      %s285 = sphi 0, %s271
      %s289 = sphi 0, %s289
      %s291 = sphi 0, %s289
      %s292 = sphi 0, %s291
      %s306 = sphi 0, %s292
      %s310 = sphi 0, %s310
      %s312 = sphi 0, %s310
      %s313 = sphi 0, %s312
      %s327 = sphi 0, %s313
      %s331 = sphi 0, %s331
      %s333 = sphi 0, %s331
      %s334 = sphi 0, %s333
      %s348 = sphi 0, %s334
      %s352 = sphi 0, %s352
      %s354 = sphi 0, %s352
      %s355 = sphi 0, %s354
      %s369 = sphi 0, %s355
      %s373 = sphi 0, %s373
      %s375 = sphi 0, %s373
      %s376 = sphi 0, %s375
      %s390 = sphi 0, %s376
      %s394 = sphi 0, %s394
      %s396 = sphi 0, %s394
      %s397 = sphi 0, %s396
      %s411 = sphi 0, %s397
      %s415 = sphi 0, %s415
      %s417 = sphi 0, %s415
      %s418 = sphi 0, %s417
      %s432 = sphi 0, %s418
      %s436 = sphi 0, %s436
      %s438 = sphi 0, %s436
      %s439 = sphi 0, %s438
      %s453 = sphi 0, %s439
      %s457 = sphi 0, %s457
      %s459 = sphi 0, %s457
      %s460 = sphi 0, %s459
      %s474 = sphi 0, %s460
      %s478 = sphi 0, %s478
      %s480 = sphi 0, %s478
      %s481 = sphi 0, %s480
      %s495 = sphi 0, %s481
      %s499 = sphi 0, %s499
      %s501 = sphi 0, %s499
      %s502 = sphi 0, %s501
      %s516 = sphi 0, %s502
      %s520 = sphi 0, %s520
      %s522 = sphi 0, %s520
      %s523 = sphi 0, %s522
      %s537 = sphi 0, %s523
      %s541 = sphi 0, %s541
      %s543 = sphi 0, %s541
      %s544 = sphi 0, %s543
      %s558 = sphi 0, %s544
      %s562 = sphi 0, %s562
      %s564 = sphi 0, %s562
      %s565 = sphi 0, %s564
      %s579 = sphi 0, %s565
      %s585 = sphi 0, %s587
      %s588 = sphi 0, %s585
      %s589 = sphi 0, %s588
      %s605 = sphi 0, %s589
    $region4: #{tpu_custom_call.1} parent=1 // loop_header_branch
      %48 = sbr.rel (%p46) target = $region8
    $region5: #{tpu_custom_call.1} parent=1 // loop_body
      %s50 = ssub.s32 %s45, 1
      %s51 = ssub.s32 %s45, 2
      %s52 = sadd.s32 %s45, 1
      %s53 = ssub.s32 %s45, %s52
      %p54 = scmp.eq.s32.totalorder %s53, 0
      %s56 = sadd.s32 %s55, 1
      %s57 = scalar_select %p54, %s55, %s56
      %p60 = pneg %p54
      %p61 = scmp.eq.s32.totalorder %s45, 3
      %p62 = por %p60, %p61
      %p63 = scmp.ne.s32.totalorder %s55, %s58
      %p64 = scmp.eq.s32.totalorder %s45, 0
      %p65 = por %p63, %p64
      %p66 = scmp.ne.s32.totalorder %s55, %s58
      %p67 = scmp.eq.s32.totalorder %s50, 3
      %p68 = por %p66, %p67
      %p69 = scmp.ne.s32.totalorder %s58, %s59
      %p70 = scmp.eq.s32.totalorder %s50, 0
      %p71 = por %p69, %p70
      %p72 = scmp.ne.s32.totalorder %s58, %s59
      %p73 = scmp.eq.s32.totalorder %s51, 3
      %p74 = por %p72, %p73
      %p76 = scmp.ne.s32.totalorder %s59, %s75
      %p77 = scmp.eq.s32.totalorder %s51, 0
      %p78 = por %p76, %p77
      %s80 = sadd.s32 %s79, 1
      %p83 = scmp.eq.s32.totalorder %s45, 3
      %p84 = scmp.ne.s32.totalorder %s79, %s81
      %p85 = scmp.eq.s32.totalorder %s45, 0
      %p86 = por %p84, %p85
      %p87 = scmp.ne.s32.totalorder %s79, %s81
      %p88 = scmp.eq.s32.totalorder %s50, 3
      %p89 = por %p87, %p88
      %p90 = scmp.ne.s32.totalorder %s81, %s82
      %p91 = scmp.eq.s32.totalorder %s50, 0
      %p92 = por %p90, %p91
      %p93 = scmp.ne.s32.totalorder %s81, %s82
      %p94 = scmp.eq.s32.totalorder %s51, 3
      %p95 = por %p93, %p94
      %p97 = scmp.ne.s32.totalorder %s82, %s96
      %p98 = scmp.eq.s32.totalorder %s51, 0
      %p99 = por %p97, %p98
      %s101 = sadd.s32 %s100, 1
      %p104 = scmp.eq.s32.totalorder %s45, 3
      %p105 = scmp.ne.s32.totalorder %s100, %s102
      %p106 = scmp.eq.s32.totalorder %s45, 0
      %p107 = por %p105, %p106
      %p108 = scmp.ne.s32.totalorder %s100, %s102
      %p109 = scmp.eq.s32.totalorder %s50, 3
      %p110 = por %p108, %p109
      %p111 = scmp.ne.s32.totalorder %s102, %s103
      %p112 = scmp.eq.s32.totalorder %s50, 0
      %p113 = por %p111, %p112
      %p114 = scmp.ne.s32.totalorder %s102, %s103
      %p115 = scmp.eq.s32.totalorder %s51, 3
      %p116 = por %p114, %p115
      %p118 = scmp.ne.s32.totalorder %s103, %s117
      %p119 = scmp.eq.s32.totalorder %s51, 0
      %p120 = por %p118, %p119
      %s122 = sadd.s32 %s121, 1
      %p125 = scmp.eq.s32.totalorder %s45, 3
      %p126 = scmp.ne.s32.totalorder %s121, %s123
      %p127 = scmp.eq.s32.totalorder %s45, 0
      %p128 = por %p126, %p127
      %p129 = scmp.ne.s32.totalorder %s121, %s123
      %p130 = scmp.eq.s32.totalorder %s50, 3
      %p131 = por %p129, %p130
      %p132 = scmp.ne.s32.totalorder %s123, %s124
      %p133 = scmp.eq.s32.totalorder %s50, 0
      %p134 = por %p132, %p133
      %p135 = scmp.ne.s32.totalorder %s123, %s124
      %p136 = scmp.eq.s32.totalorder %s51, 3
      %p137 = por %p135, %p136
      %p139 = scmp.ne.s32.totalorder %s124, %s138
      %p140 = scmp.eq.s32.totalorder %s51, 0
      %p141 = por %p139, %p140
      %s143 = sadd.s32 %s142, 1
      %p146 = scmp.eq.s32.totalorder %s45, 3
      %p147 = scmp.ne.s32.totalorder %s142, %s144
      %p148 = scmp.eq.s32.totalorder %s45, 0
      %p149 = por %p147, %p148
      %p150 = scmp.ne.s32.totalorder %s142, %s144
      %p151 = scmp.eq.s32.totalorder %s50, 3
      %p152 = por %p150, %p151
      %p153 = scmp.ne.s32.totalorder %s144, %s145
      %p154 = scmp.eq.s32.totalorder %s50, 0
      %p155 = por %p153, %p154
      %p156 = scmp.ne.s32.totalorder %s144, %s145
      %p157 = scmp.eq.s32.totalorder %s51, 3
      %p158 = por %p156, %p157
      %p160 = scmp.ne.s32.totalorder %s145, %s159
      %p161 = scmp.eq.s32.totalorder %s51, 0
      %p162 = por %p160, %p161
      %s164 = sadd.s32 %s163, 1
      %p167 = scmp.eq.s32.totalorder %s45, 3
      %p168 = scmp.ne.s32.totalorder %s163, %s165
      %p169 = scmp.eq.s32.totalorder %s45, 0
      %p170 = por %p168, %p169
      %p171 = scmp.ne.s32.totalorder %s163, %s165
      %p172 = scmp.eq.s32.totalorder %s50, 3
      %p173 = por %p171, %p172
      %p174 = scmp.ne.s32.totalorder %s165, %s166
      %p175 = scmp.eq.s32.totalorder %s50, 0
      %p176 = por %p174, %p175
      %p177 = scmp.ne.s32.totalorder %s165, %s166
      %p178 = scmp.eq.s32.totalorder %s51, 3
      %p179 = por %p177, %p178
      %p181 = scmp.ne.s32.totalorder %s166, %s180
      %p182 = scmp.eq.s32.totalorder %s51, 0
      %p183 = por %p181, %p182
      %s185 = sadd.s32 %s184, 1
      %p188 = scmp.eq.s32.totalorder %s45, 3
      %p189 = scmp.ne.s32.totalorder %s184, %s186
      %p190 = scmp.eq.s32.totalorder %s45, 0
      %p191 = por %p189, %p190
      %p192 = scmp.ne.s32.totalorder %s184, %s186
      %p193 = scmp.eq.s32.totalorder %s50, 3
      %p194 = por %p192, %p193
      %p195 = scmp.ne.s32.totalorder %s186, %s187
      %p196 = scmp.eq.s32.totalorder %s50, 0
      %p197 = por %p195, %p196
      %p198 = scmp.ne.s32.totalorder %s186, %s187
      %p199 = scmp.eq.s32.totalorder %s51, 3
      %p200 = por %p198, %p199
      %p202 = scmp.ne.s32.totalorder %s187, %s201
      %p203 = scmp.eq.s32.totalorder %s51, 0
      %p204 = por %p202, %p203
      %s206 = sadd.s32 %s205, 1
      %p209 = scmp.eq.s32.totalorder %s45, 3
      %p210 = scmp.ne.s32.totalorder %s205, %s207
      %p211 = scmp.eq.s32.totalorder %s45, 0
      %p212 = por %p210, %p211
      %p213 = scmp.ne.s32.totalorder %s205, %s207
      %p214 = scmp.eq.s32.totalorder %s50, 3
      %p215 = por %p213, %p214
      %p216 = scmp.ne.s32.totalorder %s207, %s208
      %p217 = scmp.eq.s32.totalorder %s50, 0
      %p218 = por %p216, %p217
      %p219 = scmp.ne.s32.totalorder %s207, %s208
      %p220 = scmp.eq.s32.totalorder %s51, 3
      %p221 = por %p219, %p220
      %p223 = scmp.ne.s32.totalorder %s208, %s222
      %p224 = scmp.eq.s32.totalorder %s51, 0
      %p225 = por %p223, %p224
      %s227 = sadd.s32 %s226, 1
      %p230 = scmp.eq.s32.totalorder %s45, 3
      %p231 = scmp.ne.s32.totalorder %s226, %s228
      %p232 = scmp.eq.s32.totalorder %s45, 0
      %p233 = por %p231, %p232
      %p234 = scmp.ne.s32.totalorder %s226, %s228
      %p235 = scmp.eq.s32.totalorder %s50, 3
      %p236 = por %p234, %p235
      %p237 = scmp.ne.s32.totalorder %s228, %s229
      %p238 = scmp.eq.s32.totalorder %s50, 0
      %p239 = por %p237, %p238
      %p240 = scmp.ne.s32.totalorder %s228, %s229
      %p241 = scmp.eq.s32.totalorder %s51, 3
      %p242 = por %p240, %p241
      %p244 = scmp.ne.s32.totalorder %s229, %s243
      %p245 = scmp.eq.s32.totalorder %s51, 0
      %p246 = por %p244, %p245
      %s248 = sadd.s32 %s247, 1
      %p251 = scmp.eq.s32.totalorder %s45, 3
      %p252 = scmp.ne.s32.totalorder %s247, %s249
      %p253 = scmp.eq.s32.totalorder %s45, 0
      %p254 = por %p252, %p253
      %p255 = scmp.ne.s32.totalorder %s247, %s249
      %p256 = scmp.eq.s32.totalorder %s50, 3
      %p257 = por %p255, %p256
      %p258 = scmp.ne.s32.totalorder %s249, %s250
      %p259 = scmp.eq.s32.totalorder %s50, 0
      %p260 = por %p258, %p259
      %p261 = scmp.ne.s32.totalorder %s249, %s250
      %p262 = scmp.eq.s32.totalorder %s51, 3
      %p263 = por %p261, %p262
      %p265 = scmp.ne.s32.totalorder %s250, %s264
      %p266 = scmp.eq.s32.totalorder %s51, 0
      %p267 = por %p265, %p266
      %s269 = sadd.s32 %s268, 1
      %p272 = scmp.eq.s32.totalorder %s45, 3
      %p273 = scmp.ne.s32.totalorder %s268, %s270
      %p274 = scmp.eq.s32.totalorder %s45, 0
      %p275 = por %p273, %p274
      %p276 = scmp.ne.s32.totalorder %s268, %s270
      %p277 = scmp.eq.s32.totalorder %s50, 3
      %p278 = por %p276, %p277
      %p279 = scmp.ne.s32.totalorder %s270, %s271
      %p280 = scmp.eq.s32.totalorder %s50, 0
      %p281 = por %p279, %p280
      %p282 = scmp.ne.s32.totalorder %s270, %s271
      %p283 = scmp.eq.s32.totalorder %s51, 3
      %p284 = por %p282, %p283
      %p286 = scmp.ne.s32.totalorder %s271, %s285
      %p287 = scmp.eq.s32.totalorder %s51, 0
      %p288 = por %p286, %p287
      %s290 = sadd.s32 %s289, 1
      %p293 = scmp.eq.s32.totalorder %s45, 3
      %p294 = scmp.ne.s32.totalorder %s289, %s291
      %p295 = scmp.eq.s32.totalorder %s45, 0
      %p296 = por %p294, %p295
      %p297 = scmp.ne.s32.totalorder %s289, %s291
      %p298 = scmp.eq.s32.totalorder %s50, 3
      %p299 = por %p297, %p298
      %p300 = scmp.ne.s32.totalorder %s291, %s292
      %p301 = scmp.eq.s32.totalorder %s50, 0
      %p302 = por %p300, %p301
      %p303 = scmp.ne.s32.totalorder %s291, %s292
      %p304 = scmp.eq.s32.totalorder %s51, 3
      %p305 = por %p303, %p304
      %p307 = scmp.ne.s32.totalorder %s292, %s306
      %p308 = scmp.eq.s32.totalorder %s51, 0
      %p309 = por %p307, %p308
      %s311 = sadd.s32 %s310, 1
      %p314 = scmp.eq.s32.totalorder %s45, 3
      %p315 = scmp.ne.s32.totalorder %s310, %s312
      %p316 = scmp.eq.s32.totalorder %s45, 0
      %p317 = por %p315, %p316
      %p318 = scmp.ne.s32.totalorder %s310, %s312
      %p319 = scmp.eq.s32.totalorder %s50, 3
      %p320 = por %p318, %p319
      %p321 = scmp.ne.s32.totalorder %s312, %s313
      %p322 = scmp.eq.s32.totalorder %s50, 0
      %p323 = por %p321, %p322
      %p324 = scmp.ne.s32.totalorder %s312, %s313
      %p325 = scmp.eq.s32.totalorder %s51, 3
      %p326 = por %p324, %p325
      %p328 = scmp.ne.s32.totalorder %s313, %s327
      %p329 = scmp.eq.s32.totalorder %s51, 0
      %p330 = por %p328, %p329
      %s332 = sadd.s32 %s331, 1
      %p335 = scmp.eq.s32.totalorder %s45, 3
      %p336 = scmp.ne.s32.totalorder %s331, %s333
      %p337 = scmp.eq.s32.totalorder %s45, 0
      %p338 = por %p336, %p337
      %p339 = scmp.ne.s32.totalorder %s331, %s333
      %p340 = scmp.eq.s32.totalorder %s50, 3
      %p341 = por %p339, %p340
      %p342 = scmp.ne.s32.totalorder %s333, %s334
      %p343 = scmp.eq.s32.totalorder %s50, 0
      %p344 = por %p342, %p343
      %p345 = scmp.ne.s32.totalorder %s333, %s334
      %p346 = scmp.eq.s32.totalorder %s51, 3
      %p347 = por %p345, %p346
      %p349 = scmp.ne.s32.totalorder %s334, %s348
      %p350 = scmp.eq.s32.totalorder %s51, 0
      %p351 = por %p349, %p350
      %s353 = sadd.s32 %s352, 1
      %p356 = scmp.eq.s32.totalorder %s45, 3
      %p357 = scmp.ne.s32.totalorder %s352, %s354
      %p358 = scmp.eq.s32.totalorder %s45, 0
      %p359 = por %p357, %p358
      %p360 = scmp.ne.s32.totalorder %s352, %s354
      %p361 = scmp.eq.s32.totalorder %s50, 3
      %p362 = por %p360, %p361
      %p363 = scmp.ne.s32.totalorder %s354, %s355
      %p364 = scmp.eq.s32.totalorder %s50, 0
      %p365 = por %p363, %p364
      %p366 = scmp.ne.s32.totalorder %s354, %s355
      %p367 = scmp.eq.s32.totalorder %s51, 3
      %p368 = por %p366, %p367
      %p370 = scmp.ne.s32.totalorder %s355, %s369
      %p371 = scmp.eq.s32.totalorder %s51, 0
      %p372 = por %p370, %p371
      %s374 = sadd.s32 %s373, 1
      %p377 = scmp.eq.s32.totalorder %s45, 3
      %p378 = scmp.ne.s32.totalorder %s373, %s375
      %p379 = scmp.eq.s32.totalorder %s45, 0
      %p380 = por %p378, %p379
      %p381 = scmp.ne.s32.totalorder %s373, %s375
      %p382 = scmp.eq.s32.totalorder %s50, 3
      %p383 = por %p381, %p382
      %p384 = scmp.ne.s32.totalorder %s375, %s376
      %p385 = scmp.eq.s32.totalorder %s50, 0
      %p386 = por %p384, %p385
      %p387 = scmp.ne.s32.totalorder %s375, %s376
      %p388 = scmp.eq.s32.totalorder %s51, 3
      %p389 = por %p387, %p388
      %p391 = scmp.ne.s32.totalorder %s376, %s390
      %p392 = scmp.eq.s32.totalorder %s51, 0
      %p393 = por %p391, %p392
      %s395 = sadd.s32 %s394, 1
      %p398 = scmp.eq.s32.totalorder %s45, 3
      %p399 = scmp.ne.s32.totalorder %s394, %s396
      %p400 = scmp.eq.s32.totalorder %s45, 0
      %p401 = por %p399, %p400
      %p402 = scmp.ne.s32.totalorder %s394, %s396
      %p403 = scmp.eq.s32.totalorder %s50, 3
      %p404 = por %p402, %p403
      %p405 = scmp.ne.s32.totalorder %s396, %s397
      %p406 = scmp.eq.s32.totalorder %s50, 0
      %p407 = por %p405, %p406
      %p408 = scmp.ne.s32.totalorder %s396, %s397
      %p409 = scmp.eq.s32.totalorder %s51, 3
      %p410 = por %p408, %p409
      %p412 = scmp.ne.s32.totalorder %s397, %s411
      %p413 = scmp.eq.s32.totalorder %s51, 0
      %p414 = por %p412, %p413
      %s416 = sadd.s32 %s415, 1
      %p419 = scmp.eq.s32.totalorder %s45, 3
      %p420 = scmp.ne.s32.totalorder %s415, %s417
      %p421 = scmp.eq.s32.totalorder %s45, 0
      %p422 = por %p420, %p421
      %p423 = scmp.ne.s32.totalorder %s415, %s417
      %p424 = scmp.eq.s32.totalorder %s50, 3
      %p425 = por %p423, %p424
      %p426 = scmp.ne.s32.totalorder %s417, %s418
      %p427 = scmp.eq.s32.totalorder %s50, 0
      %p428 = por %p426, %p427
      %p429 = scmp.ne.s32.totalorder %s417, %s418
      %p430 = scmp.eq.s32.totalorder %s51, 3
      %p431 = por %p429, %p430
      %p433 = scmp.ne.s32.totalorder %s418, %s432
      %p434 = scmp.eq.s32.totalorder %s51, 0
      %p435 = por %p433, %p434
      %s437 = sadd.s32 %s436, 1
      %p440 = scmp.eq.s32.totalorder %s45, 3
      %p441 = scmp.ne.s32.totalorder %s436, %s438
      %p442 = scmp.eq.s32.totalorder %s45, 0
      %p443 = por %p441, %p442
      %p444 = scmp.ne.s32.totalorder %s436, %s438
      %p445 = scmp.eq.s32.totalorder %s50, 3
      %p446 = por %p444, %p445
      %p447 = scmp.ne.s32.totalorder %s438, %s439
      %p448 = scmp.eq.s32.totalorder %s50, 0
      %p449 = por %p447, %p448
      %p450 = scmp.ne.s32.totalorder %s438, %s439
      %p451 = scmp.eq.s32.totalorder %s51, 3
      %p452 = por %p450, %p451
      %p454 = scmp.ne.s32.totalorder %s439, %s453
      %p455 = scmp.eq.s32.totalorder %s51, 0
      %p456 = por %p454, %p455
      %s458 = sadd.s32 %s457, 1
      %p461 = scmp.eq.s32.totalorder %s45, 3
      %p462 = scmp.ne.s32.totalorder %s457, %s459
      %p463 = scmp.eq.s32.totalorder %s45, 0
      %p464 = por %p462, %p463
      %p465 = scmp.ne.s32.totalorder %s457, %s459
      %p466 = scmp.eq.s32.totalorder %s50, 3
      %p467 = por %p465, %p466
      %p468 = scmp.ne.s32.totalorder %s459, %s460
      %p469 = scmp.eq.s32.totalorder %s50, 0
      %p470 = por %p468, %p469
      %p471 = scmp.ne.s32.totalorder %s459, %s460
      %p472 = scmp.eq.s32.totalorder %s51, 3
      %p473 = por %p471, %p472
      %p475 = scmp.ne.s32.totalorder %s460, %s474
      %p476 = scmp.eq.s32.totalorder %s51, 0
      %p477 = por %p475, %p476
      %s479 = sadd.s32 %s478, 1
      %p482 = scmp.eq.s32.totalorder %s45, 3
      %p483 = scmp.ne.s32.totalorder %s478, %s480
      %p484 = scmp.eq.s32.totalorder %s45, 0
      %p485 = por %p483, %p484
      %p486 = scmp.ne.s32.totalorder %s478, %s480
      %p487 = scmp.eq.s32.totalorder %s50, 3
      %p488 = por %p486, %p487
      %p489 = scmp.ne.s32.totalorder %s480, %s481
      %p490 = scmp.eq.s32.totalorder %s50, 0
      %p491 = por %p489, %p490
      %p492 = scmp.ne.s32.totalorder %s480, %s481
      %p493 = scmp.eq.s32.totalorder %s51, 3
      %p494 = por %p492, %p493
      %p496 = scmp.ne.s32.totalorder %s481, %s495
      %p497 = scmp.eq.s32.totalorder %s51, 0
      %p498 = por %p496, %p497
      %s500 = sadd.s32 %s499, 1
      %p503 = scmp.eq.s32.totalorder %s45, 3
      %p504 = scmp.ne.s32.totalorder %s499, %s501
      %p505 = scmp.eq.s32.totalorder %s45, 0
      %p506 = por %p504, %p505
      %p507 = scmp.ne.s32.totalorder %s499, %s501
      %p508 = scmp.eq.s32.totalorder %s50, 3
      %p509 = por %p507, %p508
      %p510 = scmp.ne.s32.totalorder %s501, %s502
      %p511 = scmp.eq.s32.totalorder %s50, 0
      %p512 = por %p510, %p511
      %p513 = scmp.ne.s32.totalorder %s501, %s502
      %p514 = scmp.eq.s32.totalorder %s51, 3
      %p515 = por %p513, %p514
      %p517 = scmp.ne.s32.totalorder %s502, %s516
      %p518 = scmp.eq.s32.totalorder %s51, 0
      %p519 = por %p517, %p518
      %s521 = sadd.s32 %s520, 1
      %p524 = scmp.eq.s32.totalorder %s45, 3
      %p525 = scmp.ne.s32.totalorder %s520, %s522
      %p526 = scmp.eq.s32.totalorder %s45, 0
      %p527 = por %p525, %p526
      %p528 = scmp.ne.s32.totalorder %s520, %s522
      %p529 = scmp.eq.s32.totalorder %s50, 3
      %p530 = por %p528, %p529
      %p531 = scmp.ne.s32.totalorder %s522, %s523
      %p532 = scmp.eq.s32.totalorder %s50, 0
      %p533 = por %p531, %p532
      %p534 = scmp.ne.s32.totalorder %s522, %s523
      %p535 = scmp.eq.s32.totalorder %s51, 3
      %p536 = por %p534, %p535
      %p538 = scmp.ne.s32.totalorder %s523, %s537
      %p539 = scmp.eq.s32.totalorder %s51, 0
      %p540 = por %p538, %p539
      %s542 = sadd.s32 %s541, 1
      %p545 = scmp.eq.s32.totalorder %s45, 3
      %p546 = scmp.ne.s32.totalorder %s541, %s543
      %p547 = scmp.eq.s32.totalorder %s45, 0
      %p548 = por %p546, %p547
      %p549 = scmp.ne.s32.totalorder %s541, %s543
      %p550 = scmp.eq.s32.totalorder %s50, 3
      %p551 = por %p549, %p550
      %p552 = scmp.ne.s32.totalorder %s543, %s544
      %p553 = scmp.eq.s32.totalorder %s50, 0
      %p554 = por %p552, %p553
      %p555 = scmp.ne.s32.totalorder %s543, %s544
      %p556 = scmp.eq.s32.totalorder %s51, 3
      %p557 = por %p555, %p556
      %p559 = scmp.ne.s32.totalorder %s544, %s558
      %p560 = scmp.eq.s32.totalorder %s51, 0
      %p561 = por %p559, %p560
      %s563 = sadd.s32 %s562, 1
      %p566 = scmp.eq.s32.totalorder %s45, 3
      %p567 = scmp.ne.s32.totalorder %s562, %s564
      %p568 = scmp.eq.s32.totalorder %s45, 0
      %p569 = por %p567, %p568
      %p570 = scmp.ne.s32.totalorder %s562, %s564
      %p571 = scmp.eq.s32.totalorder %s50, 3
      %p572 = por %p570, %p571
      %p573 = scmp.ne.s32.totalorder %s564, %s565
      %p574 = scmp.eq.s32.totalorder %s50, 0
      %p575 = por %p573, %p574
      %p576 = scmp.ne.s32.totalorder %s564, %s565
      %p577 = scmp.eq.s32.totalorder %s51, 3
      %p578 = por %p576, %p577
      %p580 = scmp.ne.s32.totalorder %s565, %s579
      %p581 = scmp.eq.s32.totalorder %s51, 0
      %p582 = por %p580, %p581
      %s583 = ssub.s32 %s45, %s52
      %p584 = scmp.eq.s32.totalorder %s583, 0
      %s586 = sadd.s32 %s585, 1
      %s587 = scalar_select %p584, %s585, %s586
      %p590 = pneg %p584
      %p591 = scmp.eq.s32.totalorder %s45, 3
      %p592 = por %p590, %p591
      %p593 = scmp.ne.s32.totalorder %s585, %s588
      %p594 = scmp.eq.s32.totalorder %s45, 0
      %p595 = por %p593, %p594
      %p596 = scmp.ne.s32.totalorder %s585, %s588
      %p597 = scmp.eq.s32.totalorder %s50, 3
      %p598 = por %p596, %p597
      %p599 = scmp.ne.s32.totalorder %s588, %s589
      %p600 = scmp.eq.s32.totalorder %s50, 0
      %p601 = por %p599, %p600
      %p602 = scmp.ne.s32.totalorder %s588, %s589
      %p603 = scmp.eq.s32.totalorder %s51, 3
      %p604 = por %p602, %p603
      %p606 = scmp.ne.s32.totalorder %s589, %s605
      %p607 = scmp.eq.s32.totalorder %s51, 0
      %p608 = por %p606, %p607
      %p609 = scmp.le.s32.totalorder 1, %s45
      %p610 = scmp.lt.s32.totalorder %s45, 5
      %p611 = pnand %p609, %p610
      %p612 = pneg %p611
      // Predicated region
      $region9: #{tpu_custom_call.1} parent=5 // pred_check
        _
      $region10: #{tpu_custom_call.1} parent=5 // pred_check_branch
        %614 = sbr.rel (%p611) target = $region12
      $region11: #{tpu_custom_call.1} parent=5 // pred_region
        %s615 = ssub.s32 %s45, 1
        // Predicated region
        $region13: #{tpu_custom_call.1} parent=11 // pred_check
          %p616 = pneg %p92
        $region14: #{tpu_custom_call.1} parent=11 // pred_check_branch
          %618 = sbr.rel (%p616) target = $region16
        $region15: #{tpu_custom_call.1} parent=11 // pred_region
          %s620 = ssub.s32 2048, 2048
          %621 = vsyncadd [#allocation6], %s620
          %s622 = sshll.u32 [#allocation5], 4
          %s623 = int_to_ptr.vmem [resolvable:$true] %s622
          %628 = dma.hbm_to_vmem [thread:$0]  %s1, 2048, %s623, [#allocation6], 128, 128, 8
        $region16: #{tpu_custom_call.1} parent=11 // pred_fallthru
          _
        // Predicated region
        $region17: #{tpu_custom_call.1} parent=11 // pred_check
          %p629 = pneg %p113
        $region18: #{tpu_custom_call.1} parent=11 // pred_check_branch
          %631 = sbr.rel (%p629) target = $region20
        $region19: #{tpu_custom_call.1} parent=11 // pred_region
          %s633 = ssub.s32 2048, 2048
          %634 = vsyncadd [#allocation6], %s633
          %s635 = sshll.u32 [#allocation7], 4
          %s636 = int_to_ptr.vmem [resolvable:$true] %s635
          %641 = dma.hbm_to_vmem [thread:$0]  %s2, 2048, %s636, [#allocation6], 128, 128, 8
        $region20: #{tpu_custom_call.1} parent=11 // pred_fallthru
          _
        // Predicated region
        $region21: #{tpu_custom_call.1} parent=11 // pred_check
          %p642 = pneg %p134
        $region22: #{tpu_custom_call.1} parent=11 // pred_check_branch
          %644 = sbr.rel (%p642) target = $region24
        $region23: #{tpu_custom_call.1} parent=11 // pred_region
          _
        $region24: #{tpu_custom_call.1} parent=11 // pred_fallthru
          _
        // Predicated region
        $region25: #{tpu_custom_call.1} parent=11 // pred_check
          %p645 = pneg %p155
        $region26: #{tpu_custom_call.1} parent=11 // pred_check_branch
          %647 = sbr.rel (%p645) target = $region28
        $region27: #{tpu_custom_call.1} parent=11 // pred_region
          %s649 = ssub.s32 2048, 2048
          %650 = vsyncadd [#allocation9], %s649
          %s651 = sshll.u32 [#allocation8], 4
          %s652 = int_to_ptr.vmem [resolvable:$true] %s651
          %657 = dma.hbm_to_vmem [thread:$0]  %s4, 2048, %s652, [#allocation9], 128, 128, 8
        $region28: #{tpu_custom_call.1} parent=11 // pred_fallthru
          _
        // Predicated region
        $region29: #{tpu_custom_call.1} parent=11 // pred_check
          %p658 = pneg %p176
        $region30: #{tpu_custom_call.1} parent=11 // pred_check_branch
          %660 = sbr.rel (%p658) target = $region32
        $region31: #{tpu_custom_call.1} parent=11 // pred_region
          %s662 = ssub.s32 2048, 2048
          %663 = vsyncadd [#allocation9], %s662
          %s664 = sshll.u32 [#allocation10], 4
          %s665 = int_to_ptr.vmem [resolvable:$true] %s664
          %670 = dma.hbm_to_vmem [thread:$0]  %s5, 2048, %s665, [#allocation9], 128, 128, 8
        $region32: #{tpu_custom_call.1} parent=11 // pred_fallthru
          _
        // Predicated region
        $region33: #{tpu_custom_call.1} parent=11 // pred_check
          %p671 = pneg %p197
        $region34: #{tpu_custom_call.1} parent=11 // pred_check_branch
          %673 = sbr.rel (%p671) target = $region36
        $region35: #{tpu_custom_call.1} parent=11 // pred_region
          _
        $region36: #{tpu_custom_call.1} parent=11 // pred_fallthru
          _
        // Predicated region
        $region37: #{tpu_custom_call.1} parent=11 // pred_check
          %p674 = pneg %p218
        $region38: #{tpu_custom_call.1} parent=11 // pred_check_branch
          %676 = sbr.rel (%p674) target = $region40
        $region39: #{tpu_custom_call.1} parent=11 // pred_region
          %s678 = ssub.s32 2048, 2048
          %679 = vsyncadd [#allocation12], %s678
          %s680 = sshll.u32 [#allocation11], 4
          %s681 = int_to_ptr.vmem [resolvable:$true] %s680
          %686 = dma.hbm_to_vmem [thread:$0]  %s7, 2048, %s681, [#allocation12], 128, 128, 8
        $region40: #{tpu_custom_call.1} parent=11 // pred_fallthru
          _
        // Predicated region
        $region41: #{tpu_custom_call.1} parent=11 // pred_check
          %p687 = pneg %p239
        $region42: #{tpu_custom_call.1} parent=11 // pred_check_branch
          %689 = sbr.rel (%p687) target = $region44
        $region43: #{tpu_custom_call.1} parent=11 // pred_region
          %s691 = ssub.s32 2048, 2048
          %692 = vsyncadd [#allocation12], %s691
          %s693 = sshll.u32 [#allocation13], 4
          %s694 = int_to_ptr.vmem [resolvable:$true] %s693
          %699 = dma.hbm_to_vmem [thread:$0]  %s8, 2048, %s694, [#allocation12], 128, 128, 8
        $region44: #{tpu_custom_call.1} parent=11 // pred_fallthru
          _
        // Predicated region
        $region45: #{tpu_custom_call.1} parent=11 // pred_check
          %p700 = pneg %p260
        $region46: #{tpu_custom_call.1} parent=11 // pred_check_branch
          %702 = sbr.rel (%p700) target = $region48
        $region47: #{tpu_custom_call.1} parent=11 // pred_region
          _
        $region48: #{tpu_custom_call.1} parent=11 // pred_fallthru
          _
        // Predicated region
        $region49: #{tpu_custom_call.1} parent=11 // pred_check
          %p703 = pneg %p281
        $region50: #{tpu_custom_call.1} parent=11 // pred_check_branch
          %705 = sbr.rel (%p703) target = $region52
        $region51: #{tpu_custom_call.1} parent=11 // pred_region
          %s707 = ssub.s32 2048, 2048
          %708 = vsyncadd [#allocation15], %s707
          %s709 = sshll.u32 [#allocation14], 4
          %s710 = int_to_ptr.vmem [resolvable:$true] %s709
          %715 = dma.hbm_to_vmem [thread:$0]  %s10, 2048, %s710, [#allocation15], 128, 128, 8
        $region52: #{tpu_custom_call.1} parent=11 // pred_fallthru
          _
        // Predicated region
        $region53: #{tpu_custom_call.1} parent=11 // pred_check
          %p716 = pneg %p302
        $region54: #{tpu_custom_call.1} parent=11 // pred_check_branch
          %718 = sbr.rel (%p716) target = $region56
        $region55: #{tpu_custom_call.1} parent=11 // pred_region
          %s720 = ssub.s32 2048, 2048
          %721 = vsyncadd [#allocation15], %s720
          %s722 = sshll.u32 [#allocation16], 4
          %s723 = int_to_ptr.vmem [resolvable:$true] %s722
          %728 = dma.hbm_to_vmem [thread:$0]  %s11, 2048, %s723, [#allocation15], 128, 128, 8
        $region56: #{tpu_custom_call.1} parent=11 // pred_fallthru
          _
        // Predicated region
        $region57: #{tpu_custom_call.1} parent=11 // pred_check
          %p729 = pneg %p323
        $region58: #{tpu_custom_call.1} parent=11 // pred_check_branch
          %731 = sbr.rel (%p729) target = $region60
        $region59: #{tpu_custom_call.1} parent=11 // pred_region
          _
        $region60: #{tpu_custom_call.1} parent=11 // pred_fallthru
          _
        // Predicated region
        $region61: #{tpu_custom_call.1} parent=11 // pred_check
          %p732 = pneg %p344
        $region62: #{tpu_custom_call.1} parent=11 // pred_check_branch
          %734 = sbr.rel (%p732) target = $region64
        $region63: #{tpu_custom_call.1} parent=11 // pred_region
          %s736 = ssub.s32 4096, 4096
          %737 = vsyncadd [#allocation18], %s736
          %s738 = sshll.u32 [#allocation17], 4
          %s739 = int_to_ptr.vmem [resolvable:$true] %s738
          %744 = dma.hbm_to_vmem [thread:$0]  %s13, 4096, %s739, [#allocation18], 128, 128, 8
        $region64: #{tpu_custom_call.1} parent=11 // pred_fallthru
          _
        // Predicated region
        $region65: #{tpu_custom_call.1} parent=11 // pred_check
          %p745 = pneg %p365
        $region66: #{tpu_custom_call.1} parent=11 // pred_check_branch
          %747 = sbr.rel (%p745) target = $region68
        $region67: #{tpu_custom_call.1} parent=11 // pred_region
          %s749 = ssub.s32 2048, 2048
          %750 = vsyncadd [#allocation18], %s749
          %s751 = sshll.u32 [#allocation19], 4
          %s752 = int_to_ptr.vmem [resolvable:$true] %s751
          %757 = dma.hbm_to_vmem [thread:$0]  %s14, 2048, %s752, [#allocation18], 128, 128, 8
        $region68: #{tpu_custom_call.1} parent=11 // pred_fallthru
          _
        // Predicated region
        $region69: #{tpu_custom_call.1} parent=11 // pred_check
          %p758 = pneg %p386
        $region70: #{tpu_custom_call.1} parent=11 // pred_check_branch
          %760 = sbr.rel (%p758) target = $region72
        $region71: #{tpu_custom_call.1} parent=11 // pred_region
          _
        $region72: #{tpu_custom_call.1} parent=11 // pred_fallthru
          _
        // Predicated region
        $region73: #{tpu_custom_call.1} parent=11 // pred_check
          %p761 = pneg %p407
        $region74: #{tpu_custom_call.1} parent=11 // pred_check_branch
          %763 = sbr.rel (%p761) target = $region76
        $region75: #{tpu_custom_call.1} parent=11 // pred_region
          %s765 = ssub.s32 2048, 2048
          %766 = vsyncadd [#allocation21], %s765
          %s767 = sshll.u32 [#allocation20], 4
          %s768 = int_to_ptr.vmem [resolvable:$true] %s767
          %773 = dma.hbm_to_vmem [thread:$0]  %s16, 2048, %s768, [#allocation21], 128, 128, 8
        $region76: #{tpu_custom_call.1} parent=11 // pred_fallthru
          _
        // Predicated region
        $region77: #{tpu_custom_call.1} parent=11 // pred_check
          %p774 = pneg %p428
        $region78: #{tpu_custom_call.1} parent=11 // pred_check_branch
          %776 = sbr.rel (%p774) target = $region80
        $region79: #{tpu_custom_call.1} parent=11 // pred_region
          %s778 = ssub.s32 2048, 2048
          %779 = vsyncadd [#allocation21], %s778
          %s780 = sshll.u32 [#allocation22], 4
          %s781 = int_to_ptr.vmem [resolvable:$true] %s780
          %786 = dma.hbm_to_vmem [thread:$0]  %s17, 2048, %s781, [#allocation21], 128, 128, 8
        $region80: #{tpu_custom_call.1} parent=11 // pred_fallthru
          _
        // Predicated region
        $region81: #{tpu_custom_call.1} parent=11 // pred_check
          %p787 = pneg %p449
        $region82: #{tpu_custom_call.1} parent=11 // pred_check_branch
          %789 = sbr.rel (%p787) target = $region84
        $region83: #{tpu_custom_call.1} parent=11 // pred_region
          _
        $region84: #{tpu_custom_call.1} parent=11 // pred_fallthru
          _
        // Predicated region
        $region85: #{tpu_custom_call.1} parent=11 // pred_check
          %p790 = pneg %p470
        $region86: #{tpu_custom_call.1} parent=11 // pred_check_branch
          %792 = sbr.rel (%p790) target = $region88
        $region87: #{tpu_custom_call.1} parent=11 // pred_region
          %s794 = ssub.s32 2048, 2048
          %795 = vsyncadd [#allocation24], %s794
          %s796 = sshll.u32 [#allocation23], 4
          %s797 = int_to_ptr.vmem [resolvable:$true] %s796
          %802 = dma.hbm_to_vmem [thread:$0]  %s19, 2048, %s797, [#allocation24], 128, 128, 8
        $region88: #{tpu_custom_call.1} parent=11 // pred_fallthru
          _
        // Predicated region
        $region89: #{tpu_custom_call.1} parent=11 // pred_check
          %p803 = pneg %p491
        $region90: #{tpu_custom_call.1} parent=11 // pred_check_branch
          %805 = sbr.rel (%p803) target = $region92
        $region91: #{tpu_custom_call.1} parent=11 // pred_region
          %s807 = ssub.s32 2048, 2048
          %808 = vsyncadd [#allocation24], %s807
          %s809 = sshll.u32 [#allocation25], 4
          %s810 = int_to_ptr.vmem [resolvable:$true] %s809
          %815 = dma.hbm_to_vmem [thread:$0]  %s20, 2048, %s810, [#allocation24], 128, 128, 8
        $region92: #{tpu_custom_call.1} parent=11 // pred_fallthru
          _
        // Predicated region
        $region93: #{tpu_custom_call.1} parent=11 // pred_check
          %p816 = pneg %p512
        $region94: #{tpu_custom_call.1} parent=11 // pred_check_branch
          %818 = sbr.rel (%p816) target = $region96
        $region95: #{tpu_custom_call.1} parent=11 // pred_region
          _
        $region96: #{tpu_custom_call.1} parent=11 // pred_fallthru
          _
        // Predicated region
        $region97: #{tpu_custom_call.1} parent=11 // pred_check
          %p819 = pneg %p533
        $region98: #{tpu_custom_call.1} parent=11 // pred_check_branch
          %821 = sbr.rel (%p819) target = $region100
        $region99: #{tpu_custom_call.1} parent=11 // pred_region
          %s823 = ssub.s32 2048, 2048
          %824 = vsyncadd [#allocation27], %s823
          %s825 = sshll.u32 [#allocation26], 4
          %s826 = int_to_ptr.vmem [resolvable:$true] %s825
          %831 = dma.hbm_to_vmem [thread:$0]  %s22, 2048, %s826, [#allocation27], 128, 128, 8
        $region100: #{tpu_custom_call.1} parent=11 // pred_fallthru
          _
        // Predicated region
        $region101: #{tpu_custom_call.1} parent=11 // pred_check
          %p832 = pneg %p554
        $region102: #{tpu_custom_call.1} parent=11 // pred_check_branch
          %834 = sbr.rel (%p832) target = $region104
        $region103: #{tpu_custom_call.1} parent=11 // pred_region
          %s836 = ssub.s32 2048, 2048
          %837 = vsyncadd [#allocation27], %s836
          %s838 = sshll.u32 [#allocation28], 4
          %s839 = int_to_ptr.vmem [resolvable:$true] %s838
          %844 = dma.hbm_to_vmem [thread:$0]  %s23, 2048, %s839, [#allocation27], 128, 128, 8
        $region104: #{tpu_custom_call.1} parent=11 // pred_fallthru
          _
        // Predicated region
        $region105: #{tpu_custom_call.1} parent=11 // pred_check
          %p845 = pneg %p575
        $region106: #{tpu_custom_call.1} parent=11 // pred_check_branch
          %847 = sbr.rel (%p845) target = $region108
        $region107: #{tpu_custom_call.1} parent=11 // pred_region
          _
        $region108: #{tpu_custom_call.1} parent=11 // pred_fallthru
          _
      $region12: #{tpu_custom_call.1} parent=5 // pred_fallthru
        _
      %p848 = scmp.lt.s32.totalorder %s45, 4
      // Predicated region
      $region109: #{tpu_custom_call.1} parent=5 // pred_check
        %p849 = pneg %p848
      $region110: #{tpu_custom_call.1} parent=5 // pred_check_branch
        %851 = sbr.rel (%p849) target = $region112
      $region111: #{tpu_custom_call.1} parent=5 // pred_region
        // Predicated region
        $region113: #{tpu_custom_call.1} parent=111 // pred_check
          %p852 = pneg %p65
        $region114: #{tpu_custom_call.1} parent=111 // pred_check_branch
          %854 = sbr.rel (%p852) target = $region116
        $region115: #{tpu_custom_call.1} parent=111 // pred_region
          %s855 = sand.u32 %s55, 1
          %s856 = scalar_lea.sflag [#allocation3], %s855
          %s857 = sand.u32 %s55, 1
          %s858 = smul.addr %s857, 64
          %s859 = scalar_lea.vmem [#allocation2], %s858
          %s860 = smul.u32 8, %s45
          %s862 = ssub.s32 1024, 1024
          %863 = vsyncadd %s856, %s862
          %s864 = smul.addr %s860, 128
          %s865 = scalar_lea.hbm %s0, %s864
          %s866 = sshll.u32 %s859, 4
          %s867 = int_to_ptr.vmem [resolvable:$true] %s866
          %872 = dma.hbm_to_vmem [thread:$0]  %s865, 1024, %s867, %s856, 128, 128, 8
        $region116: #{tpu_custom_call.1} parent=111 // pred_fallthru
          _
      $region112: #{tpu_custom_call.1} parent=5 // pred_fallthru
        _
      %p873 = scmp.le.s32.totalorder 1, %s45
      %p874 = scmp.lt.s32.totalorder %s45, 5
      %p875 = pnand %p873, %p874
      %p876 = pneg %p875
      // Predicated region
      $region117: #{tpu_custom_call.1} parent=5 // pred_check
        _
      $region118: #{tpu_custom_call.1} parent=5 // pred_check_branch
        %878 = sbr.rel (%p875) target = $region120
      $region119: #{tpu_custom_call.1} parent=5 // pred_region
        %s879 = ssub.s32 %s45, 1
        %s880 = sand.u32 %s58, 1
        %s881 = scalar_lea.sflag [#allocation3], %s880
        %s882 = sand.u32 %s58, 1
        %s883 = smul.addr %s882, 64
        %s884 = scalar_lea.vmem [#allocation2], %s883
        // Predicated region
        $region121: #{tpu_custom_call.1} parent=119 // pred_check
          %p885 = pneg %p71
        $region122: #{tpu_custom_call.1} parent=119 // pred_check_branch
          %887 = sbr.rel (%p885) target = $region124
        $region123: #{tpu_custom_call.1} parent=119 // pred_region
          %888 = dma.done %s881, 1024
        $region124: #{tpu_custom_call.1} parent=119 // pred_fallthru
          _
        // Predicated region
        $region125: #{tpu_custom_call.1} parent=119 // pred_check
          %p889 = pneg %p92
        $region126: #{tpu_custom_call.1} parent=119 // pred_check_branch
          %891 = sbr.rel (%p889) target = $region128
        $region127: #{tpu_custom_call.1} parent=119 // pred_region
          %892 = dma.done [#allocation6], 2048
        $region128: #{tpu_custom_call.1} parent=119 // pred_fallthru
          _
        // Predicated region
        $region129: #{tpu_custom_call.1} parent=119 // pred_check
          %p893 = pneg %p113
        $region130: #{tpu_custom_call.1} parent=119 // pred_check_branch
          %895 = sbr.rel (%p893) target = $region132
        $region131: #{tpu_custom_call.1} parent=119 // pred_region
          %896 = dma.done [#allocation6], 2048
        $region132: #{tpu_custom_call.1} parent=119 // pred_fallthru
          _
        // Predicated region
        $region133: #{tpu_custom_call.1} parent=119 // pred_check
          %p897 = pneg %p155
        $region134: #{tpu_custom_call.1} parent=119 // pred_check_branch
          %899 = sbr.rel (%p897) target = $region136
        $region135: #{tpu_custom_call.1} parent=119 // pred_region
          %900 = dma.done [#allocation9], 2048
        $region136: #{tpu_custom_call.1} parent=119 // pred_fallthru
          _
        // Predicated region
        $region137: #{tpu_custom_call.1} parent=119 // pred_check
          %p901 = pneg %p176
        $region138: #{tpu_custom_call.1} parent=119 // pred_check_branch
          %903 = sbr.rel (%p901) target = $region140
        $region139: #{tpu_custom_call.1} parent=119 // pred_region
          %904 = dma.done [#allocation9], 2048
        $region140: #{tpu_custom_call.1} parent=119 // pred_fallthru
          _
        // Predicated region
        $region141: #{tpu_custom_call.1} parent=119 // pred_check
          %p905 = pneg %p218
        $region142: #{tpu_custom_call.1} parent=119 // pred_check_branch
          %907 = sbr.rel (%p905) target = $region144
        $region143: #{tpu_custom_call.1} parent=119 // pred_region
          %908 = dma.done [#allocation12], 2048
        $region144: #{tpu_custom_call.1} parent=119 // pred_fallthru
          _
        // Predicated region
        $region145: #{tpu_custom_call.1} parent=119 // pred_check
          %p909 = pneg %p239
        $region146: #{tpu_custom_call.1} parent=119 // pred_check_branch
          %911 = sbr.rel (%p909) target = $region148
        $region147: #{tpu_custom_call.1} parent=119 // pred_region
          %912 = dma.done [#allocation12], 2048
        $region148: #{tpu_custom_call.1} parent=119 // pred_fallthru
          _
        // Predicated region
        $region149: #{tpu_custom_call.1} parent=119 // pred_check
          %p913 = pneg %p281
        $region150: #{tpu_custom_call.1} parent=119 // pred_check_branch
          %915 = sbr.rel (%p913) target = $region152
        $region151: #{tpu_custom_call.1} parent=119 // pred_region
          %916 = dma.done [#allocation15], 2048
        $region152: #{tpu_custom_call.1} parent=119 // pred_fallthru
          _
        // Predicated region
        $region153: #{tpu_custom_call.1} parent=119 // pred_check
          %p917 = pneg %p302
        $region154: #{tpu_custom_call.1} parent=119 // pred_check_branch
          %919 = sbr.rel (%p917) target = $region156
        $region155: #{tpu_custom_call.1} parent=119 // pred_region
          %920 = dma.done [#allocation15], 2048
        $region156: #{tpu_custom_call.1} parent=119 // pred_fallthru
          _
        // Predicated region
        $region157: #{tpu_custom_call.1} parent=119 // pred_check
          %p921 = pneg %p344
        $region158: #{tpu_custom_call.1} parent=119 // pred_check_branch
          %923 = sbr.rel (%p921) target = $region160
        $region159: #{tpu_custom_call.1} parent=119 // pred_region
          %924 = dma.done [#allocation18], 4096
        $region160: #{tpu_custom_call.1} parent=119 // pred_fallthru
          _
        // Predicated region
        $region161: #{tpu_custom_call.1} parent=119 // pred_check
          %p925 = pneg %p365
        $region162: #{tpu_custom_call.1} parent=119 // pred_check_branch
          %927 = sbr.rel (%p925) target = $region164
        $region163: #{tpu_custom_call.1} parent=119 // pred_region
          %928 = dma.done [#allocation18], 2048
        $region164: #{tpu_custom_call.1} parent=119 // pred_fallthru
          _
        // Predicated region
        $region165: #{tpu_custom_call.1} parent=119 // pred_check
          %p929 = pneg %p407
        $region166: #{tpu_custom_call.1} parent=119 // pred_check_branch
          %931 = sbr.rel (%p929) target = $region168
        $region167: #{tpu_custom_call.1} parent=119 // pred_region
          %932 = dma.done [#allocation21], 2048
        $region168: #{tpu_custom_call.1} parent=119 // pred_fallthru
          _
        // Predicated region
        $region169: #{tpu_custom_call.1} parent=119 // pred_check
          %p933 = pneg %p428
        $region170: #{tpu_custom_call.1} parent=119 // pred_check_branch
          %935 = sbr.rel (%p933) target = $region172
        $region171: #{tpu_custom_call.1} parent=119 // pred_region
          %936 = dma.done [#allocation21], 2048
        $region172: #{tpu_custom_call.1} parent=119 // pred_fallthru
          _
        // Predicated region
        $region173: #{tpu_custom_call.1} parent=119 // pred_check
          %p937 = pneg %p470
        $region174: #{tpu_custom_call.1} parent=119 // pred_check_branch
          %939 = sbr.rel (%p937) target = $region176
        $region175: #{tpu_custom_call.1} parent=119 // pred_region
          %940 = dma.done [#allocation24], 2048
        $region176: #{tpu_custom_call.1} parent=119 // pred_fallthru
          _
        // Predicated region
        $region177: #{tpu_custom_call.1} parent=119 // pred_check
          %p941 = pneg %p491
        $region178: #{tpu_custom_call.1} parent=119 // pred_check_branch
          %943 = sbr.rel (%p941) target = $region180
        $region179: #{tpu_custom_call.1} parent=119 // pred_region
          %944 = dma.done [#allocation24], 2048
        $region180: #{tpu_custom_call.1} parent=119 // pred_fallthru
          _
        // Predicated region
        $region181: #{tpu_custom_call.1} parent=119 // pred_check
          %p945 = pneg %p533
        $region182: #{tpu_custom_call.1} parent=119 // pred_check_branch
          %947 = sbr.rel (%p945) target = $region184
        $region183: #{tpu_custom_call.1} parent=119 // pred_region
          %948 = dma.done [#allocation27], 2048
        $region184: #{tpu_custom_call.1} parent=119 // pred_fallthru
          _
        // Predicated region
        $region185: #{tpu_custom_call.1} parent=119 // pred_check
          %p949 = pneg %p554
        $region186: #{tpu_custom_call.1} parent=119 // pred_check_branch
          %951 = sbr.rel (%p949) target = $region188
        $region187: #{tpu_custom_call.1} parent=119 // pred_region
          %952 = dma.done [#allocation27], 2048
        $region188: #{tpu_custom_call.1} parent=119 // pred_fallthru
          _
        %s953 = sand.u32 %s58, 1
        %s954 = scalar_lea.sflag [#allocation3], %s953
        %s955 = sand.u32 %s58, 1
        %s956 = smul.addr %s955, 64
        %s957 = scalar_lea.vmem [#allocation2], %s956
        %p958 = pneg %p71
        %p959 = pneg %p68
        %p960 = pneg %p92
        %p961 = pneg %p89
        %p962 = pneg %p113
        %p963 = pneg %p110
        %p964 = pneg %p134
        %p965 = pneg %p131
        %p966 = pneg %p155
        %p967 = pneg %p152
        %p968 = pneg %p176
        %p969 = pneg %p173
        %p970 = pneg %p197
        %p971 = pneg %p194
        %p972 = pneg %p218
        %p973 = pneg %p215
        %p974 = pneg %p239
        %p975 = pneg %p236
        %p976 = pneg %p260
        %p977 = pneg %p257
        %p978 = pneg %p281
        %p979 = pneg %p278
        %p980 = pneg %p302
        %p981 = pneg %p299
        %p982 = pneg %p323
        %p983 = pneg %p320
        %p984 = pneg %p344
        %p985 = pneg %p341
        %p986 = pneg %p365
        %p987 = pneg %p362
        %p988 = pneg %p386
        %p989 = pneg %p383
        %p990 = pneg %p407
        %p991 = pneg %p404
        %p992 = pneg %p428
        %p993 = pneg %p425
        %p994 = pneg %p449
        %p995 = pneg %p446
        %p996 = pneg %p470
        %p997 = pneg %p467
        %p998 = pneg %p491
        %p999 = pneg %p488
        %p1000 = pneg %p512
        %p1001 = pneg %p509
        %p1002 = pneg %p533
        %p1003 = pneg %p530
        %p1004 = pneg %p554
        %p1005 = pneg %p551
        %p1006 = pneg %p575
        %p1007 = pneg %p572
        %p1008 = pneg %p601
        %p1009 = pneg %p598
        %s1010 = sand.u32 %s588, 1
        %s1011 = scalar_lea.sflag [#allocation4], %s1010
        %s1012 = sand.u32 %s588, 1
        %s1013 = smul.addr %s1012, 64
        %s1014 = scalar_lea.vmem [#allocation29], %s1013
        %s1015 = smul.u32 8, %s50
        %s1016 = smul.u32 8, %s50
        %v1017 = vld [vmem:[%s884] sm:$0xff]
        %v1018 = vld [vmem:[%s884 + $0x8] sm:$0xff]
        %v1019 = vld [vmem:[%s884 + $0x10] sm:$0xff]
        %v1020 = vld [vmem:[%s884 + $0x18] sm:$0xff]
        %v1021 = vld [vmem:[%s884 + $0x20] sm:$0xff]
        %v1022 = vld [vmem:[%s884 + $0x28] sm:$0xff]
        %v1023 = vld [vmem:[%s884 + $0x30] sm:$0xff]
        %v1024 = vld [vmem:[%s884 + $0x38] sm:$0xff]
        %v1025 = vld [vmem:[#allocation5] sm:$0xff]
        %v1026 = vld [vmem:[#allocation5 + $0x8] sm:$0xff]
        %v1027 = vld [vmem:[#allocation5 + $0x10] sm:$0xff]
        %v1028 = vld [vmem:[#allocation5 + $0x18] sm:$0xff]
        %v1029 = vld [vmem:[#allocation5 + $0x20] sm:$0xff]
        %v1030 = vld [vmem:[#allocation5 + $0x28] sm:$0xff]
        %v1031 = vld [vmem:[#allocation5 + $0x30] sm:$0xff]
        %v1032 = vld [vmem:[#allocation5 + $0x38] sm:$0xff]
        %v1033 = vld [vmem:[#allocation5 + $0x40] sm:$0xff]
        %v1034 = vld [vmem:[#allocation5 + $0x48] sm:$0xff]
        %v1035 = vld [vmem:[#allocation5 + $0x50] sm:$0xff]
        %v1036 = vld [vmem:[#allocation5 + $0x58] sm:$0xff]
        %v1037 = vld [vmem:[#allocation5 + $0x60] sm:$0xff]
        %v1038 = vld [vmem:[#allocation5 + $0x68] sm:$0xff]
        %v1039 = vld [vmem:[#allocation5 + $0x70] sm:$0xff]
        %v1040 = vld [vmem:[#allocation5 + $0x78] sm:$0xff]
        %v1041 = vld [vmem:[#allocation7] sm:$0xff]
        %v1042 = vld [vmem:[#allocation7 + $0x8] sm:$0xff]
        %v1043 = vld [vmem:[#allocation7 + $0x10] sm:$0xff]
        %v1044 = vld [vmem:[#allocation7 + $0x18] sm:$0xff]
        %v1045 = vld [vmem:[#allocation7 + $0x20] sm:$0xff]
        %v1046 = vld [vmem:[#allocation7 + $0x28] sm:$0xff]
        %v1047 = vld [vmem:[#allocation7 + $0x30] sm:$0xff]
        %v1048 = vld [vmem:[#allocation7 + $0x38] sm:$0xff]
        %v1049 = vld [vmem:[#allocation7 + $0x40] sm:$0xff]
        %v1050 = vld [vmem:[#allocation7 + $0x48] sm:$0xff]
        %v1051 = vld [vmem:[#allocation7 + $0x50] sm:$0xff]
        %v1052 = vld [vmem:[#allocation7 + $0x58] sm:$0xff]
        %v1053 = vld [vmem:[#allocation7 + $0x60] sm:$0xff]
        %v1054 = vld [vmem:[#allocation7 + $0x68] sm:$0xff]
        %v1055 = vld [vmem:[#allocation7 + $0x70] sm:$0xff]
        %v1056 = vld [vmem:[#allocation7 + $0x78] sm:$0xff]
        %v1057 = vld [vmem:[%s3] sm:$0x1]
        %1058 = vmatprep.subr.mxu0 0.0
        %1059 = vmatpush1.msra.mxu0 %v1040
        %1060 = vmatprep.subr.mxu0 0.0
        %1061 = vmatpush1.msra.mxu0 %v1039
        %1062 = vmatprep.subr.mxu0 0.0
        %1063 = vmatpush1.msra.mxu0 %v1038
        %1064 = vmatprep.subr.mxu0 0.0
        %1065 = vmatpush1.msra.mxu0 %v1037
        %1066 = vmatprep.subr.mxu0 0.0
        %1067 = vmatpush1.msra.mxu0 %v1036
        %1068 = vmatprep.subr.mxu0 0.0
        %1069 = vmatpush1.msra.mxu0 %v1035
        %1070 = vmatprep.subr.mxu0 0.0
        %1071 = vmatpush1.msra.mxu0 %v1034
        %1072 = vmatprep.subr.mxu0 0.0
        %1073 = vmatpush1.msra.mxu0 %v1033
        %1074 = vmatprep.subr.mxu0 0.0
        %1075 = vmatpush1.msra.mxu0 %v1032
        %1076 = vmatprep.subr.mxu0 0.0
        %1077 = vmatpush1.msra.mxu0 %v1031
        %1078 = vmatprep.subr.mxu0 0.0
        %1079 = vmatpush1.msra.mxu0 %v1030
        %1080 = vmatprep.subr.mxu0 0.0
        %1081 = vmatpush1.msra.mxu0 %v1029
        %1082 = vmatprep.subr.mxu0 0.0
        %1083 = vmatpush1.msra.mxu0 %v1028
        %1084 = vmatprep.subr.mxu0 0.0
        %1085 = vmatpush1.msra.mxu0 %v1027
        %1086 = vmatprep.subr.mxu0 0.0
        %1087 = vmatpush1.msra.mxu0 %v1026
        %1088 = vmatprep.subr.mxu0 0.0
        %1089 = vmatpush1.msra.mxu0 %v1025
        %1090 = vmatprep.subr.mxu0 0.0
        %1091 = vmatpush2.msra.mxu0 0.0
        %1092 = vmatprep.subr.mxu0 0.0
        %1093 = vmatpush2.msra.mxu0 0.0
        %1094 = vmatprep.subr.mxu0 0.0
        %1095 = vmatpush2.msra.mxu0 0.0
        %1096 = vmatprep.subr.mxu0 0.0
        %1097 = vmatpush2.msra.mxu0 0.0
        %1098 = vmatprep.subr.mxu0 0.0
        %1099 = vmatpush2.msra.mxu0 0.0
        %1100 = vmatprep.subr.mxu0 0.0
        %1101 = vmatpush2.msra.mxu0 0.0
        %1102 = vmatprep.subr.mxu0 0.0
        %1103 = vmatpush2.msra.mxu0 0.0
        %1104 = vmatprep.subr.mxu0 0.0
        %1105 = vmatpush2.msra.mxu0 0.0
        %1106 = vmatprep.subr.mxu0 0.0
        %1107 = vmatpush2.msra.mxu0 0.0
        %1108 = vmatprep.subr.mxu0 0.0
        %1109 = vmatpush2.msra.mxu0 0.0
        %1110 = vmatprep.subr.mxu0 0.0
        %1111 = vmatpush2.msra.mxu0 0.0
        %1112 = vmatprep.subr.mxu0 0.0
        %1113 = vmatpush2.msra.mxu0 0.0
        %1114 = vmatprep.subr.mxu0 0.0
        %1115 = vmatpush2.msra.mxu0 0.0
        %1116 = vmatprep.subr.mxu0 0.0
        %1117 = vmatpush2.msra.mxu0 0.0
        %1118 = vmatprep.subr.mxu0 0.0
        %1119 = vmatpush2.msra.mxu0 0.0
        %1120 = vmatprep.subr.mxu0 0.0
        %1121 = vmatpush2.msra.mxu0 0.0
        %1122 = vmatprep.mubr.f32.mxu0 0.0
        %1123 = vmatmul.mubr.f32.gmra.mxu0 %v1017
        %v1124 = vpop.f32.mrf.mxu0
        %v1125 = vadd.f32 0.0, %v1124
        %v1126 = vpop.f32.mrf.mxu0
        %1127 = vmatprep.mubr.f32.mxu0 0.0
        %1128 = vmatmul.mubr.f32.gmra.mxu0 %v1018
        %v1129 = vpop.f32.mrf.mxu0
        %v1130 = vadd.f32 0.0, %v1129
        %v1131 = vpop.f32.mrf.mxu0
        %1132 = vmatprep.mubr.f32.mxu0 0.0
        %1133 = vmatmul.mubr.f32.gmra.mxu0 %v1019
        %v1134 = vpop.f32.mrf.mxu0
        %v1135 = vadd.f32 0.0, %v1134
        %v1136 = vpop.f32.mrf.mxu0
        %1137 = vmatprep.mubr.f32.mxu0 0.0
        %1138 = vmatmul.mubr.f32.gmra.mxu0 %v1020
        %v1139 = vpop.f32.mrf.mxu0
        %v1140 = vadd.f32 0.0, %v1139
        %v1141 = vpop.f32.mrf.mxu0
        %1142 = vmatprep.mubr.f32.mxu0 0.0
        %1143 = vmatmul.mubr.f32.gmra.mxu0 %v1021
        %v1144 = vpop.f32.mrf.mxu0
        %v1145 = vadd.f32 0.0, %v1144
        %v1146 = vpop.f32.mrf.mxu0
        %1147 = vmatprep.mubr.f32.mxu0 0.0
        %1148 = vmatmul.mubr.f32.gmra.mxu0 %v1022
        %v1149 = vpop.f32.mrf.mxu0
        %v1150 = vadd.f32 0.0, %v1149
        %v1151 = vpop.f32.mrf.mxu0
        %1152 = vmatprep.mubr.f32.mxu0 0.0
        %1153 = vmatmul.mubr.f32.gmra.mxu0 %v1023
        %v1154 = vpop.f32.mrf.mxu0
        %v1155 = vadd.f32 0.0, %v1154
        %v1156 = vpop.f32.mrf.mxu0
        %1157 = vmatprep.mubr.f32.mxu0 0.0
        %1158 = vmatmul.mubr.f32.gmra.mxu0 %v1024
        %v1159 = vpop.f32.mrf.mxu0
        %v1160 = vadd.f32 0.0, %v1159
        %v1161 = vpop.f32.mrf.mxu0
        %1162 = vdwg.mxu0
        %v1164 = vlaneseq
        %v1165 = vshrl.u32 %v1164, 7
        %v1166 = vsub.s32 0, %v1165
        %v1167 = vrot.slane %v1057, %v1166
        %1169 = vmatprep.subr.mxu0 0.0
        %1170 = vmatpush1.msra.mxu0 %v1056
        %1171 = vmatprep.subr.mxu0 0.0
        %1172 = vmatpush1.msra.mxu0 %v1055
        %1173 = vmatprep.subr.mxu0 0.0
        %1174 = vmatpush1.msra.mxu0 %v1054
        %1175 = vmatprep.subr.mxu0 0.0
        %1176 = vmatpush1.msra.mxu0 %v1053
        %1177 = vmatprep.subr.mxu0 0.0
        %1178 = vmatpush1.msra.mxu0 %v1052
        %1179 = vmatprep.subr.mxu0 0.0
        %1180 = vmatpush1.msra.mxu0 %v1051
        %1181 = vmatprep.subr.mxu0 0.0
        %1182 = vmatpush1.msra.mxu0 %v1050
        %1183 = vmatprep.subr.mxu0 0.0
        %1184 = vmatpush1.msra.mxu0 %v1049
        %1185 = vmatprep.subr.mxu0 0.0
        %1186 = vmatpush1.msra.mxu0 %v1048
        %1187 = vmatprep.subr.mxu0 0.0
        %1188 = vmatpush1.msra.mxu0 %v1047
        %1189 = vmatprep.subr.mxu0 0.0
        %1190 = vmatpush1.msra.mxu0 %v1046
        %1191 = vmatprep.subr.mxu0 0.0
        %1192 = vmatpush1.msra.mxu0 %v1045
        %1193 = vmatprep.subr.mxu0 0.0
        %1194 = vmatpush1.msra.mxu0 %v1044
        %1195 = vmatprep.subr.mxu0 0.0
        %1196 = vmatpush1.msra.mxu0 %v1043
        %1197 = vmatprep.subr.mxu0 0.0
        %1198 = vmatpush1.msra.mxu0 %v1042
        %1199 = vmatprep.subr.mxu0 0.0
        %1200 = vmatpush1.msra.mxu0 %v1041
        %1201 = vmatprep.subr.mxu0 0.0
        %1202 = vmatpush2.msra.mxu0 0.0
        %1203 = vmatprep.subr.mxu0 0.0
        %1204 = vmatpush2.msra.mxu0 0.0
        %1205 = vmatprep.subr.mxu0 0.0
        %1206 = vmatpush2.msra.mxu0 0.0
        %1207 = vmatprep.subr.mxu0 0.0
        %1208 = vmatpush2.msra.mxu0 0.0
        %1209 = vmatprep.subr.mxu0 0.0
        %1210 = vmatpush2.msra.mxu0 0.0
        %1211 = vmatprep.subr.mxu0 0.0
        %1212 = vmatpush2.msra.mxu0 0.0
        %1213 = vmatprep.subr.mxu0 0.0
        %1214 = vmatpush2.msra.mxu0 0.0
        %1215 = vmatprep.subr.mxu0 0.0
        %1216 = vmatpush2.msra.mxu0 0.0
        %1217 = vmatprep.subr.mxu0 0.0
        %1218 = vmatpush2.msra.mxu0 0.0
        %1219 = vmatprep.subr.mxu0 0.0
        %1220 = vmatpush2.msra.mxu0 0.0
        %1221 = vmatprep.subr.mxu0 0.0
        %1222 = vmatpush2.msra.mxu0 0.0
        %1223 = vmatprep.subr.mxu0 0.0
        %1224 = vmatpush2.msra.mxu0 0.0
        %1225 = vmatprep.subr.mxu0 0.0
        %1226 = vmatpush2.msra.mxu0 0.0
        %1227 = vmatprep.subr.mxu0 0.0
        %1228 = vmatpush2.msra.mxu0 0.0
        %1229 = vmatprep.subr.mxu0 0.0
        %1230 = vmatpush2.msra.mxu0 0.0
        %1231 = vmatprep.subr.mxu0 0.0
        %1232 = vmatpush2.msra.mxu0 0.0
        %1233 = vmatprep.mubr.f32.mxu0 0.0
        %1234 = vmatmul.mubr.f32.gmra.mxu0 %v1125
        %v1235 = vpop.f32.mrf.mxu0
        %v1236 = vadd.f32 %v1167, %v1235
        %v1237 = vpop.f32.mrf.mxu0
        %1238 = vmatprep.mubr.f32.mxu0 0.0
        %1239 = vmatmul.mubr.f32.gmra.mxu0 %v1130
        %v1240 = vpop.f32.mrf.mxu0
        %v1241 = vadd.f32 %v1167, %v1240
        %v1242 = vpop.f32.mrf.mxu0
        %1243 = vmatprep.mubr.f32.mxu0 0.0
        %1244 = vmatmul.mubr.f32.gmra.mxu0 %v1135
        %v1245 = vpop.f32.mrf.mxu0
        %v1246 = vadd.f32 %v1167, %v1245
        %v1247 = vpop.f32.mrf.mxu0
        %1248 = vmatprep.mubr.f32.mxu0 0.0
        %1249 = vmatmul.mubr.f32.gmra.mxu0 %v1140
        %v1250 = vpop.f32.mrf.mxu0
        %v1251 = vadd.f32 %v1167, %v1250
        %v1252 = vpop.f32.mrf.mxu0
        %1253 = vmatprep.mubr.f32.mxu0 0.0
        %1254 = vmatmul.mubr.f32.gmra.mxu0 %v1145
        %v1255 = vpop.f32.mrf.mxu0
        %v1256 = vadd.f32 %v1167, %v1255
        %v1257 = vpop.f32.mrf.mxu0
        %1258 = vmatprep.mubr.f32.mxu0 0.0
        %1259 = vmatmul.mubr.f32.gmra.mxu0 %v1150
        %v1260 = vpop.f32.mrf.mxu0
        %v1261 = vadd.f32 %v1167, %v1260
        %v1262 = vpop.f32.mrf.mxu0
        %1263 = vmatprep.mubr.f32.mxu0 0.0
        %1264 = vmatmul.mubr.f32.gmra.mxu0 %v1155
        %v1265 = vpop.f32.mrf.mxu0
        %v1266 = vadd.f32 %v1167, %v1265
        %v1267 = vpop.f32.mrf.mxu0
        %1268 = vmatprep.mubr.f32.mxu0 0.0
        %1269 = vmatmul.mubr.f32.gmra.mxu0 %v1160
        %v1270 = vpop.f32.mrf.mxu0
        %v1271 = vadd.f32 %v1167, %v1270
        %v1272 = vpop.f32.mrf.mxu0
        %1273 = vdwg.mxu0
        %v1274 = vmax.f32 %v1236, 0.0
        %v1275 = vmax.f32 %v1241, 0.0
        %v1276 = vmax.f32 %v1246, 0.0
        %v1277 = vmax.f32 %v1251, 0.0
        %v1278 = vmax.f32 %v1256, 0.0
        %v1279 = vmax.f32 %v1261, 0.0
        %v1280 = vmax.f32 %v1266, 0.0
        %v1281 = vmax.f32 %v1271, 0.0
        %v1282 = vld [vmem:[#allocation8] sm:$0xff]
        %v1283 = vld [vmem:[#allocation8 + $0x8] sm:$0xff]
        %v1284 = vld [vmem:[#allocation8 + $0x10] sm:$0xff]
        %v1285 = vld [vmem:[#allocation8 + $0x18] sm:$0xff]
        %v1286 = vld [vmem:[#allocation8 + $0x20] sm:$0xff]
        %v1287 = vld [vmem:[#allocation8 + $0x28] sm:$0xff]
        %v1288 = vld [vmem:[#allocation8 + $0x30] sm:$0xff]
        %v1289 = vld [vmem:[#allocation8 + $0x38] sm:$0xff]
        %v1290 = vld [vmem:[#allocation8 + $0x40] sm:$0xff]
        %v1291 = vld [vmem:[#allocation8 + $0x48] sm:$0xff]
        %v1292 = vld [vmem:[#allocation8 + $0x50] sm:$0xff]
        %v1293 = vld [vmem:[#allocation8 + $0x58] sm:$0xff]
        %v1294 = vld [vmem:[#allocation8 + $0x60] sm:$0xff]
        %v1295 = vld [vmem:[#allocation8 + $0x68] sm:$0xff]
        %v1296 = vld [vmem:[#allocation8 + $0x70] sm:$0xff]
        %v1297 = vld [vmem:[#allocation8 + $0x78] sm:$0xff]
        %v1298 = vld [vmem:[#allocation10] sm:$0xff]
        %v1299 = vld [vmem:[#allocation10 + $0x8] sm:$0xff]
        %v1300 = vld [vmem:[#allocation10 + $0x10] sm:$0xff]
        %v1301 = vld [vmem:[#allocation10 + $0x18] sm:$0xff]
        %v1302 = vld [vmem:[#allocation10 + $0x20] sm:$0xff]
        %v1303 = vld [vmem:[#allocation10 + $0x28] sm:$0xff]
        %v1304 = vld [vmem:[#allocation10 + $0x30] sm:$0xff]
        %v1305 = vld [vmem:[#allocation10 + $0x38] sm:$0xff]
        %v1306 = vld [vmem:[#allocation10 + $0x40] sm:$0xff]
        %v1307 = vld [vmem:[#allocation10 + $0x48] sm:$0xff]
        %v1308 = vld [vmem:[#allocation10 + $0x50] sm:$0xff]
        %v1309 = vld [vmem:[#allocation10 + $0x58] sm:$0xff]
        %v1310 = vld [vmem:[#allocation10 + $0x60] sm:$0xff]
        %v1311 = vld [vmem:[#allocation10 + $0x68] sm:$0xff]
        %v1312 = vld [vmem:[#allocation10 + $0x70] sm:$0xff]
        %v1313 = vld [vmem:[#allocation10 + $0x78] sm:$0xff]
        %v1314 = vld [vmem:[%s6] sm:$0x1]
        %1315 = vmatprep.subr.mxu0 0.0
        %1316 = vmatpush1.msra.mxu0 %v1297
        %1317 = vmatprep.subr.mxu0 0.0
        %1318 = vmatpush1.msra.mxu0 %v1296
        %1319 = vmatprep.subr.mxu0 0.0
        %1320 = vmatpush1.msra.mxu0 %v1295
        %1321 = vmatprep.subr.mxu0 0.0
        %1322 = vmatpush1.msra.mxu0 %v1294
        %1323 = vmatprep.subr.mxu0 0.0
        %1324 = vmatpush1.msra.mxu0 %v1293
        %1325 = vmatprep.subr.mxu0 0.0
        %1326 = vmatpush1.msra.mxu0 %v1292
        %1327 = vmatprep.subr.mxu0 0.0
        %1328 = vmatpush1.msra.mxu0 %v1291
        %1329 = vmatprep.subr.mxu0 0.0
        %1330 = vmatpush1.msra.mxu0 %v1290
        %1331 = vmatprep.subr.mxu0 0.0
        %1332 = vmatpush1.msra.mxu0 %v1289
        %1333 = vmatprep.subr.mxu0 0.0
        %1334 = vmatpush1.msra.mxu0 %v1288
        %1335 = vmatprep.subr.mxu0 0.0
        %1336 = vmatpush1.msra.mxu0 %v1287
        %1337 = vmatprep.subr.mxu0 0.0
        %1338 = vmatpush1.msra.mxu0 %v1286
        %1339 = vmatprep.subr.mxu0 0.0
        %1340 = vmatpush1.msra.mxu0 %v1285
        %1341 = vmatprep.subr.mxu0 0.0
        %1342 = vmatpush1.msra.mxu0 %v1284
        %1343 = vmatprep.subr.mxu0 0.0
        %1344 = vmatpush1.msra.mxu0 %v1283
        %1345 = vmatprep.subr.mxu0 0.0
        %1346 = vmatpush1.msra.mxu0 %v1282
        %1347 = vmatprep.subr.mxu0 0.0
        %1348 = vmatpush2.msra.mxu0 0.0
        %1349 = vmatprep.subr.mxu0 0.0
        %1350 = vmatpush2.msra.mxu0 0.0
        %1351 = vmatprep.subr.mxu0 0.0
        %1352 = vmatpush2.msra.mxu0 0.0
        %1353 = vmatprep.subr.mxu0 0.0
        %1354 = vmatpush2.msra.mxu0 0.0
        %1355 = vmatprep.subr.mxu0 0.0
        %1356 = vmatpush2.msra.mxu0 0.0
        %1357 = vmatprep.subr.mxu0 0.0
        %1358 = vmatpush2.msra.mxu0 0.0
        %1359 = vmatprep.subr.mxu0 0.0
        %1360 = vmatpush2.msra.mxu0 0.0
        %1361 = vmatprep.subr.mxu0 0.0
        %1362 = vmatpush2.msra.mxu0 0.0
        %1363 = vmatprep.subr.mxu0 0.0
        %1364 = vmatpush2.msra.mxu0 0.0
        %1365 = vmatprep.subr.mxu0 0.0
        %1366 = vmatpush2.msra.mxu0 0.0
        %1367 = vmatprep.subr.mxu0 0.0
        %1368 = vmatpush2.msra.mxu0 0.0
        %1369 = vmatprep.subr.mxu0 0.0
        %1370 = vmatpush2.msra.mxu0 0.0
        %1371 = vmatprep.subr.mxu0 0.0
        %1372 = vmatpush2.msra.mxu0 0.0
        %1373 = vmatprep.subr.mxu0 0.0
        %1374 = vmatpush2.msra.mxu0 0.0
        %1375 = vmatprep.subr.mxu0 0.0
        %1376 = vmatpush2.msra.mxu0 0.0
        %1377 = vmatprep.subr.mxu0 0.0
        %1378 = vmatpush2.msra.mxu0 0.0
        %1379 = vmatprep.mubr.f32.mxu0 0.0
        %1380 = vmatmul.mubr.f32.gmra.mxu0 %v1274
        %v1381 = vpop.f32.mrf.mxu0
        %v1382 = vadd.f32 0.0, %v1381
        %v1383 = vpop.f32.mrf.mxu0
        %1384 = vmatprep.mubr.f32.mxu0 0.0
        %1385 = vmatmul.mubr.f32.gmra.mxu0 %v1275
        %v1386 = vpop.f32.mrf.mxu0
        %v1387 = vadd.f32 0.0, %v1386
        %v1388 = vpop.f32.mrf.mxu0
        %1389 = vmatprep.mubr.f32.mxu0 0.0
        %1390 = vmatmul.mubr.f32.gmra.mxu0 %v1276
        %v1391 = vpop.f32.mrf.mxu0
        %v1392 = vadd.f32 0.0, %v1391
        %v1393 = vpop.f32.mrf.mxu0
        %1394 = vmatprep.mubr.f32.mxu0 0.0
        %1395 = vmatmul.mubr.f32.gmra.mxu0 %v1277
        %v1396 = vpop.f32.mrf.mxu0
        %v1397 = vadd.f32 0.0, %v1396
        %v1398 = vpop.f32.mrf.mxu0
        %1399 = vmatprep.mubr.f32.mxu0 0.0
        %1400 = vmatmul.mubr.f32.gmra.mxu0 %v1278
        %v1401 = vpop.f32.mrf.mxu0
        %v1402 = vadd.f32 0.0, %v1401
        %v1403 = vpop.f32.mrf.mxu0
        %1404 = vmatprep.mubr.f32.mxu0 0.0
        %1405 = vmatmul.mubr.f32.gmra.mxu0 %v1279
        %v1406 = vpop.f32.mrf.mxu0
        %v1407 = vadd.f32 0.0, %v1406
        %v1408 = vpop.f32.mrf.mxu0
        %1409 = vmatprep.mubr.f32.mxu0 0.0
        %1410 = vmatmul.mubr.f32.gmra.mxu0 %v1280
        %v1411 = vpop.f32.mrf.mxu0
        %v1412 = vadd.f32 0.0, %v1411
        %v1413 = vpop.f32.mrf.mxu0
        %1414 = vmatprep.mubr.f32.mxu0 0.0
        %1415 = vmatmul.mubr.f32.gmra.mxu0 %v1281
        %v1416 = vpop.f32.mrf.mxu0
        %v1417 = vadd.f32 0.0, %v1416
        %v1418 = vpop.f32.mrf.mxu0
        %1419 = vdwg.mxu0
        %v1421 = vlaneseq
        %v1422 = vshrl.u32 %v1421, 7
        %v1423 = vsub.s32 0, %v1422
        %v1424 = vrot.slane %v1314, %v1423
        %1426 = vmatprep.subr.mxu0 0.0
        %1427 = vmatpush1.msra.mxu0 %v1313
        %1428 = vmatprep.subr.mxu0 0.0
        %1429 = vmatpush1.msra.mxu0 %v1312
        %1430 = vmatprep.subr.mxu0 0.0
        %1431 = vmatpush1.msra.mxu0 %v1311
        %1432 = vmatprep.subr.mxu0 0.0
        %1433 = vmatpush1.msra.mxu0 %v1310
        %1434 = vmatprep.subr.mxu0 0.0
        %1435 = vmatpush1.msra.mxu0 %v1309
        %1436 = vmatprep.subr.mxu0 0.0
        %1437 = vmatpush1.msra.mxu0 %v1308
        %1438 = vmatprep.subr.mxu0 0.0
        %1439 = vmatpush1.msra.mxu0 %v1307
        %1440 = vmatprep.subr.mxu0 0.0
        %1441 = vmatpush1.msra.mxu0 %v1306
        %1442 = vmatprep.subr.mxu0 0.0
        %1443 = vmatpush1.msra.mxu0 %v1305
        %1444 = vmatprep.subr.mxu0 0.0
        %1445 = vmatpush1.msra.mxu0 %v1304
        %1446 = vmatprep.subr.mxu0 0.0
        %1447 = vmatpush1.msra.mxu0 %v1303
        %1448 = vmatprep.subr.mxu0 0.0
        %1449 = vmatpush1.msra.mxu0 %v1302
        %1450 = vmatprep.subr.mxu0 0.0
        %1451 = vmatpush1.msra.mxu0 %v1301
        %1452 = vmatprep.subr.mxu0 0.0
        %1453 = vmatpush1.msra.mxu0 %v1300
        %1454 = vmatprep.subr.mxu0 0.0
        %1455 = vmatpush1.msra.mxu0 %v1299
        %1456 = vmatprep.subr.mxu0 0.0
        %1457 = vmatpush1.msra.mxu0 %v1298
        %1458 = vmatprep.subr.mxu0 0.0
        %1459 = vmatpush2.msra.mxu0 0.0
        %1460 = vmatprep.subr.mxu0 0.0
        %1461 = vmatpush2.msra.mxu0 0.0
        %1462 = vmatprep.subr.mxu0 0.0
        %1463 = vmatpush2.msra.mxu0 0.0
        %1464 = vmatprep.subr.mxu0 0.0
        %1465 = vmatpush2.msra.mxu0 0.0
        %1466 = vmatprep.subr.mxu0 0.0
        %1467 = vmatpush2.msra.mxu0 0.0
        %1468 = vmatprep.subr.mxu0 0.0
        %1469 = vmatpush2.msra.mxu0 0.0
        %1470 = vmatprep.subr.mxu0 0.0
        %1471 = vmatpush2.msra.mxu0 0.0
        %1472 = vmatprep.subr.mxu0 0.0
        %1473 = vmatpush2.msra.mxu0 0.0
        %1474 = vmatprep.subr.mxu0 0.0
        %1475 = vmatpush2.msra.mxu0 0.0
        %1476 = vmatprep.subr.mxu0 0.0
        %1477 = vmatpush2.msra.mxu0 0.0
        %1478 = vmatprep.subr.mxu0 0.0
        %1479 = vmatpush2.msra.mxu0 0.0
        %1480 = vmatprep.subr.mxu0 0.0
        %1481 = vmatpush2.msra.mxu0 0.0
        %1482 = vmatprep.subr.mxu0 0.0
        %1483 = vmatpush2.msra.mxu0 0.0
        %1484 = vmatprep.subr.mxu0 0.0
        %1485 = vmatpush2.msra.mxu0 0.0
        %1486 = vmatprep.subr.mxu0 0.0
        %1487 = vmatpush2.msra.mxu0 0.0
        %1488 = vmatprep.subr.mxu0 0.0
        %1489 = vmatpush2.msra.mxu0 0.0
        %1490 = vmatprep.mubr.f32.mxu0 0.0
        %1491 = vmatmul.mubr.f32.gmra.mxu0 %v1382
        %v1492 = vpop.f32.mrf.mxu0
        %v1493 = vadd.f32 %v1424, %v1492
        %v1494 = vpop.f32.mrf.mxu0
        %1495 = vmatprep.mubr.f32.mxu0 0.0
        %1496 = vmatmul.mubr.f32.gmra.mxu0 %v1387
        %v1497 = vpop.f32.mrf.mxu0
        %v1498 = vadd.f32 %v1424, %v1497
        %v1499 = vpop.f32.mrf.mxu0
        %1500 = vmatprep.mubr.f32.mxu0 0.0
        %1501 = vmatmul.mubr.f32.gmra.mxu0 %v1392
        %v1502 = vpop.f32.mrf.mxu0
        %v1503 = vadd.f32 %v1424, %v1502
        %v1504 = vpop.f32.mrf.mxu0
        %1505 = vmatprep.mubr.f32.mxu0 0.0
        %1506 = vmatmul.mubr.f32.gmra.mxu0 %v1397
        %v1507 = vpop.f32.mrf.mxu0
        %v1508 = vadd.f32 %v1424, %v1507
        %v1509 = vpop.f32.mrf.mxu0
        %1510 = vmatprep.mubr.f32.mxu0 0.0
        %1511 = vmatmul.mubr.f32.gmra.mxu0 %v1402
        %v1512 = vpop.f32.mrf.mxu0
        %v1513 = vadd.f32 %v1424, %v1512
        %v1514 = vpop.f32.mrf.mxu0
        %1515 = vmatprep.mubr.f32.mxu0 0.0
        %1516 = vmatmul.mubr.f32.gmra.mxu0 %v1407
        %v1517 = vpop.f32.mrf.mxu0
        %v1518 = vadd.f32 %v1424, %v1517
        %v1519 = vpop.f32.mrf.mxu0
        %1520 = vmatprep.mubr.f32.mxu0 0.0
        %1521 = vmatmul.mubr.f32.gmra.mxu0 %v1412
        %v1522 = vpop.f32.mrf.mxu0
        %v1523 = vadd.f32 %v1424, %v1522
        %v1524 = vpop.f32.mrf.mxu0
        %1525 = vmatprep.mubr.f32.mxu0 0.0
        %1526 = vmatmul.mubr.f32.gmra.mxu0 %v1417
        %v1527 = vpop.f32.mrf.mxu0
        %v1528 = vadd.f32 %v1424, %v1527
        %v1529 = vpop.f32.mrf.mxu0
        %1530 = vdwg.mxu0
        %v1531 = vmax.f32 %v1493, 0.0
        %v1532 = vmax.f32 %v1498, 0.0
        %v1533 = vmax.f32 %v1503, 0.0
        %v1534 = vmax.f32 %v1508, 0.0
        %v1535 = vmax.f32 %v1513, 0.0
        %v1536 = vmax.f32 %v1518, 0.0
        %v1537 = vmax.f32 %v1523, 0.0
        %v1538 = vmax.f32 %v1528, 0.0
        %v1539 = vld [vmem:[#allocation11] sm:$0xff]
        %v1540 = vld [vmem:[#allocation11 + $0x8] sm:$0xff]
        %v1541 = vld [vmem:[#allocation11 + $0x10] sm:$0xff]
        %v1542 = vld [vmem:[#allocation11 + $0x18] sm:$0xff]
        %v1543 = vld [vmem:[#allocation11 + $0x20] sm:$0xff]
        %v1544 = vld [vmem:[#allocation11 + $0x28] sm:$0xff]
        %v1545 = vld [vmem:[#allocation11 + $0x30] sm:$0xff]
        %v1546 = vld [vmem:[#allocation11 + $0x38] sm:$0xff]
        %v1547 = vld [vmem:[#allocation11 + $0x40] sm:$0xff]
        %v1548 = vld [vmem:[#allocation11 + $0x48] sm:$0xff]
        %v1549 = vld [vmem:[#allocation11 + $0x50] sm:$0xff]
        %v1550 = vld [vmem:[#allocation11 + $0x58] sm:$0xff]
        %v1551 = vld [vmem:[#allocation11 + $0x60] sm:$0xff]
        %v1552 = vld [vmem:[#allocation11 + $0x68] sm:$0xff]
        %v1553 = vld [vmem:[#allocation11 + $0x70] sm:$0xff]
        %v1554 = vld [vmem:[#allocation11 + $0x78] sm:$0xff]
        %v1555 = vld [vmem:[#allocation13] sm:$0xff]
        %v1556 = vld [vmem:[#allocation13 + $0x8] sm:$0xff]
        %v1557 = vld [vmem:[#allocation13 + $0x10] sm:$0xff]
        %v1558 = vld [vmem:[#allocation13 + $0x18] sm:$0xff]
        %v1559 = vld [vmem:[#allocation13 + $0x20] sm:$0xff]
        %v1560 = vld [vmem:[#allocation13 + $0x28] sm:$0xff]
        %v1561 = vld [vmem:[#allocation13 + $0x30] sm:$0xff]
        %v1562 = vld [vmem:[#allocation13 + $0x38] sm:$0xff]
        %v1563 = vld [vmem:[#allocation13 + $0x40] sm:$0xff]
        %v1564 = vld [vmem:[#allocation13 + $0x48] sm:$0xff]
        %v1565 = vld [vmem:[#allocation13 + $0x50] sm:$0xff]
        %v1566 = vld [vmem:[#allocation13 + $0x58] sm:$0xff]
        %v1567 = vld [vmem:[#allocation13 + $0x60] sm:$0xff]
        %v1568 = vld [vmem:[#allocation13 + $0x68] sm:$0xff]
        %v1569 = vld [vmem:[#allocation13 + $0x70] sm:$0xff]
        %v1570 = vld [vmem:[#allocation13 + $0x78] sm:$0xff]
        %v1571 = vld [vmem:[%s9] sm:$0x1]
        %1572 = vmatprep.subr.mxu0 0.0
        %1573 = vmatpush1.msra.mxu0 %v1554
        %1574 = vmatprep.subr.mxu0 0.0
        %1575 = vmatpush1.msra.mxu0 %v1553
        %1576 = vmatprep.subr.mxu0 0.0
        %1577 = vmatpush1.msra.mxu0 %v1552
        %1578 = vmatprep.subr.mxu0 0.0
        %1579 = vmatpush1.msra.mxu0 %v1551
        %1580 = vmatprep.subr.mxu0 0.0
        %1581 = vmatpush1.msra.mxu0 %v1550
        %1582 = vmatprep.subr.mxu0 0.0
        %1583 = vmatpush1.msra.mxu0 %v1549
        %1584 = vmatprep.subr.mxu0 0.0
        %1585 = vmatpush1.msra.mxu0 %v1548
        %1586 = vmatprep.subr.mxu0 0.0
        %1587 = vmatpush1.msra.mxu0 %v1547
        %1588 = vmatprep.subr.mxu0 0.0
        %1589 = vmatpush1.msra.mxu0 %v1546
        %1590 = vmatprep.subr.mxu0 0.0
        %1591 = vmatpush1.msra.mxu0 %v1545
        %1592 = vmatprep.subr.mxu0 0.0
        %1593 = vmatpush1.msra.mxu0 %v1544
        %1594 = vmatprep.subr.mxu0 0.0
        %1595 = vmatpush1.msra.mxu0 %v1543
        %1596 = vmatprep.subr.mxu0 0.0
        %1597 = vmatpush1.msra.mxu0 %v1542
        %1598 = vmatprep.subr.mxu0 0.0
        %1599 = vmatpush1.msra.mxu0 %v1541
        %1600 = vmatprep.subr.mxu0 0.0
        %1601 = vmatpush1.msra.mxu0 %v1540
        %1602 = vmatprep.subr.mxu0 0.0
        %1603 = vmatpush1.msra.mxu0 %v1539
        %1604 = vmatprep.subr.mxu0 0.0
        %1605 = vmatpush2.msra.mxu0 0.0
        %1606 = vmatprep.subr.mxu0 0.0
        %1607 = vmatpush2.msra.mxu0 0.0
        %1608 = vmatprep.subr.mxu0 0.0
        %1609 = vmatpush2.msra.mxu0 0.0
        %1610 = vmatprep.subr.mxu0 0.0
        %1611 = vmatpush2.msra.mxu0 0.0
        %1612 = vmatprep.subr.mxu0 0.0
        %1613 = vmatpush2.msra.mxu0 0.0
        %1614 = vmatprep.subr.mxu0 0.0
        %1615 = vmatpush2.msra.mxu0 0.0
        %1616 = vmatprep.subr.mxu0 0.0
        %1617 = vmatpush2.msra.mxu0 0.0
        %1618 = vmatprep.subr.mxu0 0.0
        %1619 = vmatpush2.msra.mxu0 0.0
        %1620 = vmatprep.subr.mxu0 0.0
        %1621 = vmatpush2.msra.mxu0 0.0
        %1622 = vmatprep.subr.mxu0 0.0
        %1623 = vmatpush2.msra.mxu0 0.0
        %1624 = vmatprep.subr.mxu0 0.0
        %1625 = vmatpush2.msra.mxu0 0.0
        %1626 = vmatprep.subr.mxu0 0.0
        %1627 = vmatpush2.msra.mxu0 0.0
        %1628 = vmatprep.subr.mxu0 0.0
        %1629 = vmatpush2.msra.mxu0 0.0
        %1630 = vmatprep.subr.mxu0 0.0
        %1631 = vmatpush2.msra.mxu0 0.0
        %1632 = vmatprep.subr.mxu0 0.0
        %1633 = vmatpush2.msra.mxu0 0.0
        %1634 = vmatprep.subr.mxu0 0.0
        %1635 = vmatpush2.msra.mxu0 0.0
        %1636 = vmatprep.mubr.f32.mxu0 0.0
        %1637 = vmatmul.mubr.f32.gmra.mxu0 %v1531
        %v1638 = vpop.f32.mrf.mxu0
        %v1639 = vadd.f32 0.0, %v1638
        %v1640 = vpop.f32.mrf.mxu0
        %1641 = vmatprep.mubr.f32.mxu0 0.0
        %1642 = vmatmul.mubr.f32.gmra.mxu0 %v1532
        %v1643 = vpop.f32.mrf.mxu0
        %v1644 = vadd.f32 0.0, %v1643
        %v1645 = vpop.f32.mrf.mxu0
        %1646 = vmatprep.mubr.f32.mxu0 0.0
        %1647 = vmatmul.mubr.f32.gmra.mxu0 %v1533
        %v1648 = vpop.f32.mrf.mxu0
        %v1649 = vadd.f32 0.0, %v1648
        %v1650 = vpop.f32.mrf.mxu0
        %1651 = vmatprep.mubr.f32.mxu0 0.0
        %1652 = vmatmul.mubr.f32.gmra.mxu0 %v1534
        %v1653 = vpop.f32.mrf.mxu0
        %v1654 = vadd.f32 0.0, %v1653
        %v1655 = vpop.f32.mrf.mxu0
        %1656 = vmatprep.mubr.f32.mxu0 0.0
        %1657 = vmatmul.mubr.f32.gmra.mxu0 %v1535
        %v1658 = vpop.f32.mrf.mxu0
        %v1659 = vadd.f32 0.0, %v1658
        %v1660 = vpop.f32.mrf.mxu0
        %1661 = vmatprep.mubr.f32.mxu0 0.0
        %1662 = vmatmul.mubr.f32.gmra.mxu0 %v1536
        %v1663 = vpop.f32.mrf.mxu0
        %v1664 = vadd.f32 0.0, %v1663
        %v1665 = vpop.f32.mrf.mxu0
        %1666 = vmatprep.mubr.f32.mxu0 0.0
        %1667 = vmatmul.mubr.f32.gmra.mxu0 %v1537
        %v1668 = vpop.f32.mrf.mxu0
        %v1669 = vadd.f32 0.0, %v1668
        %v1670 = vpop.f32.mrf.mxu0
        %1671 = vmatprep.mubr.f32.mxu0 0.0
        %1672 = vmatmul.mubr.f32.gmra.mxu0 %v1538
        %v1673 = vpop.f32.mrf.mxu0
        %v1674 = vadd.f32 0.0, %v1673
        %v1675 = vpop.f32.mrf.mxu0
        %1676 = vdwg.mxu0
        %v1678 = vlaneseq
        %v1679 = vshrl.u32 %v1678, 7
        %v1680 = vsub.s32 0, %v1679
        %v1681 = vrot.slane %v1571, %v1680
        %1683 = vmatprep.subr.mxu0 0.0
        %1684 = vmatpush1.msra.mxu0 %v1570
        %1685 = vmatprep.subr.mxu0 0.0
        %1686 = vmatpush1.msra.mxu0 %v1569
        %1687 = vmatprep.subr.mxu0 0.0
        %1688 = vmatpush1.msra.mxu0 %v1568
        %1689 = vmatprep.subr.mxu0 0.0
        %1690 = vmatpush1.msra.mxu0 %v1567
        %1691 = vmatprep.subr.mxu0 0.0
        %1692 = vmatpush1.msra.mxu0 %v1566
        %1693 = vmatprep.subr.mxu0 0.0
        %1694 = vmatpush1.msra.mxu0 %v1565
        %1695 = vmatprep.subr.mxu0 0.0
        %1696 = vmatpush1.msra.mxu0 %v1564
        %1697 = vmatprep.subr.mxu0 0.0
        %1698 = vmatpush1.msra.mxu0 %v1563
        %1699 = vmatprep.subr.mxu0 0.0
        %1700 = vmatpush1.msra.mxu0 %v1562
        %1701 = vmatprep.subr.mxu0 0.0
        %1702 = vmatpush1.msra.mxu0 %v1561
        %1703 = vmatprep.subr.mxu0 0.0
        %1704 = vmatpush1.msra.mxu0 %v1560
        %1705 = vmatprep.subr.mxu0 0.0
        %1706 = vmatpush1.msra.mxu0 %v1559
        %1707 = vmatprep.subr.mxu0 0.0
        %1708 = vmatpush1.msra.mxu0 %v1558
        %1709 = vmatprep.subr.mxu0 0.0
        %1710 = vmatpush1.msra.mxu0 %v1557
        %1711 = vmatprep.subr.mxu0 0.0
        %1712 = vmatpush1.msra.mxu0 %v1556
        %1713 = vmatprep.subr.mxu0 0.0
        %1714 = vmatpush1.msra.mxu0 %v1555
        %1715 = vmatprep.subr.mxu0 0.0
        %1716 = vmatpush2.msra.mxu0 0.0
        %1717 = vmatprep.subr.mxu0 0.0
        %1718 = vmatpush2.msra.mxu0 0.0
        %1719 = vmatprep.subr.mxu0 0.0
        %1720 = vmatpush2.msra.mxu0 0.0
        %1721 = vmatprep.subr.mxu0 0.0
        %1722 = vmatpush2.msra.mxu0 0.0
        %1723 = vmatprep.subr.mxu0 0.0
        %1724 = vmatpush2.msra.mxu0 0.0
        %1725 = vmatprep.subr.mxu0 0.0
        %1726 = vmatpush2.msra.mxu0 0.0
        %1727 = vmatprep.subr.mxu0 0.0
        %1728 = vmatpush2.msra.mxu0 0.0
        %1729 = vmatprep.subr.mxu0 0.0
        %1730 = vmatpush2.msra.mxu0 0.0
        %1731 = vmatprep.subr.mxu0 0.0
        %1732 = vmatpush2.msra.mxu0 0.0
        %1733 = vmatprep.subr.mxu0 0.0
        %1734 = vmatpush2.msra.mxu0 0.0
        %1735 = vmatprep.subr.mxu0 0.0
        %1736 = vmatpush2.msra.mxu0 0.0
        %1737 = vmatprep.subr.mxu0 0.0
        %1738 = vmatpush2.msra.mxu0 0.0
        %1739 = vmatprep.subr.mxu0 0.0
        %1740 = vmatpush2.msra.mxu0 0.0
        %1741 = vmatprep.subr.mxu0 0.0
        %1742 = vmatpush2.msra.mxu0 0.0
        %1743 = vmatprep.subr.mxu0 0.0
        %1744 = vmatpush2.msra.mxu0 0.0
        %1745 = vmatprep.subr.mxu0 0.0
        %1746 = vmatpush2.msra.mxu0 0.0
        %1747 = vmatprep.mubr.f32.mxu0 0.0
        %1748 = vmatmul.mubr.f32.gmra.mxu0 %v1639
        %v1749 = vpop.f32.mrf.mxu0
        %v1750 = vadd.f32 %v1681, %v1749
        %v1751 = vpop.f32.mrf.mxu0
        %1752 = vmatprep.mubr.f32.mxu0 0.0
        %1753 = vmatmul.mubr.f32.gmra.mxu0 %v1644
        %v1754 = vpop.f32.mrf.mxu0
        %v1755 = vadd.f32 %v1681, %v1754
        %v1756 = vpop.f32.mrf.mxu0
        %1757 = vmatprep.mubr.f32.mxu0 0.0
        %1758 = vmatmul.mubr.f32.gmra.mxu0 %v1649
        %v1759 = vpop.f32.mrf.mxu0
        %v1760 = vadd.f32 %v1681, %v1759
        %v1761 = vpop.f32.mrf.mxu0
        %1762 = vmatprep.mubr.f32.mxu0 0.0
        %1763 = vmatmul.mubr.f32.gmra.mxu0 %v1654
        %v1764 = vpop.f32.mrf.mxu0
        %v1765 = vadd.f32 %v1681, %v1764
        %v1766 = vpop.f32.mrf.mxu0
        %1767 = vmatprep.mubr.f32.mxu0 0.0
        %1768 = vmatmul.mubr.f32.gmra.mxu0 %v1659
        %v1769 = vpop.f32.mrf.mxu0
        %v1770 = vadd.f32 %v1681, %v1769
        %v1771 = vpop.f32.mrf.mxu0
        %1772 = vmatprep.mubr.f32.mxu0 0.0
        %1773 = vmatmul.mubr.f32.gmra.mxu0 %v1664
        %v1774 = vpop.f32.mrf.mxu0
        %v1775 = vadd.f32 %v1681, %v1774
        %v1776 = vpop.f32.mrf.mxu0
        %1777 = vmatprep.mubr.f32.mxu0 0.0
        %1778 = vmatmul.mubr.f32.gmra.mxu0 %v1669
        %v1779 = vpop.f32.mrf.mxu0
        %v1780 = vadd.f32 %v1681, %v1779
        %v1781 = vpop.f32.mrf.mxu0
        %1782 = vmatprep.mubr.f32.mxu0 0.0
        %1783 = vmatmul.mubr.f32.gmra.mxu0 %v1674
        %v1784 = vpop.f32.mrf.mxu0
        %v1785 = vadd.f32 %v1681, %v1784
        %v1786 = vpop.f32.mrf.mxu0
        %1787 = vdwg.mxu0
        %v1788 = vmax.f32 %v1750, 0.0
        %v1789 = vmax.f32 %v1755, 0.0
        %v1790 = vmax.f32 %v1760, 0.0
        %v1791 = vmax.f32 %v1765, 0.0
        %v1792 = vmax.f32 %v1770, 0.0
        %v1793 = vmax.f32 %v1775, 0.0
        %v1794 = vmax.f32 %v1780, 0.0
        %v1795 = vmax.f32 %v1785, 0.0
        %v1796 = vld [vmem:[#allocation14] sm:$0xff]
        %v1797 = vld [vmem:[#allocation14 + $0x8] sm:$0xff]
        %v1798 = vld [vmem:[#allocation14 + $0x10] sm:$0xff]
        %v1799 = vld [vmem:[#allocation14 + $0x18] sm:$0xff]
        %v1800 = vld [vmem:[#allocation14 + $0x20] sm:$0xff]
        %v1801 = vld [vmem:[#allocation14 + $0x28] sm:$0xff]
        %v1802 = vld [vmem:[#allocation14 + $0x30] sm:$0xff]
        %v1803 = vld [vmem:[#allocation14 + $0x38] sm:$0xff]
        %v1804 = vld [vmem:[#allocation14 + $0x40] sm:$0xff]
        %v1805 = vld [vmem:[#allocation14 + $0x48] sm:$0xff]
        %v1806 = vld [vmem:[#allocation14 + $0x50] sm:$0xff]
        %v1807 = vld [vmem:[#allocation14 + $0x58] sm:$0xff]
        %v1808 = vld [vmem:[#allocation14 + $0x60] sm:$0xff]
        %v1809 = vld [vmem:[#allocation14 + $0x68] sm:$0xff]
        %v1810 = vld [vmem:[#allocation14 + $0x70] sm:$0xff]
        %v1811 = vld [vmem:[#allocation14 + $0x78] sm:$0xff]
        %v1812 = vld [vmem:[#allocation16] sm:$0xff]
        %v1813 = vld [vmem:[#allocation16 + $0x8] sm:$0xff]
        %v1814 = vld [vmem:[#allocation16 + $0x10] sm:$0xff]
        %v1815 = vld [vmem:[#allocation16 + $0x18] sm:$0xff]
        %v1816 = vld [vmem:[#allocation16 + $0x20] sm:$0xff]
        %v1817 = vld [vmem:[#allocation16 + $0x28] sm:$0xff]
        %v1818 = vld [vmem:[#allocation16 + $0x30] sm:$0xff]
        %v1819 = vld [vmem:[#allocation16 + $0x38] sm:$0xff]
        %v1820 = vld [vmem:[#allocation16 + $0x40] sm:$0xff]
        %v1821 = vld [vmem:[#allocation16 + $0x48] sm:$0xff]
        %v1822 = vld [vmem:[#allocation16 + $0x50] sm:$0xff]
        %v1823 = vld [vmem:[#allocation16 + $0x58] sm:$0xff]
        %v1824 = vld [vmem:[#allocation16 + $0x60] sm:$0xff]
        %v1825 = vld [vmem:[#allocation16 + $0x68] sm:$0xff]
        %v1826 = vld [vmem:[#allocation16 + $0x70] sm:$0xff]
        %v1827 = vld [vmem:[#allocation16 + $0x78] sm:$0xff]
        %v1828 = vld [vmem:[%s12] sm:$0x1]
        %1829 = vmatprep.subr.mxu0 0.0
        %1830 = vmatpush1.msra.mxu0 %v1811
        %1831 = vmatprep.subr.mxu0 0.0
        %1832 = vmatpush1.msra.mxu0 %v1810
        %1833 = vmatprep.subr.mxu0 0.0
        %1834 = vmatpush1.msra.mxu0 %v1809
        %1835 = vmatprep.subr.mxu0 0.0
        %1836 = vmatpush1.msra.mxu0 %v1808
        %1837 = vmatprep.subr.mxu0 0.0
        %1838 = vmatpush1.msra.mxu0 %v1807
        %1839 = vmatprep.subr.mxu0 0.0
        %1840 = vmatpush1.msra.mxu0 %v1806
        %1841 = vmatprep.subr.mxu0 0.0
        %1842 = vmatpush1.msra.mxu0 %v1805
        %1843 = vmatprep.subr.mxu0 0.0
        %1844 = vmatpush1.msra.mxu0 %v1804
        %1845 = vmatprep.subr.mxu0 0.0
        %1846 = vmatpush1.msra.mxu0 %v1803
        %1847 = vmatprep.subr.mxu0 0.0
        %1848 = vmatpush1.msra.mxu0 %v1802
        %1849 = vmatprep.subr.mxu0 0.0
        %1850 = vmatpush1.msra.mxu0 %v1801
        %1851 = vmatprep.subr.mxu0 0.0
        %1852 = vmatpush1.msra.mxu0 %v1800
        %1853 = vmatprep.subr.mxu0 0.0
        %1854 = vmatpush1.msra.mxu0 %v1799
        %1855 = vmatprep.subr.mxu0 0.0
        %1856 = vmatpush1.msra.mxu0 %v1798
        %1857 = vmatprep.subr.mxu0 0.0
        %1858 = vmatpush1.msra.mxu0 %v1797
        %1859 = vmatprep.subr.mxu0 0.0
        %1860 = vmatpush1.msra.mxu0 %v1796
        %1861 = vmatprep.subr.mxu0 0.0
        %1862 = vmatpush2.msra.mxu0 0.0
        %1863 = vmatprep.subr.mxu0 0.0
        %1864 = vmatpush2.msra.mxu0 0.0
        %1865 = vmatprep.subr.mxu0 0.0
        %1866 = vmatpush2.msra.mxu0 0.0
        %1867 = vmatprep.subr.mxu0 0.0
        %1868 = vmatpush2.msra.mxu0 0.0
        %1869 = vmatprep.subr.mxu0 0.0
        %1870 = vmatpush2.msra.mxu0 0.0
        %1871 = vmatprep.subr.mxu0 0.0
        %1872 = vmatpush2.msra.mxu0 0.0
        %1873 = vmatprep.subr.mxu0 0.0
        %1874 = vmatpush2.msra.mxu0 0.0
        %1875 = vmatprep.subr.mxu0 0.0
        %1876 = vmatpush2.msra.mxu0 0.0
        %1877 = vmatprep.subr.mxu0 0.0
        %1878 = vmatpush2.msra.mxu0 0.0
        %1879 = vmatprep.subr.mxu0 0.0
        %1880 = vmatpush2.msra.mxu0 0.0
        %1881 = vmatprep.subr.mxu0 0.0
        %1882 = vmatpush2.msra.mxu0 0.0
        %1883 = vmatprep.subr.mxu0 0.0
        %1884 = vmatpush2.msra.mxu0 0.0
        %1885 = vmatprep.subr.mxu0 0.0
        %1886 = vmatpush2.msra.mxu0 0.0
        %1887 = vmatprep.subr.mxu0 0.0
        %1888 = vmatpush2.msra.mxu0 0.0
        %1889 = vmatprep.subr.mxu0 0.0
        %1890 = vmatpush2.msra.mxu0 0.0
        %1891 = vmatprep.subr.mxu0 0.0
        %1892 = vmatpush2.msra.mxu0 0.0
        %1893 = vmatprep.mubr.f32.mxu0 0.0
        %1894 = vmatmul.mubr.f32.gmra.mxu0 %v1788
        %v1895 = vpop.f32.mrf.mxu0
        %v1896 = vadd.f32 0.0, %v1895
        %v1897 = vpop.f32.mrf.mxu0
        %1898 = vmatprep.mubr.f32.mxu0 0.0
        %1899 = vmatmul.mubr.f32.gmra.mxu0 %v1789
        %v1900 = vpop.f32.mrf.mxu0
        %v1901 = vadd.f32 0.0, %v1900
        %v1902 = vpop.f32.mrf.mxu0
        %1903 = vmatprep.mubr.f32.mxu0 0.0
        %1904 = vmatmul.mubr.f32.gmra.mxu0 %v1790
        %v1905 = vpop.f32.mrf.mxu0
        %v1906 = vadd.f32 0.0, %v1905
        %v1907 = vpop.f32.mrf.mxu0
        %1908 = vmatprep.mubr.f32.mxu0 0.0
        %1909 = vmatmul.mubr.f32.gmra.mxu0 %v1791
        %v1910 = vpop.f32.mrf.mxu0
        %v1911 = vadd.f32 0.0, %v1910
        %v1912 = vpop.f32.mrf.mxu0
        %1913 = vmatprep.mubr.f32.mxu0 0.0
        %1914 = vmatmul.mubr.f32.gmra.mxu0 %v1792
        %v1915 = vpop.f32.mrf.mxu0
        %v1916 = vadd.f32 0.0, %v1915
        %v1917 = vpop.f32.mrf.mxu0
        %1918 = vmatprep.mubr.f32.mxu0 0.0
        %1919 = vmatmul.mubr.f32.gmra.mxu0 %v1793
        %v1920 = vpop.f32.mrf.mxu0
        %v1921 = vadd.f32 0.0, %v1920
        %v1922 = vpop.f32.mrf.mxu0
        %1923 = vmatprep.mubr.f32.mxu0 0.0
        %1924 = vmatmul.mubr.f32.gmra.mxu0 %v1794
        %v1925 = vpop.f32.mrf.mxu0
        %v1926 = vadd.f32 0.0, %v1925
        %v1927 = vpop.f32.mrf.mxu0
        %1928 = vmatprep.mubr.f32.mxu0 0.0
        %1929 = vmatmul.mubr.f32.gmra.mxu0 %v1795
        %v1930 = vpop.f32.mrf.mxu0
        %v1931 = vadd.f32 0.0, %v1930
        %v1932 = vpop.f32.mrf.mxu0
        %1933 = vdwg.mxu0
        %v1935 = vlaneseq
        %v1936 = vshrl.u32 %v1935, 7
        %v1937 = vsub.s32 0, %v1936
        %v1938 = vrot.slane %v1828, %v1937
        %1940 = vmatprep.subr.mxu0 0.0
        %1941 = vmatpush1.msra.mxu0 %v1827
        %1942 = vmatprep.subr.mxu0 0.0
        %1943 = vmatpush1.msra.mxu0 %v1826
        %1944 = vmatprep.subr.mxu0 0.0
        %1945 = vmatpush1.msra.mxu0 %v1825
        %1946 = vmatprep.subr.mxu0 0.0
        %1947 = vmatpush1.msra.mxu0 %v1824
        %1948 = vmatprep.subr.mxu0 0.0
        %1949 = vmatpush1.msra.mxu0 %v1823
        %1950 = vmatprep.subr.mxu0 0.0
        %1951 = vmatpush1.msra.mxu0 %v1822
        %1952 = vmatprep.subr.mxu0 0.0
        %1953 = vmatpush1.msra.mxu0 %v1821
        %1954 = vmatprep.subr.mxu0 0.0
        %1955 = vmatpush1.msra.mxu0 %v1820
        %1956 = vmatprep.subr.mxu0 0.0
        %1957 = vmatpush1.msra.mxu0 %v1819
        %1958 = vmatprep.subr.mxu0 0.0
        %1959 = vmatpush1.msra.mxu0 %v1818
        %1960 = vmatprep.subr.mxu0 0.0
        %1961 = vmatpush1.msra.mxu0 %v1817
        %1962 = vmatprep.subr.mxu0 0.0
        %1963 = vmatpush1.msra.mxu0 %v1816
        %1964 = vmatprep.subr.mxu0 0.0
        %1965 = vmatpush1.msra.mxu0 %v1815
        %1966 = vmatprep.subr.mxu0 0.0
        %1967 = vmatpush1.msra.mxu0 %v1814
        %1968 = vmatprep.subr.mxu0 0.0
        %1969 = vmatpush1.msra.mxu0 %v1813
        %1970 = vmatprep.subr.mxu0 0.0
        %1971 = vmatpush1.msra.mxu0 %v1812
        %1972 = vmatprep.subr.mxu0 0.0
        %1973 = vmatpush2.msra.mxu0 0.0
        %1974 = vmatprep.subr.mxu0 0.0
        %1975 = vmatpush2.msra.mxu0 0.0
        %1976 = vmatprep.subr.mxu0 0.0
        %1977 = vmatpush2.msra.mxu0 0.0
        %1978 = vmatprep.subr.mxu0 0.0
        %1979 = vmatpush2.msra.mxu0 0.0
        %1980 = vmatprep.subr.mxu0 0.0
        %1981 = vmatpush2.msra.mxu0 0.0
        %1982 = vmatprep.subr.mxu0 0.0
        %1983 = vmatpush2.msra.mxu0 0.0
        %1984 = vmatprep.subr.mxu0 0.0
        %1985 = vmatpush2.msra.mxu0 0.0
        %1986 = vmatprep.subr.mxu0 0.0
        %1987 = vmatpush2.msra.mxu0 0.0
        %1988 = vmatprep.subr.mxu0 0.0
        %1989 = vmatpush2.msra.mxu0 0.0
        %1990 = vmatprep.subr.mxu0 0.0
        %1991 = vmatpush2.msra.mxu0 0.0
        %1992 = vmatprep.subr.mxu0 0.0
        %1993 = vmatpush2.msra.mxu0 0.0
        %1994 = vmatprep.subr.mxu0 0.0
        %1995 = vmatpush2.msra.mxu0 0.0
        %1996 = vmatprep.subr.mxu0 0.0
        %1997 = vmatpush2.msra.mxu0 0.0
        %1998 = vmatprep.subr.mxu0 0.0
        %1999 = vmatpush2.msra.mxu0 0.0
        %2000 = vmatprep.subr.mxu0 0.0
        %2001 = vmatpush2.msra.mxu0 0.0
        %2002 = vmatprep.subr.mxu0 0.0
        %2003 = vmatpush2.msra.mxu0 0.0
        %2004 = vmatprep.mubr.f32.mxu0 0.0
        %2005 = vmatmul.mubr.f32.gmra.mxu0 %v1896
        %v2006 = vpop.f32.mrf.mxu0
        %v2007 = vadd.f32 %v1938, %v2006
        %v2008 = vpop.f32.mrf.mxu0
        %2009 = vmatprep.mubr.f32.mxu0 0.0
        %2010 = vmatmul.mubr.f32.gmra.mxu0 %v1901
        %v2011 = vpop.f32.mrf.mxu0
        %v2012 = vadd.f32 %v1938, %v2011
        %v2013 = vpop.f32.mrf.mxu0
        %2014 = vmatprep.mubr.f32.mxu0 0.0
        %2015 = vmatmul.mubr.f32.gmra.mxu0 %v1906
        %v2016 = vpop.f32.mrf.mxu0
        %v2017 = vadd.f32 %v1938, %v2016
        %v2018 = vpop.f32.mrf.mxu0
        %2019 = vmatprep.mubr.f32.mxu0 0.0
        %2020 = vmatmul.mubr.f32.gmra.mxu0 %v1911
        %v2021 = vpop.f32.mrf.mxu0
        %v2022 = vadd.f32 %v1938, %v2021
        %v2023 = vpop.f32.mrf.mxu0
        %2024 = vmatprep.mubr.f32.mxu0 0.0
        %2025 = vmatmul.mubr.f32.gmra.mxu0 %v1916
        %v2026 = vpop.f32.mrf.mxu0
        %v2027 = vadd.f32 %v1938, %v2026
        %v2028 = vpop.f32.mrf.mxu0
        %2029 = vmatprep.mubr.f32.mxu0 0.0
        %2030 = vmatmul.mubr.f32.gmra.mxu0 %v1921
        %v2031 = vpop.f32.mrf.mxu0
        %v2032 = vadd.f32 %v1938, %v2031
        %v2033 = vpop.f32.mrf.mxu0
        %2034 = vmatprep.mubr.f32.mxu0 0.0
        %2035 = vmatmul.mubr.f32.gmra.mxu0 %v1926
        %v2036 = vpop.f32.mrf.mxu0
        %v2037 = vadd.f32 %v1938, %v2036
        %v2038 = vpop.f32.mrf.mxu0
        %2039 = vmatprep.mubr.f32.mxu0 0.0
        %2040 = vmatmul.mubr.f32.gmra.mxu0 %v1931
        %v2041 = vpop.f32.mrf.mxu0
        %v2042 = vadd.f32 %v1938, %v2041
        %v2043 = vpop.f32.mrf.mxu0
        %2044 = vdwg.mxu0
        %v2045 = vmax.f32 %v2007, 0.0
        %v2046 = vmax.f32 %v2012, 0.0
        %v2047 = vmax.f32 %v2017, 0.0
        %v2048 = vmax.f32 %v2022, 0.0
        %v2049 = vmax.f32 %v2027, 0.0
        %v2050 = vmax.f32 %v2032, 0.0
        %v2051 = vmax.f32 %v2037, 0.0
        %v2052 = vmax.f32 %v2042, 0.0
        %v2053 = vld [vmem:[#allocation17] sm:$0xff]
        %v2054 = vld [vmem:[#allocation17 + $0x8] sm:$0xff]
        %v2055 = vld [vmem:[#allocation17 + $0x10] sm:$0xff]
        %v2056 = vld [vmem:[#allocation17 + $0x18] sm:$0xff]
        %v2057 = vld [vmem:[#allocation17 + $0x20] sm:$0xff]
        %v2058 = vld [vmem:[#allocation17 + $0x28] sm:$0xff]
        %v2059 = vld [vmem:[#allocation17 + $0x30] sm:$0xff]
        %v2060 = vld [vmem:[#allocation17 + $0x38] sm:$0xff]
        %v2061 = vld [vmem:[#allocation17 + $0x40] sm:$0xff]
        %v2062 = vld [vmem:[#allocation17 + $0x48] sm:$0xff]
        %v2063 = vld [vmem:[#allocation17 + $0x50] sm:$0xff]
        %v2064 = vld [vmem:[#allocation17 + $0x58] sm:$0xff]
        %v2065 = vld [vmem:[#allocation17 + $0x60] sm:$0xff]
        %v2066 = vld [vmem:[#allocation17 + $0x68] sm:$0xff]
        %v2067 = vld [vmem:[#allocation17 + $0x70] sm:$0xff]
        %v2068 = vld [vmem:[#allocation17 + $0x78] sm:$0xff]
        %v2069 = vld [vmem:[#allocation17 + $0x80] sm:$0xff]
        %v2070 = vld [vmem:[#allocation17 + $0x88] sm:$0xff]
        %v2071 = vld [vmem:[#allocation17 + $0x90] sm:$0xff]
        %v2072 = vld [vmem:[#allocation17 + $0x98] sm:$0xff]
        %v2073 = vld [vmem:[#allocation17 + $0xa0] sm:$0xff]
        %v2074 = vld [vmem:[#allocation17 + $0xa8] sm:$0xff]
        %v2075 = vld [vmem:[#allocation17 + $0xb0] sm:$0xff]
        %v2076 = vld [vmem:[#allocation17 + $0xb8] sm:$0xff]
        %v2077 = vld [vmem:[#allocation17 + $0xc0] sm:$0xff]
        %v2078 = vld [vmem:[#allocation17 + $0xc8] sm:$0xff]
        %v2079 = vld [vmem:[#allocation17 + $0xd0] sm:$0xff]
        %v2080 = vld [vmem:[#allocation17 + $0xd8] sm:$0xff]
        %v2081 = vld [vmem:[#allocation17 + $0xe0] sm:$0xff]
        %v2082 = vld [vmem:[#allocation17 + $0xe8] sm:$0xff]
        %v2083 = vld [vmem:[#allocation17 + $0xf0] sm:$0xff]
        %v2084 = vld [vmem:[#allocation17 + $0xf8] sm:$0xff]
        %v2085 = vld [vmem:[#allocation19] sm:$0xff]
        %v2086 = vld [vmem:[#allocation19 + $0x8] sm:$0xff]
        %v2087 = vld [vmem:[#allocation19 + $0x10] sm:$0xff]
        %v2088 = vld [vmem:[#allocation19 + $0x18] sm:$0xff]
        %v2089 = vld [vmem:[#allocation19 + $0x20] sm:$0xff]
        %v2090 = vld [vmem:[#allocation19 + $0x28] sm:$0xff]
        %v2091 = vld [vmem:[#allocation19 + $0x30] sm:$0xff]
        %v2092 = vld [vmem:[#allocation19 + $0x38] sm:$0xff]
        %v2093 = vld [vmem:[#allocation19 + $0x40] sm:$0xff]
        %v2094 = vld [vmem:[#allocation19 + $0x48] sm:$0xff]
        %v2095 = vld [vmem:[#allocation19 + $0x50] sm:$0xff]
        %v2096 = vld [vmem:[#allocation19 + $0x58] sm:$0xff]
        %v2097 = vld [vmem:[#allocation19 + $0x60] sm:$0xff]
        %v2098 = vld [vmem:[#allocation19 + $0x68] sm:$0xff]
        %v2099 = vld [vmem:[#allocation19 + $0x70] sm:$0xff]
        %v2100 = vld [vmem:[#allocation19 + $0x78] sm:$0xff]
        %v2101 = vld [vmem:[%s15] sm:$0x1]
        %2102 = vmatprep.subr.mxu0 0.0
        %2103 = vmatpush1.msra.mxu0 %v2068
        %2104 = vmatprep.subr.mxu0 0.0
        %2105 = vmatpush1.msra.mxu0 %v2067
        %2106 = vmatprep.subr.mxu0 0.0
        %2107 = vmatpush1.msra.mxu0 %v2066
        %2108 = vmatprep.subr.mxu0 0.0
        %2109 = vmatpush1.msra.mxu0 %v2065
        %2110 = vmatprep.subr.mxu0 0.0
        %2111 = vmatpush1.msra.mxu0 %v2064
        %2112 = vmatprep.subr.mxu0 0.0
        %2113 = vmatpush1.msra.mxu0 %v2063
        %2114 = vmatprep.subr.mxu0 0.0
        %2115 = vmatpush1.msra.mxu0 %v2062
        %2116 = vmatprep.subr.mxu0 0.0
        %2117 = vmatpush1.msra.mxu0 %v2061
        %2118 = vmatprep.subr.mxu0 0.0
        %2119 = vmatpush1.msra.mxu0 %v2060
        %2120 = vmatprep.subr.mxu0 0.0
        %2121 = vmatpush1.msra.mxu0 %v2059
        %2122 = vmatprep.subr.mxu0 0.0
        %2123 = vmatpush1.msra.mxu0 %v2058
        %2124 = vmatprep.subr.mxu0 0.0
        %2125 = vmatpush1.msra.mxu0 %v2057
        %2126 = vmatprep.subr.mxu0 0.0
        %2127 = vmatpush1.msra.mxu0 %v2056
        %2128 = vmatprep.subr.mxu0 0.0
        %2129 = vmatpush1.msra.mxu0 %v2055
        %2130 = vmatprep.subr.mxu0 0.0
        %2131 = vmatpush1.msra.mxu0 %v2054
        %2132 = vmatprep.subr.mxu0 0.0
        %2133 = vmatpush1.msra.mxu0 %v2053
        %2134 = vmatprep.subr.mxu0 0.0
        %2135 = vmatpush2.msra.mxu0 %v2084
        %2136 = vmatprep.subr.mxu0 0.0
        %2137 = vmatpush2.msra.mxu0 %v2083
        %2138 = vmatprep.subr.mxu0 0.0
        %2139 = vmatpush2.msra.mxu0 %v2082
        %2140 = vmatprep.subr.mxu0 0.0
        %2141 = vmatpush2.msra.mxu0 %v2081
        %2142 = vmatprep.subr.mxu0 0.0
        %2143 = vmatpush2.msra.mxu0 %v2080
        %2144 = vmatprep.subr.mxu0 0.0
        %2145 = vmatpush2.msra.mxu0 %v2079
        %2146 = vmatprep.subr.mxu0 0.0
        %2147 = vmatpush2.msra.mxu0 %v2078
        %2148 = vmatprep.subr.mxu0 0.0
        %2149 = vmatpush2.msra.mxu0 %v2077
        %2150 = vmatprep.subr.mxu0 0.0
        %2151 = vmatpush2.msra.mxu0 %v2076
        %2152 = vmatprep.subr.mxu0 0.0
        %2153 = vmatpush2.msra.mxu0 %v2075
        %2154 = vmatprep.subr.mxu0 0.0
        %2155 = vmatpush2.msra.mxu0 %v2074
        %2156 = vmatprep.subr.mxu0 0.0
        %2157 = vmatpush2.msra.mxu0 %v2073
        %2158 = vmatprep.subr.mxu0 0.0
        %2159 = vmatpush2.msra.mxu0 %v2072
        %2160 = vmatprep.subr.mxu0 0.0
        %2161 = vmatpush2.msra.mxu0 %v2071
        %2162 = vmatprep.subr.mxu0 0.0
        %2163 = vmatpush2.msra.mxu0 %v2070
        %2164 = vmatprep.subr.mxu0 0.0
        %2165 = vmatpush2.msra.mxu0 %v2069
        %2166 = vmatprep.mubr.f32.mxu0 %v1017
        %2167 = vmatmul.mubr.f32.gmra.mxu0 %v2045
        %v2168 = vpop.f32.mrf.mxu0
        %v2169 = vadd.f32 0.0, %v2168
        %v2170 = vpop.f32.mrf.mxu0
        %2171 = vmatprep.mubr.f32.mxu0 %v1018
        %2172 = vmatmul.mubr.f32.gmra.mxu0 %v2046
        %v2173 = vpop.f32.mrf.mxu0
        %v2174 = vadd.f32 0.0, %v2173
        %v2175 = vpop.f32.mrf.mxu0
        %2176 = vmatprep.mubr.f32.mxu0 %v1019
        %2177 = vmatmul.mubr.f32.gmra.mxu0 %v2047
        %v2178 = vpop.f32.mrf.mxu0
        %v2179 = vadd.f32 0.0, %v2178
        %v2180 = vpop.f32.mrf.mxu0
        %2181 = vmatprep.mubr.f32.mxu0 %v1020
        %2182 = vmatmul.mubr.f32.gmra.mxu0 %v2048
        %v2183 = vpop.f32.mrf.mxu0
        %v2184 = vadd.f32 0.0, %v2183
        %v2185 = vpop.f32.mrf.mxu0
        %2186 = vmatprep.mubr.f32.mxu0 %v1021
        %2187 = vmatmul.mubr.f32.gmra.mxu0 %v2049
        %v2188 = vpop.f32.mrf.mxu0
        %v2189 = vadd.f32 0.0, %v2188
        %v2190 = vpop.f32.mrf.mxu0
        %2191 = vmatprep.mubr.f32.mxu0 %v1022
        %2192 = vmatmul.mubr.f32.gmra.mxu0 %v2050
        %v2193 = vpop.f32.mrf.mxu0
        %v2194 = vadd.f32 0.0, %v2193
        %v2195 = vpop.f32.mrf.mxu0
        %2196 = vmatprep.mubr.f32.mxu0 %v1023
        %2197 = vmatmul.mubr.f32.gmra.mxu0 %v2051
        %v2198 = vpop.f32.mrf.mxu0
        %v2199 = vadd.f32 0.0, %v2198
        %v2200 = vpop.f32.mrf.mxu0
        %2201 = vmatprep.mubr.f32.mxu0 %v1024
        %2202 = vmatmul.mubr.f32.gmra.mxu0 %v2052
        %v2203 = vpop.f32.mrf.mxu0
        %v2204 = vadd.f32 0.0, %v2203
        %v2205 = vpop.f32.mrf.mxu0
        %2206 = vdwg.mxu0
        %v2208 = vlaneseq
        %v2209 = vshrl.u32 %v2208, 7
        %v2210 = vsub.s32 0, %v2209
        %v2211 = vrot.slane %v2101, %v2210
        %2213 = vmatprep.subr.mxu0 0.0
        %2214 = vmatpush1.msra.mxu0 %v2100
        %2215 = vmatprep.subr.mxu0 0.0
        %2216 = vmatpush1.msra.mxu0 %v2099
        %2217 = vmatprep.subr.mxu0 0.0
        %2218 = vmatpush1.msra.mxu0 %v2098
        %2219 = vmatprep.subr.mxu0 0.0
        %2220 = vmatpush1.msra.mxu0 %v2097
        %2221 = vmatprep.subr.mxu0 0.0
        %2222 = vmatpush1.msra.mxu0 %v2096
        %2223 = vmatprep.subr.mxu0 0.0
        %2224 = vmatpush1.msra.mxu0 %v2095
        %2225 = vmatprep.subr.mxu0 0.0
        %2226 = vmatpush1.msra.mxu0 %v2094
        %2227 = vmatprep.subr.mxu0 0.0
        %2228 = vmatpush1.msra.mxu0 %v2093
        %2229 = vmatprep.subr.mxu0 0.0
        %2230 = vmatpush1.msra.mxu0 %v2092
        %2231 = vmatprep.subr.mxu0 0.0
        %2232 = vmatpush1.msra.mxu0 %v2091
        %2233 = vmatprep.subr.mxu0 0.0
        %2234 = vmatpush1.msra.mxu0 %v2090
        %2235 = vmatprep.subr.mxu0 0.0
        %2236 = vmatpush1.msra.mxu0 %v2089
        %2237 = vmatprep.subr.mxu0 0.0
        %2238 = vmatpush1.msra.mxu0 %v2088
        %2239 = vmatprep.subr.mxu0 0.0
        %2240 = vmatpush1.msra.mxu0 %v2087
        %2241 = vmatprep.subr.mxu0 0.0
        %2242 = vmatpush1.msra.mxu0 %v2086
        %2243 = vmatprep.subr.mxu0 0.0
        %2244 = vmatpush1.msra.mxu0 %v2085
        %2245 = vmatprep.subr.mxu0 0.0
        %2246 = vmatpush2.msra.mxu0 0.0
        %2247 = vmatprep.subr.mxu0 0.0
        %2248 = vmatpush2.msra.mxu0 0.0
        %2249 = vmatprep.subr.mxu0 0.0
        %2250 = vmatpush2.msra.mxu0 0.0
        %2251 = vmatprep.subr.mxu0 0.0
        %2252 = vmatpush2.msra.mxu0 0.0
        %2253 = vmatprep.subr.mxu0 0.0
        %2254 = vmatpush2.msra.mxu0 0.0
        %2255 = vmatprep.subr.mxu0 0.0
        %2256 = vmatpush2.msra.mxu0 0.0
        %2257 = vmatprep.subr.mxu0 0.0
        %2258 = vmatpush2.msra.mxu0 0.0
        %2259 = vmatprep.subr.mxu0 0.0
        %2260 = vmatpush2.msra.mxu0 0.0
        %2261 = vmatprep.subr.mxu0 0.0
        %2262 = vmatpush2.msra.mxu0 0.0
        %2263 = vmatprep.subr.mxu0 0.0
        %2264 = vmatpush2.msra.mxu0 0.0
        %2265 = vmatprep.subr.mxu0 0.0
        %2266 = vmatpush2.msra.mxu0 0.0
        %2267 = vmatprep.subr.mxu0 0.0
        %2268 = vmatpush2.msra.mxu0 0.0
        %2269 = vmatprep.subr.mxu0 0.0
        %2270 = vmatpush2.msra.mxu0 0.0
        %2271 = vmatprep.subr.mxu0 0.0
        %2272 = vmatpush2.msra.mxu0 0.0
        %2273 = vmatprep.subr.mxu0 0.0
        %2274 = vmatpush2.msra.mxu0 0.0
        %2275 = vmatprep.subr.mxu0 0.0
        %2276 = vmatpush2.msra.mxu0 0.0
        %2277 = vmatprep.mubr.f32.mxu0 0.0
        %2278 = vmatmul.mubr.f32.gmra.mxu0 %v2169
        %v2279 = vpop.f32.mrf.mxu0
        %v2280 = vadd.f32 %v2211, %v2279
        %v2281 = vpop.f32.mrf.mxu0
        %2282 = vmatprep.mubr.f32.mxu0 0.0
        %2283 = vmatmul.mubr.f32.gmra.mxu0 %v2174
        %v2284 = vpop.f32.mrf.mxu0
        %v2285 = vadd.f32 %v2211, %v2284
        %v2286 = vpop.f32.mrf.mxu0
        %2287 = vmatprep.mubr.f32.mxu0 0.0
        %2288 = vmatmul.mubr.f32.gmra.mxu0 %v2179
        %v2289 = vpop.f32.mrf.mxu0
        %v2290 = vadd.f32 %v2211, %v2289
        %v2291 = vpop.f32.mrf.mxu0
        %2292 = vmatprep.mubr.f32.mxu0 0.0
        %2293 = vmatmul.mubr.f32.gmra.mxu0 %v2184
        %v2294 = vpop.f32.mrf.mxu0
        %v2295 = vadd.f32 %v2211, %v2294
        %v2296 = vpop.f32.mrf.mxu0
        %2297 = vmatprep.mubr.f32.mxu0 0.0
        %2298 = vmatmul.mubr.f32.gmra.mxu0 %v2189
        %v2299 = vpop.f32.mrf.mxu0
        %v2300 = vadd.f32 %v2211, %v2299
        %v2301 = vpop.f32.mrf.mxu0
        %2302 = vmatprep.mubr.f32.mxu0 0.0
        %2303 = vmatmul.mubr.f32.gmra.mxu0 %v2194
        %v2304 = vpop.f32.mrf.mxu0
        %v2305 = vadd.f32 %v2211, %v2304
        %v2306 = vpop.f32.mrf.mxu0
        %2307 = vmatprep.mubr.f32.mxu0 0.0
        %2308 = vmatmul.mubr.f32.gmra.mxu0 %v2199
        %v2309 = vpop.f32.mrf.mxu0
        %v2310 = vadd.f32 %v2211, %v2309
        %v2311 = vpop.f32.mrf.mxu0
        %2312 = vmatprep.mubr.f32.mxu0 0.0
        %2313 = vmatmul.mubr.f32.gmra.mxu0 %v2204
        %v2314 = vpop.f32.mrf.mxu0
        %v2315 = vadd.f32 %v2211, %v2314
        %v2316 = vpop.f32.mrf.mxu0
        %2317 = vdwg.mxu0
        %v2318 = vmax.f32 %v2280, 0.0
        %v2319 = vmax.f32 %v2285, 0.0
        %v2320 = vmax.f32 %v2290, 0.0
        %v2321 = vmax.f32 %v2295, 0.0
        %v2322 = vmax.f32 %v2300, 0.0
        %v2323 = vmax.f32 %v2305, 0.0
        %v2324 = vmax.f32 %v2310, 0.0
        %v2325 = vmax.f32 %v2315, 0.0
        %v2326 = vld [vmem:[#allocation20] sm:$0xff]
        %v2327 = vld [vmem:[#allocation20 + $0x8] sm:$0xff]
        %v2328 = vld [vmem:[#allocation20 + $0x10] sm:$0xff]
        %v2329 = vld [vmem:[#allocation20 + $0x18] sm:$0xff]
        %v2330 = vld [vmem:[#allocation20 + $0x20] sm:$0xff]
        %v2331 = vld [vmem:[#allocation20 + $0x28] sm:$0xff]
        %v2332 = vld [vmem:[#allocation20 + $0x30] sm:$0xff]
        %v2333 = vld [vmem:[#allocation20 + $0x38] sm:$0xff]
        %v2334 = vld [vmem:[#allocation20 + $0x40] sm:$0xff]
        %v2335 = vld [vmem:[#allocation20 + $0x48] sm:$0xff]
        %v2336 = vld [vmem:[#allocation20 + $0x50] sm:$0xff]
        %v2337 = vld [vmem:[#allocation20 + $0x58] sm:$0xff]
        %v2338 = vld [vmem:[#allocation20 + $0x60] sm:$0xff]
        %v2339 = vld [vmem:[#allocation20 + $0x68] sm:$0xff]
        %v2340 = vld [vmem:[#allocation20 + $0x70] sm:$0xff]
        %v2341 = vld [vmem:[#allocation20 + $0x78] sm:$0xff]
        %v2342 = vld [vmem:[#allocation22] sm:$0xff]
        %v2343 = vld [vmem:[#allocation22 + $0x8] sm:$0xff]
        %v2344 = vld [vmem:[#allocation22 + $0x10] sm:$0xff]
        %v2345 = vld [vmem:[#allocation22 + $0x18] sm:$0xff]
        %v2346 = vld [vmem:[#allocation22 + $0x20] sm:$0xff]
        %v2347 = vld [vmem:[#allocation22 + $0x28] sm:$0xff]
        %v2348 = vld [vmem:[#allocation22 + $0x30] sm:$0xff]
        %v2349 = vld [vmem:[#allocation22 + $0x38] sm:$0xff]
        %v2350 = vld [vmem:[#allocation22 + $0x40] sm:$0xff]
        %v2351 = vld [vmem:[#allocation22 + $0x48] sm:$0xff]
        %v2352 = vld [vmem:[#allocation22 + $0x50] sm:$0xff]
        %v2353 = vld [vmem:[#allocation22 + $0x58] sm:$0xff]
        %v2354 = vld [vmem:[#allocation22 + $0x60] sm:$0xff]
        %v2355 = vld [vmem:[#allocation22 + $0x68] sm:$0xff]
        %v2356 = vld [vmem:[#allocation22 + $0x70] sm:$0xff]
        %v2357 = vld [vmem:[#allocation22 + $0x78] sm:$0xff]
        %v2358 = vld [vmem:[%s18] sm:$0x1]
        %2359 = vmatprep.subr.mxu0 0.0
        %2360 = vmatpush1.msra.mxu0 %v2341
        %2361 = vmatprep.subr.mxu0 0.0
        %2362 = vmatpush1.msra.mxu0 %v2340
        %2363 = vmatprep.subr.mxu0 0.0
        %2364 = vmatpush1.msra.mxu0 %v2339
        %2365 = vmatprep.subr.mxu0 0.0
        %2366 = vmatpush1.msra.mxu0 %v2338
        %2367 = vmatprep.subr.mxu0 0.0
        %2368 = vmatpush1.msra.mxu0 %v2337
        %2369 = vmatprep.subr.mxu0 0.0
        %2370 = vmatpush1.msra.mxu0 %v2336
        %2371 = vmatprep.subr.mxu0 0.0
        %2372 = vmatpush1.msra.mxu0 %v2335
        %2373 = vmatprep.subr.mxu0 0.0
        %2374 = vmatpush1.msra.mxu0 %v2334
        %2375 = vmatprep.subr.mxu0 0.0
        %2376 = vmatpush1.msra.mxu0 %v2333
        %2377 = vmatprep.subr.mxu0 0.0
        %2378 = vmatpush1.msra.mxu0 %v2332
        %2379 = vmatprep.subr.mxu0 0.0
        %2380 = vmatpush1.msra.mxu0 %v2331
        %2381 = vmatprep.subr.mxu0 0.0
        %2382 = vmatpush1.msra.mxu0 %v2330
        %2383 = vmatprep.subr.mxu0 0.0
        %2384 = vmatpush1.msra.mxu0 %v2329
        %2385 = vmatprep.subr.mxu0 0.0
        %2386 = vmatpush1.msra.mxu0 %v2328
        %2387 = vmatprep.subr.mxu0 0.0
        %2388 = vmatpush1.msra.mxu0 %v2327
        %2389 = vmatprep.subr.mxu0 0.0
        %2390 = vmatpush1.msra.mxu0 %v2326
        %2391 = vmatprep.subr.mxu0 0.0
        %2392 = vmatpush2.msra.mxu0 0.0
        %2393 = vmatprep.subr.mxu0 0.0
        %2394 = vmatpush2.msra.mxu0 0.0
        %2395 = vmatprep.subr.mxu0 0.0
        %2396 = vmatpush2.msra.mxu0 0.0
        %2397 = vmatprep.subr.mxu0 0.0
        %2398 = vmatpush2.msra.mxu0 0.0
        %2399 = vmatprep.subr.mxu0 0.0
        %2400 = vmatpush2.msra.mxu0 0.0
        %2401 = vmatprep.subr.mxu0 0.0
        %2402 = vmatpush2.msra.mxu0 0.0
        %2403 = vmatprep.subr.mxu0 0.0
        %2404 = vmatpush2.msra.mxu0 0.0
        %2405 = vmatprep.subr.mxu0 0.0
        %2406 = vmatpush2.msra.mxu0 0.0
        %2407 = vmatprep.subr.mxu0 0.0
        %2408 = vmatpush2.msra.mxu0 0.0
        %2409 = vmatprep.subr.mxu0 0.0
        %2410 = vmatpush2.msra.mxu0 0.0
        %2411 = vmatprep.subr.mxu0 0.0
        %2412 = vmatpush2.msra.mxu0 0.0
        %2413 = vmatprep.subr.mxu0 0.0
        %2414 = vmatpush2.msra.mxu0 0.0
        %2415 = vmatprep.subr.mxu0 0.0
        %2416 = vmatpush2.msra.mxu0 0.0
        %2417 = vmatprep.subr.mxu0 0.0
        %2418 = vmatpush2.msra.mxu0 0.0
        %2419 = vmatprep.subr.mxu0 0.0
        %2420 = vmatpush2.msra.mxu0 0.0
        %2421 = vmatprep.subr.mxu0 0.0
        %2422 = vmatpush2.msra.mxu0 0.0
        %2423 = vmatprep.mubr.f32.mxu0 0.0
        %2424 = vmatmul.mubr.f32.gmra.mxu0 %v2318
        %v2425 = vpop.f32.mrf.mxu0
        %v2426 = vadd.f32 0.0, %v2425
        %v2427 = vpop.f32.mrf.mxu0
        %2428 = vmatprep.mubr.f32.mxu0 0.0
        %2429 = vmatmul.mubr.f32.gmra.mxu0 %v2319
        %v2430 = vpop.f32.mrf.mxu0
        %v2431 = vadd.f32 0.0, %v2430
        %v2432 = vpop.f32.mrf.mxu0
        %2433 = vmatprep.mubr.f32.mxu0 0.0
        %2434 = vmatmul.mubr.f32.gmra.mxu0 %v2320
        %v2435 = vpop.f32.mrf.mxu0
        %v2436 = vadd.f32 0.0, %v2435
        %v2437 = vpop.f32.mrf.mxu0
        %2438 = vmatprep.mubr.f32.mxu0 0.0
        %2439 = vmatmul.mubr.f32.gmra.mxu0 %v2321
        %v2440 = vpop.f32.mrf.mxu0
        %v2441 = vadd.f32 0.0, %v2440
        %v2442 = vpop.f32.mrf.mxu0
        %2443 = vmatprep.mubr.f32.mxu0 0.0
        %2444 = vmatmul.mubr.f32.gmra.mxu0 %v2322
        %v2445 = vpop.f32.mrf.mxu0
        %v2446 = vadd.f32 0.0, %v2445
        %v2447 = vpop.f32.mrf.mxu0
        %2448 = vmatprep.mubr.f32.mxu0 0.0
        %2449 = vmatmul.mubr.f32.gmra.mxu0 %v2323
        %v2450 = vpop.f32.mrf.mxu0
        %v2451 = vadd.f32 0.0, %v2450
        %v2452 = vpop.f32.mrf.mxu0
        %2453 = vmatprep.mubr.f32.mxu0 0.0
        %2454 = vmatmul.mubr.f32.gmra.mxu0 %v2324
        %v2455 = vpop.f32.mrf.mxu0
        %v2456 = vadd.f32 0.0, %v2455
        %v2457 = vpop.f32.mrf.mxu0
        %2458 = vmatprep.mubr.f32.mxu0 0.0
        %2459 = vmatmul.mubr.f32.gmra.mxu0 %v2325
        %v2460 = vpop.f32.mrf.mxu0
        %v2461 = vadd.f32 0.0, %v2460
        %v2462 = vpop.f32.mrf.mxu0
        %2463 = vdwg.mxu0
        %v2465 = vlaneseq
        %v2466 = vshrl.u32 %v2465, 7
        %v2467 = vsub.s32 0, %v2466
        %v2468 = vrot.slane %v2358, %v2467
        %2470 = vmatprep.subr.mxu0 0.0
        %2471 = vmatpush1.msra.mxu0 %v2357
        %2472 = vmatprep.subr.mxu0 0.0
        %2473 = vmatpush1.msra.mxu0 %v2356
        %2474 = vmatprep.subr.mxu0 0.0
        %2475 = vmatpush1.msra.mxu0 %v2355
        %2476 = vmatprep.subr.mxu0 0.0
        %2477 = vmatpush1.msra.mxu0 %v2354
        %2478 = vmatprep.subr.mxu0 0.0
        %2479 = vmatpush1.msra.mxu0 %v2353
        %2480 = vmatprep.subr.mxu0 0.0
        %2481 = vmatpush1.msra.mxu0 %v2352
        %2482 = vmatprep.subr.mxu0 0.0
        %2483 = vmatpush1.msra.mxu0 %v2351
        %2484 = vmatprep.subr.mxu0 0.0
        %2485 = vmatpush1.msra.mxu0 %v2350
        %2486 = vmatprep.subr.mxu0 0.0
        %2487 = vmatpush1.msra.mxu0 %v2349
        %2488 = vmatprep.subr.mxu0 0.0
        %2489 = vmatpush1.msra.mxu0 %v2348
        %2490 = vmatprep.subr.mxu0 0.0
        %2491 = vmatpush1.msra.mxu0 %v2347
        %2492 = vmatprep.subr.mxu0 0.0
        %2493 = vmatpush1.msra.mxu0 %v2346
        %2494 = vmatprep.subr.mxu0 0.0
        %2495 = vmatpush1.msra.mxu0 %v2345
        %2496 = vmatprep.subr.mxu0 0.0
        %2497 = vmatpush1.msra.mxu0 %v2344
        %2498 = vmatprep.subr.mxu0 0.0
        %2499 = vmatpush1.msra.mxu0 %v2343
        %2500 = vmatprep.subr.mxu0 0.0
        %2501 = vmatpush1.msra.mxu0 %v2342
        %2502 = vmatprep.subr.mxu0 0.0
        %2503 = vmatpush2.msra.mxu0 0.0
        %2504 = vmatprep.subr.mxu0 0.0
        %2505 = vmatpush2.msra.mxu0 0.0
        %2506 = vmatprep.subr.mxu0 0.0
        %2507 = vmatpush2.msra.mxu0 0.0
        %2508 = vmatprep.subr.mxu0 0.0
        %2509 = vmatpush2.msra.mxu0 0.0
        %2510 = vmatprep.subr.mxu0 0.0
        %2511 = vmatpush2.msra.mxu0 0.0
        %2512 = vmatprep.subr.mxu0 0.0
        %2513 = vmatpush2.msra.mxu0 0.0
        %2514 = vmatprep.subr.mxu0 0.0
        %2515 = vmatpush2.msra.mxu0 0.0
        %2516 = vmatprep.subr.mxu0 0.0
        %2517 = vmatpush2.msra.mxu0 0.0
        %2518 = vmatprep.subr.mxu0 0.0
        %2519 = vmatpush2.msra.mxu0 0.0
        %2520 = vmatprep.subr.mxu0 0.0
        %2521 = vmatpush2.msra.mxu0 0.0
        %2522 = vmatprep.subr.mxu0 0.0
        %2523 = vmatpush2.msra.mxu0 0.0
        %2524 = vmatprep.subr.mxu0 0.0
        %2525 = vmatpush2.msra.mxu0 0.0
        %2526 = vmatprep.subr.mxu0 0.0
        %2527 = vmatpush2.msra.mxu0 0.0
        %2528 = vmatprep.subr.mxu0 0.0
        %2529 = vmatpush2.msra.mxu0 0.0
        %2530 = vmatprep.subr.mxu0 0.0
        %2531 = vmatpush2.msra.mxu0 0.0
        %2532 = vmatprep.subr.mxu0 0.0
        %2533 = vmatpush2.msra.mxu0 0.0
        %2534 = vmatprep.mubr.f32.mxu0 0.0
        %2535 = vmatmul.mubr.f32.gmra.mxu0 %v2426
        %v2536 = vpop.f32.mrf.mxu0
        %v2537 = vadd.f32 %v2468, %v2536
        %v2538 = vpop.f32.mrf.mxu0
        %2539 = vmatprep.mubr.f32.mxu0 0.0
        %2540 = vmatmul.mubr.f32.gmra.mxu0 %v2431
        %v2541 = vpop.f32.mrf.mxu0
        %v2542 = vadd.f32 %v2468, %v2541
        %v2543 = vpop.f32.mrf.mxu0
        %2544 = vmatprep.mubr.f32.mxu0 0.0
        %2545 = vmatmul.mubr.f32.gmra.mxu0 %v2436
        %v2546 = vpop.f32.mrf.mxu0
        %v2547 = vadd.f32 %v2468, %v2546
        %v2548 = vpop.f32.mrf.mxu0
        %2549 = vmatprep.mubr.f32.mxu0 0.0
        %2550 = vmatmul.mubr.f32.gmra.mxu0 %v2441
        %v2551 = vpop.f32.mrf.mxu0
        %v2552 = vadd.f32 %v2468, %v2551
        %v2553 = vpop.f32.mrf.mxu0
        %2554 = vmatprep.mubr.f32.mxu0 0.0
        %2555 = vmatmul.mubr.f32.gmra.mxu0 %v2446
        %v2556 = vpop.f32.mrf.mxu0
        %v2557 = vadd.f32 %v2468, %v2556
        %v2558 = vpop.f32.mrf.mxu0
        %2559 = vmatprep.mubr.f32.mxu0 0.0
        %2560 = vmatmul.mubr.f32.gmra.mxu0 %v2451
        %v2561 = vpop.f32.mrf.mxu0
        %v2562 = vadd.f32 %v2468, %v2561
        %v2563 = vpop.f32.mrf.mxu0
        %2564 = vmatprep.mubr.f32.mxu0 0.0
        %2565 = vmatmul.mubr.f32.gmra.mxu0 %v2456
        %v2566 = vpop.f32.mrf.mxu0
        %v2567 = vadd.f32 %v2468, %v2566
        %v2568 = vpop.f32.mrf.mxu0
        %2569 = vmatprep.mubr.f32.mxu0 0.0
        %2570 = vmatmul.mubr.f32.gmra.mxu0 %v2461
        %v2571 = vpop.f32.mrf.mxu0
        %v2572 = vadd.f32 %v2468, %v2571
        %v2573 = vpop.f32.mrf.mxu0
        %2574 = vdwg.mxu0
        %v2575 = vmax.f32 %v2537, 0.0
        %v2576 = vmax.f32 %v2542, 0.0
        %v2577 = vmax.f32 %v2547, 0.0
        %v2578 = vmax.f32 %v2552, 0.0
        %v2579 = vmax.f32 %v2557, 0.0
        %v2580 = vmax.f32 %v2562, 0.0
        %v2581 = vmax.f32 %v2567, 0.0
        %v2582 = vmax.f32 %v2572, 0.0
        %v2583 = vld [vmem:[#allocation23] sm:$0xff]
        %v2584 = vld [vmem:[#allocation23 + $0x8] sm:$0xff]
        %v2585 = vld [vmem:[#allocation23 + $0x10] sm:$0xff]
        %v2586 = vld [vmem:[#allocation23 + $0x18] sm:$0xff]
        %v2587 = vld [vmem:[#allocation23 + $0x20] sm:$0xff]
        %v2588 = vld [vmem:[#allocation23 + $0x28] sm:$0xff]
        %v2589 = vld [vmem:[#allocation23 + $0x30] sm:$0xff]
        %v2590 = vld [vmem:[#allocation23 + $0x38] sm:$0xff]
        %v2591 = vld [vmem:[#allocation23 + $0x40] sm:$0xff]
        %v2592 = vld [vmem:[#allocation23 + $0x48] sm:$0xff]
        %v2593 = vld [vmem:[#allocation23 + $0x50] sm:$0xff]
        %v2594 = vld [vmem:[#allocation23 + $0x58] sm:$0xff]
        %v2595 = vld [vmem:[#allocation23 + $0x60] sm:$0xff]
        %v2596 = vld [vmem:[#allocation23 + $0x68] sm:$0xff]
        %v2597 = vld [vmem:[#allocation23 + $0x70] sm:$0xff]
        %v2598 = vld [vmem:[#allocation23 + $0x78] sm:$0xff]
        %v2599 = vld [vmem:[#allocation25] sm:$0xff]
        %v2600 = vld [vmem:[#allocation25 + $0x8] sm:$0xff]
        %v2601 = vld [vmem:[#allocation25 + $0x10] sm:$0xff]
        %v2602 = vld [vmem:[#allocation25 + $0x18] sm:$0xff]
        %v2603 = vld [vmem:[#allocation25 + $0x20] sm:$0xff]
        %v2604 = vld [vmem:[#allocation25 + $0x28] sm:$0xff]
        %v2605 = vld [vmem:[#allocation25 + $0x30] sm:$0xff]
        %v2606 = vld [vmem:[#allocation25 + $0x38] sm:$0xff]
        %v2607 = vld [vmem:[#allocation25 + $0x40] sm:$0xff]
        %v2608 = vld [vmem:[#allocation25 + $0x48] sm:$0xff]
        %v2609 = vld [vmem:[#allocation25 + $0x50] sm:$0xff]
        %v2610 = vld [vmem:[#allocation25 + $0x58] sm:$0xff]
        %v2611 = vld [vmem:[#allocation25 + $0x60] sm:$0xff]
        %v2612 = vld [vmem:[#allocation25 + $0x68] sm:$0xff]
        %v2613 = vld [vmem:[#allocation25 + $0x70] sm:$0xff]
        %v2614 = vld [vmem:[#allocation25 + $0x78] sm:$0xff]
        %v2615 = vld [vmem:[%s21] sm:$0x1]
        %2616 = vmatprep.subr.mxu0 0.0
        %2617 = vmatpush1.msra.mxu0 %v2598
        %2618 = vmatprep.subr.mxu0 0.0
        %2619 = vmatpush1.msra.mxu0 %v2597
        %2620 = vmatprep.subr.mxu0 0.0
        %2621 = vmatpush1.msra.mxu0 %v2596
        %2622 = vmatprep.subr.mxu0 0.0
        %2623 = vmatpush1.msra.mxu0 %v2595
        %2624 = vmatprep.subr.mxu0 0.0
        %2625 = vmatpush1.msra.mxu0 %v2594
        %2626 = vmatprep.subr.mxu0 0.0
        %2627 = vmatpush1.msra.mxu0 %v2593
        %2628 = vmatprep.subr.mxu0 0.0
        %2629 = vmatpush1.msra.mxu0 %v2592
        %2630 = vmatprep.subr.mxu0 0.0
        %2631 = vmatpush1.msra.mxu0 %v2591
        %2632 = vmatprep.subr.mxu0 0.0
        %2633 = vmatpush1.msra.mxu0 %v2590
        %2634 = vmatprep.subr.mxu0 0.0
        %2635 = vmatpush1.msra.mxu0 %v2589
        %2636 = vmatprep.subr.mxu0 0.0
        %2637 = vmatpush1.msra.mxu0 %v2588
        %2638 = vmatprep.subr.mxu0 0.0
        %2639 = vmatpush1.msra.mxu0 %v2587
        %2640 = vmatprep.subr.mxu0 0.0
        %2641 = vmatpush1.msra.mxu0 %v2586
        %2642 = vmatprep.subr.mxu0 0.0
        %2643 = vmatpush1.msra.mxu0 %v2585
        %2644 = vmatprep.subr.mxu0 0.0
        %2645 = vmatpush1.msra.mxu0 %v2584
        %2646 = vmatprep.subr.mxu0 0.0
        %2647 = vmatpush1.msra.mxu0 %v2583
        %2648 = vmatprep.subr.mxu0 0.0
        %2649 = vmatpush2.msra.mxu0 0.0
        %2650 = vmatprep.subr.mxu0 0.0
        %2651 = vmatpush2.msra.mxu0 0.0
        %2652 = vmatprep.subr.mxu0 0.0
        %2653 = vmatpush2.msra.mxu0 0.0
        %2654 = vmatprep.subr.mxu0 0.0
        %2655 = vmatpush2.msra.mxu0 0.0
        %2656 = vmatprep.subr.mxu0 0.0
        %2657 = vmatpush2.msra.mxu0 0.0
        %2658 = vmatprep.subr.mxu0 0.0
        %2659 = vmatpush2.msra.mxu0 0.0
        %2660 = vmatprep.subr.mxu0 0.0
        %2661 = vmatpush2.msra.mxu0 0.0
        %2662 = vmatprep.subr.mxu0 0.0
        %2663 = vmatpush2.msra.mxu0 0.0
        %2664 = vmatprep.subr.mxu0 0.0
        %2665 = vmatpush2.msra.mxu0 0.0
        %2666 = vmatprep.subr.mxu0 0.0
        %2667 = vmatpush2.msra.mxu0 0.0
        %2668 = vmatprep.subr.mxu0 0.0
        %2669 = vmatpush2.msra.mxu0 0.0
        %2670 = vmatprep.subr.mxu0 0.0
        %2671 = vmatpush2.msra.mxu0 0.0
        %2672 = vmatprep.subr.mxu0 0.0
        %2673 = vmatpush2.msra.mxu0 0.0
        %2674 = vmatprep.subr.mxu0 0.0
        %2675 = vmatpush2.msra.mxu0 0.0
        %2676 = vmatprep.subr.mxu0 0.0
        %2677 = vmatpush2.msra.mxu0 0.0
        %2678 = vmatprep.subr.mxu0 0.0
        %2679 = vmatpush2.msra.mxu0 0.0
        %2680 = vmatprep.mubr.f32.mxu0 0.0
        %2681 = vmatmul.mubr.f32.gmra.mxu0 %v2575
        %v2682 = vpop.f32.mrf.mxu0
        %v2683 = vadd.f32 0.0, %v2682
        %v2684 = vpop.f32.mrf.mxu0
        %2685 = vmatprep.mubr.f32.mxu0 0.0
        %2686 = vmatmul.mubr.f32.gmra.mxu0 %v2576
        %v2687 = vpop.f32.mrf.mxu0
        %v2688 = vadd.f32 0.0, %v2687
        %v2689 = vpop.f32.mrf.mxu0
        %2690 = vmatprep.mubr.f32.mxu0 0.0
        %2691 = vmatmul.mubr.f32.gmra.mxu0 %v2577
        %v2692 = vpop.f32.mrf.mxu0
        %v2693 = vadd.f32 0.0, %v2692
        %v2694 = vpop.f32.mrf.mxu0
        %2695 = vmatprep.mubr.f32.mxu0 0.0
        %2696 = vmatmul.mubr.f32.gmra.mxu0 %v2578
        %v2697 = vpop.f32.mrf.mxu0
        %v2698 = vadd.f32 0.0, %v2697
        %v2699 = vpop.f32.mrf.mxu0
        %2700 = vmatprep.mubr.f32.mxu0 0.0
        %2701 = vmatmul.mubr.f32.gmra.mxu0 %v2579
        %v2702 = vpop.f32.mrf.mxu0
        %v2703 = vadd.f32 0.0, %v2702
        %v2704 = vpop.f32.mrf.mxu0
        %2705 = vmatprep.mubr.f32.mxu0 0.0
        %2706 = vmatmul.mubr.f32.gmra.mxu0 %v2580
        %v2707 = vpop.f32.mrf.mxu0
        %v2708 = vadd.f32 0.0, %v2707
        %v2709 = vpop.f32.mrf.mxu0
        %2710 = vmatprep.mubr.f32.mxu0 0.0
        %2711 = vmatmul.mubr.f32.gmra.mxu0 %v2581
        %v2712 = vpop.f32.mrf.mxu0
        %v2713 = vadd.f32 0.0, %v2712
        %v2714 = vpop.f32.mrf.mxu0
        %2715 = vmatprep.mubr.f32.mxu0 0.0
        %2716 = vmatmul.mubr.f32.gmra.mxu0 %v2582
        %v2717 = vpop.f32.mrf.mxu0
        %v2718 = vadd.f32 0.0, %v2717
        %v2719 = vpop.f32.mrf.mxu0
        %2720 = vdwg.mxu0
        %v2722 = vlaneseq
        %v2723 = vshrl.u32 %v2722, 7
        %v2724 = vsub.s32 0, %v2723
        %v2725 = vrot.slane %v2615, %v2724
        %2727 = vmatprep.subr.mxu0 0.0
        %2728 = vmatpush1.msra.mxu0 %v2614
        %2729 = vmatprep.subr.mxu0 0.0
        %2730 = vmatpush1.msra.mxu0 %v2613
        %2731 = vmatprep.subr.mxu0 0.0
        %2732 = vmatpush1.msra.mxu0 %v2612
        %2733 = vmatprep.subr.mxu0 0.0
        %2734 = vmatpush1.msra.mxu0 %v2611
        %2735 = vmatprep.subr.mxu0 0.0
        %2736 = vmatpush1.msra.mxu0 %v2610
        %2737 = vmatprep.subr.mxu0 0.0
        %2738 = vmatpush1.msra.mxu0 %v2609
        %2739 = vmatprep.subr.mxu0 0.0
        %2740 = vmatpush1.msra.mxu0 %v2608
        %2741 = vmatprep.subr.mxu0 0.0
        %2742 = vmatpush1.msra.mxu0 %v2607
        %2743 = vmatprep.subr.mxu0 0.0
        %2744 = vmatpush1.msra.mxu0 %v2606
        %2745 = vmatprep.subr.mxu0 0.0
        %2746 = vmatpush1.msra.mxu0 %v2605
        %2747 = vmatprep.subr.mxu0 0.0
        %2748 = vmatpush1.msra.mxu0 %v2604
        %2749 = vmatprep.subr.mxu0 0.0
        %2750 = vmatpush1.msra.mxu0 %v2603
        %2751 = vmatprep.subr.mxu0 0.0
        %2752 = vmatpush1.msra.mxu0 %v2602
        %2753 = vmatprep.subr.mxu0 0.0
        %2754 = vmatpush1.msra.mxu0 %v2601
        %2755 = vmatprep.subr.mxu0 0.0
        %2756 = vmatpush1.msra.mxu0 %v2600
        %2757 = vmatprep.subr.mxu0 0.0
        %2758 = vmatpush1.msra.mxu0 %v2599
        %2759 = vmatprep.subr.mxu0 0.0
        %2760 = vmatpush2.msra.mxu0 0.0
        %2761 = vmatprep.subr.mxu0 0.0
        %2762 = vmatpush2.msra.mxu0 0.0
        %2763 = vmatprep.subr.mxu0 0.0
        %2764 = vmatpush2.msra.mxu0 0.0
        %2765 = vmatprep.subr.mxu0 0.0
        %2766 = vmatpush2.msra.mxu0 0.0
        %2767 = vmatprep.subr.mxu0 0.0
        %2768 = vmatpush2.msra.mxu0 0.0
        %2769 = vmatprep.subr.mxu0 0.0
        %2770 = vmatpush2.msra.mxu0 0.0
        %2771 = vmatprep.subr.mxu0 0.0
        %2772 = vmatpush2.msra.mxu0 0.0
        %2773 = vmatprep.subr.mxu0 0.0
        %2774 = vmatpush2.msra.mxu0 0.0
        %2775 = vmatprep.subr.mxu0 0.0
        %2776 = vmatpush2.msra.mxu0 0.0
        %2777 = vmatprep.subr.mxu0 0.0
        %2778 = vmatpush2.msra.mxu0 0.0
        %2779 = vmatprep.subr.mxu0 0.0
        %2780 = vmatpush2.msra.mxu0 0.0
        %2781 = vmatprep.subr.mxu0 0.0
        %2782 = vmatpush2.msra.mxu0 0.0
        %2783 = vmatprep.subr.mxu0 0.0
        %2784 = vmatpush2.msra.mxu0 0.0
        %2785 = vmatprep.subr.mxu0 0.0
        %2786 = vmatpush2.msra.mxu0 0.0
        %2787 = vmatprep.subr.mxu0 0.0
        %2788 = vmatpush2.msra.mxu0 0.0
        %2789 = vmatprep.subr.mxu0 0.0
        %2790 = vmatpush2.msra.mxu0 0.0
        %2791 = vmatprep.mubr.f32.mxu0 0.0
        %2792 = vmatmul.mubr.f32.gmra.mxu0 %v2683
        %v2793 = vpop.f32.mrf.mxu0
        %v2794 = vadd.f32 %v2725, %v2793
        %v2795 = vpop.f32.mrf.mxu0
        %2796 = vmatprep.mubr.f32.mxu0 0.0
        %2797 = vmatmul.mubr.f32.gmra.mxu0 %v2688
        %v2798 = vpop.f32.mrf.mxu0
        %v2799 = vadd.f32 %v2725, %v2798
        %v2800 = vpop.f32.mrf.mxu0
        %2801 = vmatprep.mubr.f32.mxu0 0.0
        %2802 = vmatmul.mubr.f32.gmra.mxu0 %v2693
        %v2803 = vpop.f32.mrf.mxu0
        %v2804 = vadd.f32 %v2725, %v2803
        %v2805 = vpop.f32.mrf.mxu0
        %2806 = vmatprep.mubr.f32.mxu0 0.0
        %2807 = vmatmul.mubr.f32.gmra.mxu0 %v2698
        %v2808 = vpop.f32.mrf.mxu0
        %v2809 = vadd.f32 %v2725, %v2808
        %v2810 = vpop.f32.mrf.mxu0
        %2811 = vmatprep.mubr.f32.mxu0 0.0
        %2812 = vmatmul.mubr.f32.gmra.mxu0 %v2703
        %v2813 = vpop.f32.mrf.mxu0
        %v2814 = vadd.f32 %v2725, %v2813
        %v2815 = vpop.f32.mrf.mxu0
        %2816 = vmatprep.mubr.f32.mxu0 0.0
        %2817 = vmatmul.mubr.f32.gmra.mxu0 %v2708
        %v2818 = vpop.f32.mrf.mxu0
        %v2819 = vadd.f32 %v2725, %v2818
        %v2820 = vpop.f32.mrf.mxu0
        %2821 = vmatprep.mubr.f32.mxu0 0.0
        %2822 = vmatmul.mubr.f32.gmra.mxu0 %v2713
        %v2823 = vpop.f32.mrf.mxu0
        %v2824 = vadd.f32 %v2725, %v2823
        %v2825 = vpop.f32.mrf.mxu0
        %2826 = vmatprep.mubr.f32.mxu0 0.0
        %2827 = vmatmul.mubr.f32.gmra.mxu0 %v2718
        %v2828 = vpop.f32.mrf.mxu0
        %v2829 = vadd.f32 %v2725, %v2828
        %v2830 = vpop.f32.mrf.mxu0
        %2831 = vdwg.mxu0
        %v2832 = vmax.f32 %v2794, 0.0
        %v2833 = vmax.f32 %v2799, 0.0
        %v2834 = vmax.f32 %v2804, 0.0
        %v2835 = vmax.f32 %v2809, 0.0
        %v2836 = vmax.f32 %v2814, 0.0
        %v2837 = vmax.f32 %v2819, 0.0
        %v2838 = vmax.f32 %v2824, 0.0
        %v2839 = vmax.f32 %v2829, 0.0
        %v2840 = vld [vmem:[#allocation26] sm:$0xff]
        %v2841 = vld [vmem:[#allocation26 + $0x8] sm:$0xff]
        %v2842 = vld [vmem:[#allocation26 + $0x10] sm:$0xff]
        %v2843 = vld [vmem:[#allocation26 + $0x18] sm:$0xff]
        %v2844 = vld [vmem:[#allocation26 + $0x20] sm:$0xff]
        %v2845 = vld [vmem:[#allocation26 + $0x28] sm:$0xff]
        %v2846 = vld [vmem:[#allocation26 + $0x30] sm:$0xff]
        %v2847 = vld [vmem:[#allocation26 + $0x38] sm:$0xff]
        %v2848 = vld [vmem:[#allocation26 + $0x40] sm:$0xff]
        %v2849 = vld [vmem:[#allocation26 + $0x48] sm:$0xff]
        %v2850 = vld [vmem:[#allocation26 + $0x50] sm:$0xff]
        %v2851 = vld [vmem:[#allocation26 + $0x58] sm:$0xff]
        %v2852 = vld [vmem:[#allocation26 + $0x60] sm:$0xff]
        %v2853 = vld [vmem:[#allocation26 + $0x68] sm:$0xff]
        %v2854 = vld [vmem:[#allocation26 + $0x70] sm:$0xff]
        %v2855 = vld [vmem:[#allocation26 + $0x78] sm:$0xff]
        %v2856 = vld [vmem:[#allocation28] sm:$0xff]
        %v2857 = vld [vmem:[#allocation28 + $0x8] sm:$0xff]
        %v2858 = vld [vmem:[#allocation28 + $0x10] sm:$0xff]
        %v2859 = vld [vmem:[#allocation28 + $0x18] sm:$0xff]
        %v2860 = vld [vmem:[#allocation28 + $0x20] sm:$0xff]
        %v2861 = vld [vmem:[#allocation28 + $0x28] sm:$0xff]
        %v2862 = vld [vmem:[#allocation28 + $0x30] sm:$0xff]
        %v2863 = vld [vmem:[#allocation28 + $0x38] sm:$0xff]
        %v2864 = vld [vmem:[#allocation28 + $0x40] sm:$0xff]
        %v2865 = vld [vmem:[#allocation28 + $0x48] sm:$0xff]
        %v2866 = vld [vmem:[#allocation28 + $0x50] sm:$0xff]
        %v2867 = vld [vmem:[#allocation28 + $0x58] sm:$0xff]
        %v2868 = vld [vmem:[#allocation28 + $0x60] sm:$0xff]
        %v2869 = vld [vmem:[#allocation28 + $0x68] sm:$0xff]
        %v2870 = vld [vmem:[#allocation28 + $0x70] sm:$0xff]
        %v2871 = vld [vmem:[#allocation28 + $0x78] sm:$0xff]
        %v2872 = vld [vmem:[%s24] sm:$0x1]
        %2873 = vmatprep.subr.mxu0 0.0
        %2874 = vmatpush1.msra.mxu0 %v2855
        %2875 = vmatprep.subr.mxu0 0.0
        %2876 = vmatpush1.msra.mxu0 %v2854
        %2877 = vmatprep.subr.mxu0 0.0
        %2878 = vmatpush1.msra.mxu0 %v2853
        %2879 = vmatprep.subr.mxu0 0.0
        %2880 = vmatpush1.msra.mxu0 %v2852
        %2881 = vmatprep.subr.mxu0 0.0
        %2882 = vmatpush1.msra.mxu0 %v2851
        %2883 = vmatprep.subr.mxu0 0.0
        %2884 = vmatpush1.msra.mxu0 %v2850
        %2885 = vmatprep.subr.mxu0 0.0
        %2886 = vmatpush1.msra.mxu0 %v2849
        %2887 = vmatprep.subr.mxu0 0.0
        %2888 = vmatpush1.msra.mxu0 %v2848
        %2889 = vmatprep.subr.mxu0 0.0
        %2890 = vmatpush1.msra.mxu0 %v2847
        %2891 = vmatprep.subr.mxu0 0.0
        %2892 = vmatpush1.msra.mxu0 %v2846
        %2893 = vmatprep.subr.mxu0 0.0
        %2894 = vmatpush1.msra.mxu0 %v2845
        %2895 = vmatprep.subr.mxu0 0.0
        %2896 = vmatpush1.msra.mxu0 %v2844
        %2897 = vmatprep.subr.mxu0 0.0
        %2898 = vmatpush1.msra.mxu0 %v2843
        %2899 = vmatprep.subr.mxu0 0.0
        %2900 = vmatpush1.msra.mxu0 %v2842
        %2901 = vmatprep.subr.mxu0 0.0
        %2902 = vmatpush1.msra.mxu0 %v2841
        %2903 = vmatprep.subr.mxu0 0.0
        %2904 = vmatpush1.msra.mxu0 %v2840
        %2905 = vmatprep.subr.mxu0 0.0
        %2906 = vmatpush2.msra.mxu0 0.0
        %2907 = vmatprep.subr.mxu0 0.0
        %2908 = vmatpush2.msra.mxu0 0.0
        %2909 = vmatprep.subr.mxu0 0.0
        %2910 = vmatpush2.msra.mxu0 0.0
        %2911 = vmatprep.subr.mxu0 0.0
        %2912 = vmatpush2.msra.mxu0 0.0
        %2913 = vmatprep.subr.mxu0 0.0
        %2914 = vmatpush2.msra.mxu0 0.0
        %2915 = vmatprep.subr.mxu0 0.0
        %2916 = vmatpush2.msra.mxu0 0.0
        %2917 = vmatprep.subr.mxu0 0.0
        %2918 = vmatpush2.msra.mxu0 0.0
        %2919 = vmatprep.subr.mxu0 0.0
        %2920 = vmatpush2.msra.mxu0 0.0
        %2921 = vmatprep.subr.mxu0 0.0
        %2922 = vmatpush2.msra.mxu0 0.0
        %2923 = vmatprep.subr.mxu0 0.0
        %2924 = vmatpush2.msra.mxu0 0.0
        %2925 = vmatprep.subr.mxu0 0.0
        %2926 = vmatpush2.msra.mxu0 0.0
        %2927 = vmatprep.subr.mxu0 0.0
        %2928 = vmatpush2.msra.mxu0 0.0
        %2929 = vmatprep.subr.mxu0 0.0
        %2930 = vmatpush2.msra.mxu0 0.0
        %2931 = vmatprep.subr.mxu0 0.0
        %2932 = vmatpush2.msra.mxu0 0.0
        %2933 = vmatprep.subr.mxu0 0.0
        %2934 = vmatpush2.msra.mxu0 0.0
        %2935 = vmatprep.subr.mxu0 0.0
        %2936 = vmatpush2.msra.mxu0 0.0
        %2937 = vmatprep.mubr.f32.mxu0 0.0
        %2938 = vmatmul.mubr.f32.gmra.mxu0 %v2832
        %v2939 = vpop.f32.mrf.mxu0
        %v2940 = vadd.f32 0.0, %v2939
        %v2941 = vpop.f32.mrf.mxu0
        %2942 = vmatprep.mubr.f32.mxu0 0.0
        %2943 = vmatmul.mubr.f32.gmra.mxu0 %v2833
        %v2944 = vpop.f32.mrf.mxu0
        %v2945 = vadd.f32 0.0, %v2944
        %v2946 = vpop.f32.mrf.mxu0
        %2947 = vmatprep.mubr.f32.mxu0 0.0
        %2948 = vmatmul.mubr.f32.gmra.mxu0 %v2834
        %v2949 = vpop.f32.mrf.mxu0
        %v2950 = vadd.f32 0.0, %v2949
        %v2951 = vpop.f32.mrf.mxu0
        %2952 = vmatprep.mubr.f32.mxu0 0.0
        %2953 = vmatmul.mubr.f32.gmra.mxu0 %v2835
        %v2954 = vpop.f32.mrf.mxu0
        %v2955 = vadd.f32 0.0, %v2954
        %v2956 = vpop.f32.mrf.mxu0
        %2957 = vmatprep.mubr.f32.mxu0 0.0
        %2958 = vmatmul.mubr.f32.gmra.mxu0 %v2836
        %v2959 = vpop.f32.mrf.mxu0
        %v2960 = vadd.f32 0.0, %v2959
        %v2961 = vpop.f32.mrf.mxu0
        %2962 = vmatprep.mubr.f32.mxu0 0.0
        %2963 = vmatmul.mubr.f32.gmra.mxu0 %v2837
        %v2964 = vpop.f32.mrf.mxu0
        %v2965 = vadd.f32 0.0, %v2964
        %v2966 = vpop.f32.mrf.mxu0
        %2967 = vmatprep.mubr.f32.mxu0 0.0
        %2968 = vmatmul.mubr.f32.gmra.mxu0 %v2838
        %v2969 = vpop.f32.mrf.mxu0
        %v2970 = vadd.f32 0.0, %v2969
        %v2971 = vpop.f32.mrf.mxu0
        %2972 = vmatprep.mubr.f32.mxu0 0.0
        %2973 = vmatmul.mubr.f32.gmra.mxu0 %v2839
        %v2974 = vpop.f32.mrf.mxu0
        %v2975 = vadd.f32 0.0, %v2974
        %v2976 = vpop.f32.mrf.mxu0
        %2977 = vdwg.mxu0
        %v2979 = vlaneseq
        %v2980 = vshrl.u32 %v2979, 7
        %v2981 = vsub.s32 0, %v2980
        %v2982 = vrot.slane %v2872, %v2981
        %2984 = vmatprep.subr.mxu0 0.0
        %2985 = vmatpush1.msra.mxu0 %v2871
        %2986 = vmatprep.subr.mxu0 0.0
        %2987 = vmatpush1.msra.mxu0 %v2870
        %2988 = vmatprep.subr.mxu0 0.0
        %2989 = vmatpush1.msra.mxu0 %v2869
        %2990 = vmatprep.subr.mxu0 0.0
        %2991 = vmatpush1.msra.mxu0 %v2868
        %2992 = vmatprep.subr.mxu0 0.0
        %2993 = vmatpush1.msra.mxu0 %v2867
        %2994 = vmatprep.subr.mxu0 0.0
        %2995 = vmatpush1.msra.mxu0 %v2866
        %2996 = vmatprep.subr.mxu0 0.0
        %2997 = vmatpush1.msra.mxu0 %v2865
        %2998 = vmatprep.subr.mxu0 0.0
        %2999 = vmatpush1.msra.mxu0 %v2864
        %3000 = vmatprep.subr.mxu0 0.0
        %3001 = vmatpush1.msra.mxu0 %v2863
        %3002 = vmatprep.subr.mxu0 0.0
        %3003 = vmatpush1.msra.mxu0 %v2862
        %3004 = vmatprep.subr.mxu0 0.0
        %3005 = vmatpush1.msra.mxu0 %v2861
        %3006 = vmatprep.subr.mxu0 0.0
        %3007 = vmatpush1.msra.mxu0 %v2860
        %3008 = vmatprep.subr.mxu0 0.0
        %3009 = vmatpush1.msra.mxu0 %v2859
        %3010 = vmatprep.subr.mxu0 0.0
        %3011 = vmatpush1.msra.mxu0 %v2858
        %3012 = vmatprep.subr.mxu0 0.0
        %3013 = vmatpush1.msra.mxu0 %v2857
        %3014 = vmatprep.subr.mxu0 0.0
        %3015 = vmatpush1.msra.mxu0 %v2856
        %3016 = vmatprep.subr.mxu0 0.0
        %3017 = vmatpush2.msra.mxu0 0.0
        %3018 = vmatprep.subr.mxu0 0.0
        %3019 = vmatpush2.msra.mxu0 0.0
        %3020 = vmatprep.subr.mxu0 0.0
        %3021 = vmatpush2.msra.mxu0 0.0
        %3022 = vmatprep.subr.mxu0 0.0
        %3023 = vmatpush2.msra.mxu0 0.0
        %3024 = vmatprep.subr.mxu0 0.0
        %3025 = vmatpush2.msra.mxu0 0.0
        %3026 = vmatprep.subr.mxu0 0.0
        %3027 = vmatpush2.msra.mxu0 0.0
        %3028 = vmatprep.subr.mxu0 0.0
        %3029 = vmatpush2.msra.mxu0 0.0
        %3030 = vmatprep.subr.mxu0 0.0
        %3031 = vmatpush2.msra.mxu0 0.0
        %3032 = vmatprep.subr.mxu0 0.0
        %3033 = vmatpush2.msra.mxu0 0.0
        %3034 = vmatprep.subr.mxu0 0.0
        %3035 = vmatpush2.msra.mxu0 0.0
        %3036 = vmatprep.subr.mxu0 0.0
        %3037 = vmatpush2.msra.mxu0 0.0
        %3038 = vmatprep.subr.mxu0 0.0
        %3039 = vmatpush2.msra.mxu0 0.0
        %3040 = vmatprep.subr.mxu0 0.0
        %3041 = vmatpush2.msra.mxu0 0.0
        %3042 = vmatprep.subr.mxu0 0.0
        %3043 = vmatpush2.msra.mxu0 0.0
        %3044 = vmatprep.subr.mxu0 0.0
        %3045 = vmatpush2.msra.mxu0 0.0
        %3046 = vmatprep.subr.mxu0 0.0
        %3047 = vmatpush2.msra.mxu0 0.0
        %3048 = vmatprep.mubr.f32.mxu0 0.0
        %3049 = vmatmul.mubr.f32.gmra.mxu0 %v2940
        %v3050 = vpop.f32.mrf.mxu0
        %v3051 = vadd.f32 %v2982, %v3050
        %v3052 = vpop.f32.mrf.mxu0
        %3053 = vmatprep.mubr.f32.mxu0 0.0
        %3054 = vmatmul.mubr.f32.gmra.mxu0 %v2945
        %v3055 = vpop.f32.mrf.mxu0
        %v3056 = vadd.f32 %v2982, %v3055
        %v3057 = vpop.f32.mrf.mxu0
        %3058 = vmatprep.mubr.f32.mxu0 0.0
        %3059 = vmatmul.mubr.f32.gmra.mxu0 %v2950
        %v3060 = vpop.f32.mrf.mxu0
        %v3061 = vadd.f32 %v2982, %v3060
        %v3062 = vpop.f32.mrf.mxu0
        %3063 = vmatprep.mubr.f32.mxu0 0.0
        %3064 = vmatmul.mubr.f32.gmra.mxu0 %v2955
        %v3065 = vpop.f32.mrf.mxu0
        %v3066 = vadd.f32 %v2982, %v3065
        %v3067 = vpop.f32.mrf.mxu0
        %3068 = vmatprep.mubr.f32.mxu0 0.0
        %3069 = vmatmul.mubr.f32.gmra.mxu0 %v2960
        %v3070 = vpop.f32.mrf.mxu0
        %v3071 = vadd.f32 %v2982, %v3070
        %v3072 = vpop.f32.mrf.mxu0
        %3073 = vmatprep.mubr.f32.mxu0 0.0
        %3074 = vmatmul.mubr.f32.gmra.mxu0 %v2965
        %v3075 = vpop.f32.mrf.mxu0
        %v3076 = vadd.f32 %v2982, %v3075
        %v3077 = vpop.f32.mrf.mxu0
        %3078 = vmatprep.mubr.f32.mxu0 0.0
        %3079 = vmatmul.mubr.f32.gmra.mxu0 %v2970
        %v3080 = vpop.f32.mrf.mxu0
        %v3081 = vadd.f32 %v2982, %v3080
        %v3082 = vpop.f32.mrf.mxu0
        %3083 = vmatprep.mubr.f32.mxu0 0.0
        %3084 = vmatmul.mubr.f32.gmra.mxu0 %v2975
        %v3085 = vpop.f32.mrf.mxu0
        %v3086 = vadd.f32 %v2982, %v3085
        %v3087 = vpop.f32.mrf.mxu0
        %3088 = vdwg.mxu0
        %3089 = vst [vmem:[%s1014] sm:$0xff] %v3051
        %3090 = vst [vmem:[%s1014 + $0x8] sm:$0xff] %v3056
        %3091 = vst [vmem:[%s1014 + $0x10] sm:$0xff] %v3061
        %3092 = vst [vmem:[%s1014 + $0x18] sm:$0xff] %v3066
        %3093 = vst [vmem:[%s1014 + $0x20] sm:$0xff] %v3071
        %3094 = vst [vmem:[%s1014 + $0x28] sm:$0xff] %v3076
        %3095 = vst [vmem:[%s1014 + $0x30] sm:$0xff] %v3081
        %3096 = vst [vmem:[%s1014 + $0x38] sm:$0xff] %v3086
        %s3097 = sand.u32 %s588, 1
        %s3098 = scalar_lea.sflag [#allocation4], %s3097
        %s3099 = sand.u32 %s588, 1
        %s3100 = smul.addr %s3099, 64
        %s3101 = scalar_lea.vmem [#allocation29], %s3100
        // Predicated region
        $region189: #{tpu_custom_call.1} parent=119 // pred_check
          %p3102 = pneg %p598
        $region190: #{tpu_custom_call.1} parent=119 // pred_check_branch
          %3104 = sbr.rel (%p3102) target = $region192
        $region191: #{tpu_custom_call.1} parent=119 // pred_region
          %s3105 = smul.u32 8, %s50
          %s3107 = ssub.s32 1024, 1024
          %3108 = vsyncadd %s3098, %s3107
          %s3109 = smul.addr %s3105, 128
          %s3110 = scalar_lea.hbm %s25, %s3109
          %s3111 = sshll.u32 %s3101, 4
          %s3112 = int_to_ptr.vmem [resolvable:$true] %s3111
          %3117 = dma.vmem_to_hbm [thread:$0]  %s3112, 1024, %s3110, %s3098, 128, 128, 8
        $region192: #{tpu_custom_call.1} parent=119 // pred_fallthru
          _
      $region120: #{tpu_custom_call.1} parent=5 // pred_fallthru
        _
      %p3118 = scmp.le.s32.totalorder 2, %s45
      // Predicated region
      $region193: #{tpu_custom_call.1} parent=5 // pred_check
        %p3119 = pneg %p3118
      $region194: #{tpu_custom_call.1} parent=5 // pred_check_branch
        %3121 = sbr.rel (%p3119) target = $region196
      $region195: #{tpu_custom_call.1} parent=5 // pred_region
        %s3122 = ssub.s32 %s45, 2
        // Predicated region
        $region197: #{tpu_custom_call.1} parent=195 // pred_check
          %p3123 = pneg %p604
        $region198: #{tpu_custom_call.1} parent=195 // pred_check_branch
          %3125 = sbr.rel (%p3123) target = $region200
        $region199: #{tpu_custom_call.1} parent=195 // pred_region
          %s3126 = sand.u32 %s589, 1
          %s3127 = scalar_lea.sflag [#allocation4], %s3126
          %s3128 = sand.u32 %s589, 1
          %s3129 = smul.addr %s3128, 64
          %s3130 = scalar_lea.vmem [#allocation29], %s3129
          %3131 = dma.done %s3127, 1024
        $region200: #{tpu_custom_call.1} parent=195 // pred_fallthru
          _
      $region196: #{tpu_custom_call.1} parent=5 // pred_fallthru
        _
    $region6: #{tpu_custom_call.1} parent=1 // loop_footer
      %s49 = sadd.s32 1, %s45
    $region7: #{tpu_custom_call.1} parent=1 // loop_footer_branch
      %44 = sbr.rel target = $region3
    $region8: #{tpu_custom_call.1} parent=1 // loop_exit
      _
    %3132 = vsyncpa [#allocation3], 1
    %s3133 = scalar_lea.sflag [#allocation3], 1
    %3134 = vsyncpa %s3133, 1
    %3135 = vsyncpa [#allocation6], 1
    %3136 = vsyncpa [#allocation9], 1
    %3137 = vsyncpa [#allocation12], 1
    %3138 = vsyncpa [#allocation15], 1
    %3139 = vsyncpa [#allocation18], 1
    %3140 = vsyncpa [#allocation21], 1
    %3141 = vsyncpa [#allocation24], 1
    %3142 = vsyncpa [#allocation27], 1
    %3143 = vsyncpa [#allocation4], 1
    %s3144 = scalar_lea.sflag [#allocation4], 1
    %3145 = vsyncpa %s3144, 1

</llo_original>
